<compile_context>
chip_gen: v6e
topology: v6e:2x2x1
jax: 0.10.0
libtpu: 0.0.40
codegen_flags: <defaults>
</compile_context>

<pallas_src>
import functools

import jax
import jax.numpy as jnp
from jax.experimental import pallas as pl
from jax.experimental.pallas import tpu as pltpu


def _spatial_attn_kernel(w_ref, x_ref, o_ref, sum_ref, max_ref, pad_ref,
                         shift_ref, *, H, W, K, pad):
    """One grid step.

    w_ref     : SMEM f32[2*K*K]        conv weight, layout [in_ch, kh, kw];
                                       the 1/C mean scale is pre-folded into
                                       the in_ch == 0 taps.
    x_ref     : VMEM [Bt, Ct, H, W]    one (batch tile, channel tile) block
    o_ref     : VMEM [Bt, 1, H, W]     output block (written on last C step)
    sum_ref   : VMEM f32[Bt, H, W]     running channel sum
    max_ref   : VMEM f32[Bt, H, W]     running channel max
    pad_ref   : VMEM f32[2, Bt, H+2p, W+2p]  zero-padded (sum, max) conv inputs
    shift_ref : VMEM f32[2, Bt, H+2p, W]     kw lane-shifted staging slabs
    """
    c_idx = pl.program_id(1)
    n_c = pl.num_programs(1)

    bt = x_ref.shape[0]
    hp = H + 2 * pad
    wp = W + 2 * pad

    # ---- running channel reduction over the channel-tile grid axis ----------
    xv = x_ref[...]                                        # (Bt, Ct, H, W)
    part_sum = jnp.sum(xv.astype(jnp.float32), axis=1)     # accumulate in f32
    # max is exact in the input dtype; cast once afterwards (cheaper for bf16).
    part_max = jnp.max(xv, axis=1).astype(jnp.float32)

    @pl.when(c_idx == 0)
    def _init():
        sum_ref[...] = part_sum
        max_ref[...] = part_max
        # Zero only the conv halo (4 thin strips); the interior is fully
        # overwritten before the conv reads it.  Re-done per batch tile so it
        # stays correct when the parallel batch axis is sharded across
        # TensorCores (scratch is per-core).
        row_zeros = jnp.zeros((2, bt, pad, wp), jnp.float32)
        col_zeros = jnp.zeros((2, bt, hp, pad), jnp.float32)
        pad_ref[:, :, :pad, :] = row_zeros
        pad_ref[:, :, pad + H:, :] = row_zeros
        pad_ref[:, :, :, :pad] = col_zeros
        pad_ref[:, :, :, pad + W:] = col_zeros

    @pl.when(c_idx > 0)
    def _accumulate():
        sum_ref[...] = sum_ref[...] + part_sum
        max_ref[...] = jnp.maximum(max_ref[...], part_max)

    # ---- last channel step: conv(2 -> 1, KxK, zero pad) + sigmoid -----------
    @pl.when(c_idx == n_c - 1)
    def _finalize():
        # 1/C is folded into the avg-channel conv weights -> store the raw sum.
        pad_ref[0, :, pad:pad + H, pad:pad + W] = sum_ref[...]
        pad_ref[1, :, pad:pad + H, pad:pad + W] = max_ref[...]

        # Unrolled shift-and-MAC convolution (vectorized over the batch tile):
        #  * per kw, both lane-shifted slabs are staged into VMEM once; the K
        #    sublane-offset taps then come back as plain vector loads (vld
        #    slots) instead of value-level sublane splices on the XLU,
        #  * 8 independent accumulators break the serial add chain so the
        #    packer can fill the 4 VALU slots (no f32 FMA on v5e/v6e).
        # TODO(synk): strip-mine over H bands once batch tiles get large enough
        # that the live f32 temporaries spill heavily to VMEM.
        accs = [jnp.zeros((bt, H, W), jnp.float32) for _ in range(8)]
        tap = 0
        for kw in range(K):
            for c in range(2):
                shift_ref[c] = pad_ref[c, :, :, kw:kw + W]   # 2*K lane shifts total
            for c in range(2):
                for kh in range(K):
                    wv = w_ref[c * K * K + kh * K + kw]      # scalar from SMEM
                    tapv = shift_ref[c, :, kh:kh + H, :]     # plain vector load
                    accs[tap % 8] = accs[tap % 8] + wv * tapv
                    tap += 1
        acc = ((accs[0] + accs[1]) + (accs[2] + accs[3])) + \
              ((accs[4] + accs[5]) + (accs[6] + accs[7]))

        o_ref[...] = jnp.expand_dims(jax.nn.sigmoid(acc), 1).astype(o_ref.dtype)


def _round_up(v, m):
    return ((v + m - 1) // m) * m


def _divisors_desc(n):
    return [d for d in range(n, 0, -1) if n % d == 0]


def _est_vmem_bytes(bt, ct, H, W, hp, wp, itemsize):
    """Rough per-step VMEM footprint: double-buffered in/out blocks + scratch,
    with trailing two dims rounded up to the (8, 128) vreg tile."""
    h_t, w_t = _round_up(H, 8), _round_up(W, 128)
    hp_t, wp_t = _round_up(hp, 8), _round_up(wp, 128)
    x_blk = bt * ct * h_t * w_t * itemsize
    o_blk = bt * h_t * w_t * itemsize
    scratch = (2 * bt * h_t * w_t * 4          # running sum / max
               + 2 * bt * hp_t * wp_t * 4      # zero-padded conv inputs
               + 2 * bt * hp_t * w_t * 4)      # kw-shift staging slabs
    return 2 * (x_blk + o_blk) + scratch


def _hw_config():
    """Per-generation sizing.

    v5e / v6e: 128 MiB physical VMEM, single TensorCore -> large budget and
    blocks, 64 MiB scoped limit.
    v7x: 64 MiB physical VMEM, 2 TensorCores -> conservative budget, tighter
    scoped cap, and require >= 2 blocks along the 'parallel' batch axis so
    both cores get work (mem-bound kernel -> ~2x otherwise).
    """
    vmem_cap = 64 << 20                     # conservative default (v7x-sized)
    try:
        vmem_cap = int(pltpu.get_tpu_info().vmem_capacity_bytes)
    except Exception:
        pass
    if vmem_cap >= (96 << 20):              # v5e / v6e class (128 MiB VMEM)
        return dict(vmem_budget=48 << 20, target_block_bytes=6 << 20,
                    vmem_limit_cap=64 << 20, min_parallel_blocks=1)
    return dict(vmem_budget=36 << 20, target_block_bytes=4 << 20,   # v7x class
                vmem_limit_cap=44 << 20, min_parallel_blocks=2)


def _pick_tiles(N, C, H, W, hp, wp, itemsize, *,
                vmem_budget, target_block_bytes, min_parallel_blocks):
    """Choose (batch tile, channel tile).

    * keep all of C resident when it fits; otherwise fold C into the innermost
      "arbitrary" reduction grid axis,
    * grow the batch tile toward target_block_bytes (amortizes the ~0.35us
      per-grid-step overhead of this HBM-bound reduction) within the VMEM
      budget, while keeping at least `min_parallel_blocks` blocks on the
      parallel batch axis (v7x: 2 TensorCores).
    """
    ct = 1
    for d in _divisors_desc(C):
        if _est_vmem_bytes(1, d, H, W, hp, wp, itemsize) <= vmem_budget:
            ct = d
            break

    bt_cap = max(1, N // max(1, min_parallel_blocks))
    bt = 1
    for d in _divisors_desc(N):
        if d > bt_cap:
            continue
        if d > 1 and d * ct * H * W * itemsize > target_block_bytes:
            continue
        if _est_vmem_bytes(d, ct, H, W, hp, wp, itemsize) <= vmem_budget:
            bt = d
            break
    # TODO(synk): H-band tiling (band + 2*pad halo) when even bt = ct = 1
    # exceeds the budget, and pl.cdiv grids / wrapper padding for prime N or C.
    return bt, ct


def spatial_attention(x, weight, kernel_size=7):
    """Pallas-TPU SpatialAttention forward.

    x      : (N, C, H, W) float32 (or bfloat16; reduction/conv accumulate in f32).
    weight : (1, 2, K, K) conv1 weight of Conv2d(2, 1, K, padding=K//2, bias=False).
    Returns: (N, 1, H, W) sigmoid attention map, dtype of x.
    """
    assert kernel_size in (3, 7), "kernel size must be 3 or 7"
    N, C, H, W = x.shape
    K = kernel_size
    pad = 3 if K == 7 else 1
    hp, wp = H + 2 * pad, W + 2 * pad

    # Fold the 1/C mean scaling into the avg-channel (in_ch == 0) conv weights
    # at trace time: the kernel then feeds the raw channel sum to the conv.
    chan_scale = jnp.array([1.0 / C, 1.0], jnp.float32).reshape(1, 2, 1, 1)
    w_flat = (weight.astype(jnp.float32) * chan_scale).reshape(-1)   # (2*K*K,)

    cfg = _hw_config()
    itemsize = x.dtype.itemsize
    bt, ct = _pick_tiles(N, C, H, W, hp, wp, itemsize,
                         vmem_budget=cfg["vmem_budget"],
                         target_block_bytes=cfg["target_block_bytes"],
                         min_parallel_blocks=cfg["min_parallel_blocks"])
    est = _est_vmem_bytes(bt, ct, H, W, hp, wp, itemsize)
    vmem_limit = int(max(32 << 20, min(est + (8 << 20), cfg["vmem_limit_cap"])))

    kernel = functools.partial(_spatial_attn_kernel, H=H, W=W, K=K, pad=pad)

    return pl.pallas_call(
        kernel,
        out_shape=jax.ShapeDtypeStruct((N, 1, H, W), x.dtype),
        grid=(N // bt, C // ct),                      # reduction (C) axis last
        in_specs=[
            pl.BlockSpec(memory_space=pltpu.MemorySpace.SMEM),        # conv weights
            pl.BlockSpec((bt, ct, H, W), lambda b, c: (b, c, 0, 0)),  # activations
        ],
        out_specs=pl.BlockSpec((bt, 1, H, W), lambda b, c: (b, 0, 0, 0)),
        scratch_shapes=[
            pltpu.VMEM((bt, H, W), jnp.float32),        # running channel sum
            pltpu.VMEM((bt, H, W), jnp.float32),        # running channel max
            pltpu.VMEM((2, bt, hp, wp), jnp.float32),   # zero-padded conv inputs
            pltpu.VMEM((2, bt, hp, W), jnp.float32),    # kw-shift staging slabs
        ],
        compiler_params=pltpu.CompilerParams(
            dimension_semantics=("parallel", "arbitrary"),
            vmem_limit_bytes=vmem_limit),
    )(w_flat, x)


def _reference(x, weight, kernel_size=7):
    # Pure-JAX reference replicating the PyTorch forward (correctness check).
    pad = 3 if kernel_size == 7 else 1
    avg_out = jnp.mean(x, axis=1, keepdims=True)
    max_out = jnp.max(x, axis=1, keepdims=True)
    cat = jnp.concatenate([avg_out, max_out], axis=1)            # (N, 2, H, W)
    conv = jax.lax.conv_general_dilated(
        cat, weight, window_strides=(1, 1),
        padding=[(pad, pad), (pad, pad)],
        dimension_numbers=("NCHW", "OIHW", "NCHW"))
    return jax.nn.sigmoid(conv)


if __name__ == "__main__":
    key = jax.random.PRNGKey(0)
    kx, kw = jax.random.split(key)

    N, C, H, W = 2, 4, 16, 16
    K = 7
    x = jax.random.normal(kx, (N, C, H, W), dtype=jnp.float32)
    # Deterministic synthetic conv1 weight: Conv2d(2, 1, 7, padding=3, bias=False)
    weight = (jax.random.normal(kw, (1, 2, K, K), dtype=jnp.float32)
              * (1.0 / (2 * K * K) ** 0.5))

    out = spatial_attention(x, weight, kernel_size=K)
    out = jax.block_until_ready(out)

    ref = _reference(x, weight, kernel_size=K)
    assert out.shape == (N, 1, H, W)
    assert jnp.allclose(out, ref, atol=1e-5, rtol=1e-5), "mismatch vs reference"

    print("KERNEL_OK")
</pallas_src>

<mosaic_0001>
module attributes {stable_mosaic.version = 11 : i64} {
  func.func @_spatial_attn_kernel(%arg0: i32, %arg1: i32, %arg2: memref<98xf32, #tpu.memory_space<smem>>, %arg3: memref<1x4x16x16xf32, #tpu.memory_space<vmem>>, %arg4: memref<1x1x16x16xf32, #tpu.memory_space<vmem>>, %arg5: memref<1x16x16xf32, #tpu.memory_space<vmem>>, %arg6: memref<1x16x16xf32, #tpu.memory_space<vmem>>, %arg7: memref<2x1x22x22xf32, #tpu.memory_space<vmem>>, %arg8: memref<2x1x22x16xf32, #tpu.memory_space<vmem>>) attributes {dimension_semantics = [#tpu.dimension_semantics<parallel>, #tpu.dimension_semantics<arbitrary>], iteration_bounds = array<i64: 2, 1>, scalar_prefetch = 0 : i64, scratch_operands = 4 : i64, tpu.core_type = #tpu.core_type<tc>, window_params = [{transform_indices = @transform_0, window_bounds = array<i64: 98>}, {transform_indices = @transform_1, window_bounds = array<i64: 1, 4, 16, 16>}, {transform_indices = @transform_2, window_bounds = array<i64: 1, 1, 16, 16>}]} {
    %c0 = arith.constant 0 : index
    %c0_0 = arith.constant 0 : index
    %c0_1 = arith.constant 0 : index
    %c0_2 = arith.constant 0 : index
    %0 = vector.load %arg3[%c0, %c0_0, %c0_1, %c0_2] : memref<1x4x16x16xf32, #tpu.memory_space<vmem>>, vector<1x4x16x16xf32>
    %cst = arith.constant dense<0.000000e+00> : vector<1x16x16xf32>
    %1 = vector.multi_reduction <add>, %0, %cst [1] : vector<1x4x16x16xf32> to vector<1x16x16xf32>
    %cst_3 = arith.constant dense<0xFF800000> : vector<1x16x16xf32>
    %2 = vector.multi_reduction <maximumf>, %0, %cst_3 [1] : vector<1x4x16x16xf32> to vector<1x16x16xf32>
    %c0_i32 = arith.constant 0 : i32
    %3 = arith.cmpi eq, %arg1, %c0_i32 : i32
    %4 = arith.extui %3 : i1 to i32
    %c0_i32_4 = arith.constant 0 : i32
    %5 = arith.cmpi ne, %4, %c0_i32_4 : i32
    scf.if %5 {
      %c0_9 = arith.constant 0 : index
      %c0_10 = arith.constant 0 : index
      %c0_11 = arith.constant 0 : index
      %12 = vector.load %arg5[%c0_9, %c0_10, %c0_11] : memref<1x16x16xf32, #tpu.memory_space<vmem>>, vector<1x16x16xf32>
      tpu.vector_store %arg5[%c0_9, %c0_10, %c0_11], %1 {strides = array<i32>} : memref<1x16x16xf32, #tpu.memory_space<vmem>>, vector<1x16x16xf32>,
      %c0_12 = arith.constant 0 : index
      %c0_13 = arith.constant 0 : index
      %c0_14 = arith.constant 0 : index
      %13 = vector.load %arg6[%c0_12, %c0_13, %c0_14] : memref<1x16x16xf32, #tpu.memory_space<vmem>>, vector<1x16x16xf32>
      tpu.vector_store %arg6[%c0_12, %c0_13, %c0_14], %2 {strides = array<i32>} : memref<1x16x16xf32, #tpu.memory_space<vmem>>, vector<1x16x16xf32>,
      %cst_15 = arith.constant 0.000000e+00 : f32
      %14 = vector.broadcast %cst_15 : f32 to vector<2x1x3x22xf32>
      %cst_16 = arith.constant 0.000000e+00 : f32
      %15 = vector.broadcast %cst_16 : f32 to vector<2x1x22x3xf32>
      %c0_17 = arith.constant 0 : index
      %c0_18 = arith.constant 0 : index
      %c0_19 = arith.constant 0 : index
      %c0_20 = arith.constant 0 : index
      %16 = vector.load %arg7[%c0_17, %c0_18, %c0_19, %c0_20] : memref<2x1x22x22xf32, #tpu.memory_space<vmem>>, vector<2x1x3x22xf32>
      tpu.vector_store %arg7[%c0_17, %c0_18, %c0_19, %c0_20], %14 {strides = array<i32>} : memref<2x1x22x22xf32, #tpu.memory_space<vmem>>, vector<2x1x3x22xf32>,
      %c0_21 = arith.constant 0 : index
      %c0_22 = arith.constant 0 : index
      %c19 = arith.constant 19 : index
      %c0_23 = arith.constant 0 : index
      %17 = vector.load %arg7[%c0_21, %c0_22, %c19, %c0_23] : memref<2x1x22x22xf32, #tpu.memory_space<vmem>>, vector<2x1x3x22xf32>
      tpu.vector_store %arg7[%c0_21, %c0_22, %c19, %c0_23], %14 {strides = array<i32>} : memref<2x1x22x22xf32, #tpu.memory_space<vmem>>, vector<2x1x3x22xf32>,
      %c0_24 = arith.constant 0 : index
      %c0_25 = arith.constant 0 : index
      %c0_26 = arith.constant 0 : index
      %c0_27 = arith.constant 0 : index
      %18 = vector.load %arg7[%c0_24, %c0_25, %c0_26, %c0_27] : memref<2x1x22x22xf32, #tpu.memory_space<vmem>>, vector<2x1x22x3xf32>
      tpu.vector_store %arg7[%c0_24, %c0_25, %c0_26, %c0_27], %15 {strides = array<i32>} : memref<2x1x22x22xf32, #tpu.memory_space<vmem>>, vector<2x1x22x3xf32>,
      %c0_28 = arith.constant 0 : index
      %c0_29 = arith.constant 0 : index
      %c0_30 = arith.constant 0 : index
      %c19_31 = arith.constant 19 : index
      %19 = vector.load %arg7[%c0_28, %c0_29, %c0_30, %c19_31] : memref<2x1x22x22xf32, #tpu.memory_space<vmem>>, vector<2x1x22x3xf32>
      tpu.vector_store %arg7[%c0_28, %c0_29, %c0_30, %c19_31], %15 {strides = array<i32>} : memref<2x1x22x22xf32, #tpu.memory_space<vmem>>, vector<2x1x22x3xf32>,
    } else {
    }
    %c0_i32_5 = arith.constant 0 : i32
    %6 = arith.cmpi sgt, %arg1, %c0_i32_5 : i32
    %7 = arith.extui %6 : i1 to i32
    %c0_i32_6 = arith.constant 0 : i32
    %8 = arith.cmpi ne, %7, %c0_i32_6 : i32
    scf.if %8 {
      %c0_9 = arith.constant 0 : index
      %c0_10 = arith.constant 0 : index
      %c0_11 = arith.constant 0 : index
      %12 = vector.load %arg5[%c0_9, %c0_10, %c0_11] : memref<1x16x16xf32, #tpu.memory_space<vmem>>, vector<1x16x16xf32>
      %13 = arith.addf %12, %1 : vector<1x16x16xf32>
      %c0_12 = arith.constant 0 : index
      %c0_13 = arith.constant 0 : index
      %c0_14 = arith.constant 0 : index
      %14 = vector.load %arg5[%c0_12, %c0_13, %c0_14] : memref<1x16x16xf32, #tpu.memory_space<vmem>>, vector<1x16x16xf32>
      tpu.vector_store %arg5[%c0_12, %c0_13, %c0_14], %13 {strides = array<i32>} : memref<1x16x16xf32, #tpu.memory_space<vmem>>, vector<1x16x16xf32>,
      %c0_15 = arith.constant 0 : index
      %c0_16 = arith.constant 0 : index
      %c0_17 = arith.constant 0 : index
      %15 = vector.load %arg6[%c0_15, %c0_16, %c0_17] : memref<1x16x16xf32, #tpu.memory_space<vmem>>, vector<1x16x16xf32>
      %16 = arith.maximumf %15, %2 : vector<1x16x16xf32>
      %c0_18 = arith.constant 0 : index
      %c0_19 = arith.constant 0 : index
      %c0_20 = arith.constant 0 : index
      %17 = vector.load %arg6[%c0_18, %c0_19, %c0_20] : memref<1x16x16xf32, #tpu.memory_space<vmem>>, vector<1x16x16xf32>
      tpu.vector_store %arg6[%c0_18, %c0_19, %c0_20], %16 {strides = array<i32>} : memref<1x16x16xf32, #tpu.memory_space<vmem>>, vector<1x16x16xf32>,
    } else {
    }
    %c0_i32_7 = arith.constant 0 : i32
    %9 = arith.cmpi eq, %arg1, %c0_i32_7 : i32
    %10 = arith.extui %9 : i1 to i32
    %c0_i32_8 = arith.constant 0 : i32
    %11 = arith.cmpi ne, %10, %c0_i32_8 : i32
    scf.if %11 {
      %c0_9 = arith.constant 0 : index
      %c0_10 = arith.constant 0 : index
      %c0_11 = arith.constant 0 : index
      %12 = vector.load %arg5[%c0_9, %c0_10, %c0_11] : memref<1x16x16xf32, #tpu.memory_space<vmem>>, vector<1x16x16xf32>
      %c0_12 = arith.constant 0 : index
      %c0_13 = arith.constant 0 : index
      %c3 = arith.constant 3 : index
      %c3_14 = arith.constant 3 : index
      %13 = vector.load %arg7[%c0_12, %c0_13, %c3, %c3_14] : memref<2x1x22x22xf32, #tpu.memory_space<vmem>>, vector<1x1x16x16xf32>
      %14 = vector.shape_cast %13 : vector<1x1x16x16xf32> to vector<1x16x16xf32>
      %15 = vector.shape_cast %12 : vector<1x16x16xf32> to vector<1x1x16x16xf32>
      tpu.vector_store %arg7[%c0_12, %c0_13, %c3, %c3_14], %15 {strides = array<i32>} : memref<2x1x22x22xf32, #tpu.memory_space<vmem>>, vector<1x1x16x16xf32>,
      %c0_15 = arith.constant 0 : index
      %c0_16 = arith.constant 0 : index
      %c0_17 = arith.constant 0 : index
      %16 = vector.load %arg6[%c0_15, %c0_16, %c0_17] : memref<1x16x16xf32, #tpu.memory_space<vmem>>, vector<1x16x16xf32>
      %c1 = arith.constant 1 : index
      %c0_18 = arith.constant 0 : index
      %c3_19 = arith.constant 3 : index
      %c3_20 = arith.constant 3 : index
      %17 = vector.load %arg7[%c1, %c0_18, %c3_19, %c3_20] : memref<2x1x22x22xf32, #tpu.memory_space<vmem>>, vector<1x1x16x16xf32>
      %18 = vector.shape_cast %17 : vector<1x1x16x16xf32> to vector<1x16x16xf32>
      %19 = vector.shape_cast %16 : vector<1x16x16xf32> to vector<1x1x16x16xf32>
      tpu.vector_store %arg7[%c1, %c0_18, %c3_19, %c3_20], %19 {strides = array<i32>} : memref<2x1x22x22xf32, #tpu.memory_space<vmem>>, vector<1x1x16x16xf32>,
      %cst_21 = arith.constant 0.000000e+00 : f32
      %20 = vector.broadcast %cst_21 : f32 to vector<1x16x16xf32>
      %cst_22 = arith.constant 0.000000e+00 : f32
      %21 = vector.broadcast %cst_22 : f32 to vector<1x16x16xf32>
      %cst_23 = arith.constant 0.000000e+00 : f32
      %22 = vector.broadcast %cst_23 : f32 to vector<1x16x16xf32>
      %cst_24 = arith.constant 0.000000e+00 : f32
      %23 = vector.broadcast %cst_24 : f32 to vector<1x16x16xf32>
      %cst_25 = arith.constant 0.000000e+00 : f32
      %24 = vector.broadcast %cst_25 : f32 to vector<1x16x16xf32>
      %cst_26 = arith.constant 0.000000e+00 : f32
      %25 = vector.broadcast %cst_26 : f32 to vector<1x16x16xf32>
      %cst_27 = arith.constant 0.000000e+00 : f32
      %26 = vector.broadcast %cst_27 : f32 to vector<1x16x16xf32>
      %cst_28 = arith.constant 0.000000e+00 : f32
      %27 = vector.broadcast %cst_28 : f32 to vector<1x16x16xf32>
      %c0_29 = arith.constant 0 : index
      %c0_30 = arith.constant 0 : index
      %c0_31 = arith.constant 0 : index
      %c0_32 = arith.constant 0 : index
      %28 = vector.load %arg7[%c0_29, %c0_30, %c0_31, %c0_32] : memref<2x1x22x22xf32, #tpu.memory_space<vmem>>, vector<1x1x22x16xf32>
      %29 = vector.shape_cast %28 : vector<1x1x22x16xf32> to vector<1x22x16xf32>
      %c0_33 = arith.constant 0 : index
      %c0_34 = arith.constant 0 : index
      %c0_35 = arith.constant 0 : index
      %c0_36 = arith.constant 0 : index
      %30 = vector.load %arg8[%c0_33, %c0_34, %c0_35, %c0_36] : memref<2x1x22x16xf32, #tpu.memory_space<vmem>>, vector<1x1x22x16xf32>
      %31 = vector.shape_cast %30 : vector<1x1x22x16xf32> to vector<1x22x16xf32>
      %32 = vector.shape_cast %29 : vector<1x22x16xf32> to vector<1x1x22x16xf32>
      tpu.vector_store %arg8[%c0_33, %c0_34, %c0_35, %c0_36], %32 {strides = array<i32>} : memref<2x1x22x16xf32, #tpu.memory_space<vmem>>, vector<1x1x22x16xf32>,
      %c1_37 = arith.constant 1 : index
      %c0_38 = arith.constant 0 : index
      %c0_39 = arith.constant 0 : index
      %c0_40 = arith.constant 0 : index
      %33 = vector.load %arg7[%c1_37, %c0_38, %c0_39, %c0_40] : memref<2x1x22x22xf32, #tpu.memory_space<vmem>>, vector<1x1x22x16xf32>
      %34 = vector.shape_cast %33 : vector<1x1x22x16xf32> to vector<1x22x16xf32>
      %c1_41 = arith.constant 1 : index
      %c0_42 = arith.constant 0 : index
      %c0_43 = arith.constant 0 : index
      %c0_44 = arith.constant 0 : index
      %35 = vector.load %arg8[%c1_41, %c0_42, %c0_43, %c0_44] : memref<2x1x22x16xf32, #tpu.memory_space<vmem>>, vector<1x1x22x16xf32>
      %36 = vector.shape_cast %35 : vector<1x1x22x16xf32> to vector<1x22x16xf32>
      %37 = vector.shape_cast %34 : vector<1x22x16xf32> to vector<1x1x22x16xf32>
      tpu.vector_store %arg8[%c1_41, %c0_42, %c0_43, %c0_44], %37 {strides = array<i32>} : memref<2x1x22x16xf32, #tpu.memory_space<vmem>>, vector<1x1x22x16xf32>,
      %c0_45 = arith.constant 0 : index
      %38 = memref.load %arg2[%c0_45] : memref<98xf32, #tpu.memory_space<smem>>
      %c0_46 = arith.constant 0 : index
      %c0_47 = arith.constant 0 : index
      %c0_48 = arith.constant 0 : index
      %c0_49 = arith.constant 0 : index
      %39 = vector.load %arg8[%c0_46, %c0_47, %c0_48, %c0_49] : memref<2x1x22x16xf32, #tpu.memory_space<vmem>>, vector<1x1x16x16xf32>
      %40 = vector.shape_cast %39 : vector<1x1x16x16xf32> to vector<1x16x16xf32>
      %41 = vector.broadcast %38 : f32 to vector<1x16x16xf32>
      %42 = arith.mulf %41, %40 : vector<1x16x16xf32>
      %43 = arith.addf %20, %42 : vector<1x16x16xf32>
      %c7 = arith.constant 7 : index
      %44 = memref.load %arg2[%c7] : memref<98xf32, #tpu.memory_space<smem>>
      %c0_50 = arith.constant 0 : index
      %c0_51 = arith.constant 0 : index
      %c1_52 = arith.constant 1 : index
      %c0_53 = arith.constant 0 : index
      %45 = vector.load %arg8[%c0_50, %c0_51, %c1_52, %c0_53] : memref<2x1x22x16xf32, #tpu.memory_space<vmem>>, vector<1x1x16x16xf32>
      %46 = vector.shape_cast %45 : vector<1x1x16x16xf32> to vector<1x16x16xf32>
      %47 = vector.broadcast %44 : f32 to vector<1x16x16xf32>
      %48 = arith.mulf %47, %46 : vector<1x16x16xf32>
      %49 = arith.addf %21, %48 : vector<1x16x16xf32>
      %c14 = arith.constant 14 : index
      %50 = memref.load %arg2[%c14] : memref<98xf32, #tpu.memory_space<smem>>
      %c0_54 = arith.constant 0 : index
      %c0_55 = arith.constant 0 : index
      %c2 = arith.constant 2 : index
      %c0_56 = arith.constant 0 : index
      %51 = vector.load %arg8[%c0_54, %c0_55, %c2, %c0_56] : memref<2x1x22x16xf32, #tpu.memory_space<vmem>>, vector<1x1x16x16xf32>
      %52 = vector.shape_cast %51 : vector<1x1x16x16xf32> to vector<1x16x16xf32>
      %53 = vector.broadcast %50 : f32 to vector<1x16x16xf32>
      %54 = arith.mulf %53, %52 : vector<1x16x16xf32>
      %55 = arith.addf %22, %54 : vector<1x16x16xf32>
      %c21 = arith.constant 21 : index
      %56 = memref.load %arg2[%c21] : memref<98xf32, #tpu.memory_space<smem>>
      %c0_57 = arith.constant 0 : index
      %c0_58 = arith.constant 0 : index
      %c3_59 = arith.constant 3 : index
      %c0_60 = arith.constant 0 : index
      %57 = vector.load %arg8[%c0_57, %c0_58, %c3_59, %c0_60] : memref<2x1x22x16xf32, #tpu.memory_space<vmem>>, vector<1x1x16x16xf32>
      %58 = vector.shape_cast %57 : vector<1x1x16x16xf32> to vector<1x16x16xf32>
      %59 = vector.broadcast %56 : f32 to vector<1x16x16xf32>
      %60 = arith.mulf %59, %58 : vector<1x16x16xf32>
      %61 = arith.addf %23, %60 : vector<1x16x16xf32>
      %c28 = arith.constant 28 : index
      %62 = memref.load %arg2[%c28] : memref<98xf32, #tpu.memory_space<smem>>
      %c0_61 = arith.constant 0 : index
      %c0_62 = arith.constant 0 : index
      %c4 = arith.constant 4 : index
      %c0_63 = arith.constant 0 : index
      %63 = vector.load %arg8[%c0_61, %c0_62, %c4, %c0_63] : memref<2x1x22x16xf32, #tpu.memory_space<vmem>>, vector<1x1x16x16xf32>
      %64 = vector.shape_cast %63 : vector<1x1x16x16xf32> to vector<1x16x16xf32>
      %65 = vector.broadcast %62 : f32 to vector<1x16x16xf32>
      %66 = arith.mulf %65, %64 : vector<1x16x16xf32>
      %67 = arith.addf %24, %66 : vector<1x16x16xf32>
      %c35 = arith.constant 35 : index
      %68 = memref.load %arg2[%c35] : memref<98xf32, #tpu.memory_space<smem>>
      %c0_64 = arith.constant 0 : index
      %c0_65 = arith.constant 0 : index
      %c5 = arith.constant 5 : index
      %c0_66 = arith.constant 0 : index
      %69 = vector.load %arg8[%c0_64, %c0_65, %c5, %c0_66] : memref<2x1x22x16xf32, #tpu.memory_space<vmem>>, vector<1x1x16x16xf32>
      %70 = vector.shape_cast %69 : vector<1x1x16x16xf32> to vector<1x16x16xf32>
      %71 = vector.broadcast %68 : f32 to vector<1x16x16xf32>
      %72 = arith.mulf %71, %70 : vector<1x16x16xf32>
      %73 = arith.addf %25, %72 : vector<1x16x16xf32>
      %c42 = arith.constant 42 : index
      %74 = memref.load %arg2[%c42] : memref<98xf32, #tpu.memory_space<smem>>
      %c0_67 = arith.constant 0 : index
      %c0_68 = arith.constant 0 : index
      %c6 = arith.constant 6 : index
      %c0_69 = arith.constant 0 : index
      %75 = vector.load %arg8[%c0_67, %c0_68, %c6, %c0_69] : memref<2x1x22x16xf32, #tpu.memory_space<vmem>>, vector<1x1x16x16xf32>
      %76 = vector.shape_cast %75 : vector<1x1x16x16xf32> to vector<1x16x16xf32>
      %77 = vector.broadcast %74 : f32 to vector<1x16x16xf32>
      %78 = arith.mulf %77, %76 : vector<1x16x16xf32>
      %79 = arith.addf %26, %78 : vector<1x16x16xf32>
      %c49 = arith.constant 49 : index
      %80 = memref.load %arg2[%c49] : memref<98xf32, #tpu.memory_space<smem>>
      %c1_70 = arith.constant 1 : index
      %c0_71 = arith.constant 0 : index
      %c0_72 = arith.constant 0 : index
      %c0_73 = arith.constant 0 : index
      %81 = vector.load %arg8[%c1_70, %c0_71, %c0_72, %c0_73] : memref<2x1x22x16xf32, #tpu.memory_space<vmem>>, vector<1x1x16x16xf32>
      %82 = vector.shape_cast %81 : vector<1x1x16x16xf32> to vector<1x16x16xf32>
      %83 = vector.broadcast %80 : f32 to vector<1x16x16xf32>
      %84 = arith.mulf %83, %82 : vector<1x16x16xf32>
      %85 = arith.addf %27, %84 : vector<1x16x16xf32>
      %c56 = arith.constant 56 : index
      %86 = memref.load %arg2[%c56] : memref<98xf32, #tpu.memory_space<smem>>
      %c1_74 = arith.constant 1 : index
      %c0_75 = arith.constant 0 : index
      %c1_76 = arith.constant 1 : index
      %c0_77 = arith.constant 0 : index
      %87 = vector.load %arg8[%c1_74, %c0_75, %c1_76, %c0_77] : memref<2x1x22x16xf32, #tpu.memory_space<vmem>>, vector<1x1x16x16xf32>
      %88 = vector.shape_cast %87 : vector<1x1x16x16xf32> to vector<1x16x16xf32>
      %89 = vector.broadcast %86 : f32 to vector<1x16x16xf32>
      %90 = arith.mulf %89, %88 : vector<1x16x16xf32>
      %91 = arith.addf %43, %90 : vector<1x16x16xf32>
      %c63 = arith.constant 63 : index
      %92 = memref.load %arg2[%c63] : memref<98xf32, #tpu.memory_space<smem>>
      %c1_78 = arith.constant 1 : index
      %c0_79 = arith.constant 0 : index
      %c2_80 = arith.constant 2 : index
      %c0_81 = arith.constant 0 : index
      %93 = vector.load %arg8[%c1_78, %c0_79, %c2_80, %c0_81] : memref<2x1x22x16xf32, #tpu.memory_space<vmem>>, vector<1x1x16x16xf32>
      %94 = vector.shape_cast %93 : vector<1x1x16x16xf32> to vector<1x16x16xf32>
      %95 = vector.broadcast %92 : f32 to vector<1x16x16xf32>
      %96 = arith.mulf %95, %94 : vector<1x16x16xf32>
      %97 = arith.addf %49, %96 : vector<1x16x16xf32>
      %c70 = arith.constant 70 : index
      %98 = memref.load %arg2[%c70] : memref<98xf32, #tpu.memory_space<smem>>
      %c1_82 = arith.constant 1 : index
      %c0_83 = arith.constant 0 : index
      %c3_84 = arith.constant 3 : index
      %c0_85 = arith.constant 0 : index
      %99 = vector.load %arg8[%c1_82, %c0_83, %c3_84, %c0_85] : memref<2x1x22x16xf32, #tpu.memory_space<vmem>>, vector<1x1x16x16xf32>
      %100 = vector.shape_cast %99 : vector<1x1x16x16xf32> to vector<1x16x16xf32>
      %101 = vector.broadcast %98 : f32 to vector<1x16x16xf32>
      %102 = arith.mulf %101, %100 : vector<1x16x16xf32>
      %103 = arith.addf %55, %102 : vector<1x16x16xf32>
      %c77 = arith.constant 77 : index
      %104 = memref.load %arg2[%c77] : memref<98xf32, #tpu.memory_space<smem>>
      %c1_86 = arith.constant 1 : index
      %c0_87 = arith.constant 0 : index
      %c4_88 = arith.constant 4 : index
      %c0_89 = arith.constant 0 : index
      %105 = vector.load %arg8[%c1_86, %c0_87, %c4_88, %c0_89] : memref<2x1x22x16xf32, #tpu.memory_space<vmem>>, vector<1x1x16x16xf32>
      %106 = vector.shape_cast %105 : vector<1x1x16x16xf32> to vector<1x16x16xf32>
      %107 = vector.broadcast %104 : f32 to vector<1x16x16xf32>
      %108 = arith.mulf %107, %106 : vector<1x16x16xf32>
      %109 = arith.addf %61, %108 : vector<1x16x16xf32>
      %c84 = arith.constant 84 : index
      %110 = memref.load %arg2[%c84] : memref<98xf32, #tpu.memory_space<smem>>
      %c1_90 = arith.constant 1 : index
      %c0_91 = arith.constant 0 : index
      %c5_92 = arith.constant 5 : index
      %c0_93 = arith.constant 0 : index
      %111 = vector.load %arg8[%c1_90, %c0_91, %c5_92, %c0_93] : memref<2x1x22x16xf32, #tpu.memory_space<vmem>>, vector<1x1x16x16xf32>
      %112 = vector.shape_cast %111 : vector<1x1x16x16xf32> to vector<1x16x16xf32>
      %113 = vector.broadcast %110 : f32 to vector<1x16x16xf32>
      %114 = arith.mulf %113, %112 : vector<1x16x16xf32>
      %115 = arith.addf %67, %114 : vector<1x16x16xf32>
      %c91 = arith.constant 91 : index
      %116 = memref.load %arg2[%c91] : memref<98xf32, #tpu.memory_space<smem>>
      %c1_94 = arith.constant 1 : index
      %c0_95 = arith.constant 0 : index
      %c6_96 = arith.constant 6 : index
      %c0_97 = arith.constant 0 : index
      %117 = vector.load %arg8[%c1_94, %c0_95, %c6_96, %c0_97] : memref<2x1x22x16xf32, #tpu.memory_space<vmem>>, vector<1x1x16x16xf32>
      %118 = vector.shape_cast %117 : vector<1x1x16x16xf32> to vector<1x16x16xf32>
      %119 = vector.broadcast %116 : f32 to vector<1x16x16xf32>
      %120 = arith.mulf %119, %118 : vector<1x16x16xf32>
      %121 = arith.addf %73, %120 : vector<1x16x16xf32>
      %c0_98 = arith.constant 0 : index
      %c0_99 = arith.constant 0 : index
      %c0_100 = arith.constant 0 : index
      %c1_101 = arith.constant 1 : index
      %122 = vector.load %arg7[%c0_98, %c0_99, %c0_100, %c1_101] : memref<2x1x22x22xf32, #tpu.memory_space<vmem>>, vector<1x1x22x16xf32>
      %123 = vector.shape_cast %122 : vector<1x1x22x16xf32> to vector<1x22x16xf32>
      %c0_102 = arith.constant 0 : index
      %c0_103 = arith.constant 0 : index
      %c0_104 = arith.constant 0 : index
      %c0_105 = arith.constant 0 : index
      %124 = vector.load %arg8[%c0_102, %c0_103, %c0_104, %c0_105] : memref<2x1x22x16xf32, #tpu.memory_space<vmem>>, vector<1x1x22x16xf32>
      %125 = vector.shape_cast %124 : vector<1x1x22x16xf32> to vector<1x22x16xf32>
      %126 = vector.shape_cast %123 : vector<1x22x16xf32> to vector<1x1x22x16xf32>
      tpu.vector_store %arg8[%c0_102, %c0_103, %c0_104, %c0_105], %126 {strides = array<i32>} : memref<2x1x22x16xf32, #tpu.memory_space<vmem>>, vector<1x1x22x16xf32>,
      %c1_106 = arith.constant 1 : index
      %c0_107 = arith.constant 0 : index
      %c0_108 = arith.constant 0 : index
      %c1_109 = arith.constant 1 : index
      %127 = vector.load %arg7[%c1_106, %c0_107, %c0_108, %c1_109] : memref<2x1x22x22xf32, #tpu.memory_space<vmem>>, vector<1x1x22x16xf32>
      %128 = vector.shape_cast %127 : vector<1x1x22x16xf32> to vector<1x22x16xf32>
      %c1_110 = arith.constant 1 : index
      %c0_111 = arith.constant 0 : index
      %c0_112 = arith.constant 0 : index
      %c0_113 = arith.constant 0 : index
      %129 = vector.load %arg8[%c1_110, %c0_111, %c0_112, %c0_113] : memref<2x1x22x16xf32, #tpu.memory_space<vmem>>, vector<1x1x22x16xf32>
      %130 = vector.shape_cast %129 : vector<1x1x22x16xf32> to vector<1x22x16xf32>
      %131 = vector.shape_cast %128 : vector<1x22x16xf32> to vector<1x1x22x16xf32>
      tpu.vector_store %arg8[%c1_110, %c0_111, %c0_112, %c0_113], %131 {strides = array<i32>} : memref<2x1x22x16xf32, #tpu.memory_space<vmem>>, vector<1x1x22x16xf32>,
      %c1_114 = arith.constant 1 : index
      %132 = memref.load %arg2[%c1_114] : memref<98xf32, #tpu.memory_space<smem>>
      %c0_115 = arith.constant 0 : index
      %c0_116 = arith.constant 0 : index
      %c0_117 = arith.constant 0 : index
      %c0_118 = arith.constant 0 : index
      %133 = vector.load %arg8[%c0_115, %c0_116, %c0_117, %c0_118] : memref<2x1x22x16xf32, #tpu.memory_space<vmem>>, vector<1x1x16x16xf32>
      %134 = vector.shape_cast %133 : vector<1x1x16x16xf32> to vector<1x16x16xf32>
      %135 = vector.broadcast %132 : f32 to vector<1x16x16xf32>
      %136 = arith.mulf %135, %134 : vector<1x16x16xf32>
      %137 = arith.addf %79, %136 : vector<1x16x16xf32>
      %c8 = arith.constant 8 : index
      %138 = memref.load %arg2[%c8] : memref<98xf32, #tpu.memory_space<smem>>
      %c0_119 = arith.constant 0 : index
      %c0_120 = arith.constant 0 : index
      %c1_121 = arith.constant 1 : index
      %c0_122 = arith.constant 0 : index
      %139 = vector.load %arg8[%c0_119, %c0_120, %c1_121, %c0_122] : memref<2x1x22x16xf32, #tpu.memory_space<vmem>>, vector<1x1x16x16xf32>
      %140 = vector.shape_cast %139 : vector<1x1x16x16xf32> to vector<1x16x16xf32>
      %141 = vector.broadcast %138 : f32 to vector<1x16x16xf32>
      %142 = arith.mulf %141, %140 : vector<1x16x16xf32>
      %143 = arith.addf %85, %142 : vector<1x16x16xf32>
      %c15 = arith.constant 15 : index
      %144 = memref.load %arg2[%c15] : memref<98xf32, #tpu.memory_space<smem>>
      %c0_123 = arith.constant 0 : index
      %c0_124 = arith.constant 0 : index
      %c2_125 = arith.constant 2 : index
      %c0_126 = arith.constant 0 : index
      %145 = vector.load %arg8[%c0_123, %c0_124, %c2_125, %c0_126] : memref<2x1x22x16xf32, #tpu.memory_space<vmem>>, vector<1x1x16x16xf32>
      %146 = vector.shape_cast %145 : vector<1x1x16x16xf32> to vector<1x16x16xf32>
      %147 = vector.broadcast %144 : f32 to vector<1x16x16xf32>
      %148 = arith.mulf %147, %146 : vector<1x16x16xf32>
      %149 = arith.addf %91, %148 : vector<1x16x16xf32>
      %c22 = arith.constant 22 : index
      %150 = memref.load %arg2[%c22] : memref<98xf32, #tpu.memory_space<smem>>
      %c0_127 = arith.constant 0 : index
      %c0_128 = arith.constant 0 : index
      %c3_129 = arith.constant 3 : index
      %c0_130 = arith.constant 0 : index
      %151 = vector.load %arg8[%c0_127, %c0_128, %c3_129, %c0_130] : memref<2x1x22x16xf32, #tpu.memory_space<vmem>>, vector<1x1x16x16xf32>
      %152 = vector.shape_cast %151 : vector<1x1x16x16xf32> to vector<1x16x16xf32>
      %153 = vector.broadcast %150 : f32 to vector<1x16x16xf32>
      %154 = arith.mulf %153, %152 : vector<1x16x16xf32>
      %155 = arith.addf %97, %154 : vector<1x16x16xf32>
      %c29 = arith.constant 29 : index
      %156 = memref.load %arg2[%c29] : memref<98xf32, #tpu.memory_space<smem>>
      %c0_131 = arith.constant 0 : index
      %c0_132 = arith.constant 0 : index
      %c4_133 = arith.constant 4 : index
      %c0_134 = arith.constant 0 : index
      %157 = vector.load %arg8[%c0_131, %c0_132, %c4_133, %c0_134] : memref<2x1x22x16xf32, #tpu.memory_space<vmem>>, vector<1x1x16x16xf32>
      %158 = vector.shape_cast %157 : vector<1x1x16x16xf32> to vector<1x16x16xf32>
      %159 = vector.broadcast %156 : f32 to vector<1x16x16xf32>
      %160 = arith.mulf %159, %158 : vector<1x16x16xf32>
      %161 = arith.addf %103, %160 : vector<1x16x16xf32>
      %c36 = arith.constant 36 : index
      %162 = memref.load %arg2[%c36] : memref<98xf32, #tpu.memory_space<smem>>
      %c0_135 = arith.constant 0 : index
      %c0_136 = arith.constant 0 : index
      %c5_137 = arith.constant 5 : index
      %c0_138 = arith.constant 0 : index
      %163 = vector.load %arg8[%c0_135, %c0_136, %c5_137, %c0_138] : memref<2x1x22x16xf32, #tpu.memory_space<vmem>>, vector<1x1x16x16xf32>
      %164 = vector.shape_cast %163 : vector<1x1x16x16xf32> to vector<1x16x16xf32>
      %165 = vector.broadcast %162 : f32 to vector<1x16x16xf32>
      %166 = arith.mulf %165, %164 : vector<1x16x16xf32>
      %167 = arith.addf %109, %166 : vector<1x16x16xf32>
      %c43 = arith.constant 43 : index
      %168 = memref.load %arg2[%c43] : memref<98xf32, #tpu.memory_space<smem>>
      %c0_139 = arith.constant 0 : index
      %c0_140 = arith.constant 0 : index
      %c6_141 = arith.constant 6 : index
      %c0_142 = arith.constant 0 : index
      %169 = vector.load %arg8[%c0_139, %c0_140, %c6_141, %c0_142] : memref<2x1x22x16xf32, #tpu.memory_space<vmem>>, vector<1x1x16x16xf32>
      %170 = vector.shape_cast %169 : vector<1x1x16x16xf32> to vector<1x16x16xf32>
      %171 = vector.broadcast %168 : f32 to vector<1x16x16xf32>
      %172 = arith.mulf %171, %170 : vector<1x16x16xf32>
      %173 = arith.addf %115, %172 : vector<1x16x16xf32>
      %c50 = arith.constant 50 : index
      %174 = memref.load %arg2[%c50] : memref<98xf32, #tpu.memory_space<smem>>
      %c1_143 = arith.constant 1 : index
      %c0_144 = arith.constant 0 : index
      %c0_145 = arith.constant 0 : index
      %c0_146 = arith.constant 0 : index
      %175 = vector.load %arg8[%c1_143, %c0_144, %c0_145, %c0_146] : memref<2x1x22x16xf32, #tpu.memory_space<vmem>>, vector<1x1x16x16xf32>
      %176 = vector.shape_cast %175 : vector<1x1x16x16xf32> to vector<1x16x16xf32>
      %177 = vector.broadcast %174 : f32 to vector<1x16x16xf32>
      %178 = arith.mulf %177, %176 : vector<1x16x16xf32>
      %179 = arith.addf %121, %178 : vector<1x16x16xf32>
      %c57 = arith.constant 57 : index
      %180 = memref.load %arg2[%c57] : memref<98xf32, #tpu.memory_space<smem>>
      %c1_147 = arith.constant 1 : index
      %c0_148 = arith.constant 0 : index
      %c1_149 = arith.constant 1 : index
      %c0_150 = arith.constant 0 : index
      %181 = vector.load %arg8[%c1_147, %c0_148, %c1_149, %c0_150] : memref<2x1x22x16xf32, #tpu.memory_space<vmem>>, vector<1x1x16x16xf32>
      %182 = vector.shape_cast %181 : vector<1x1x16x16xf32> to vector<1x16x16xf32>
      %183 = vector.broadcast %180 : f32 to vector<1x16x16xf32>
      %184 = arith.mulf %183, %182 : vector<1x16x16xf32>
      %185 = arith.addf %137, %184 : vector<1x16x16xf32>
      %c64 = arith.constant 64 : index
      %186 = memref.load %arg2[%c64] : memref<98xf32, #tpu.memory_space<smem>>
      %c1_151 = arith.constant 1 : index
      %c0_152 = arith.constant 0 : index
      %c2_153 = arith.constant 2 : index
      %c0_154 = arith.constant 0 : index
      %187 = vector.load %arg8[%c1_151, %c0_152, %c2_153, %c0_154] : memref<2x1x22x16xf32, #tpu.memory_space<vmem>>, vector<1x1x16x16xf32>
      %188 = vector.shape_cast %187 : vector<1x1x16x16xf32> to vector<1x16x16xf32>
      %189 = vector.broadcast %186 : f32 to vector<1x16x16xf32>
      %190 = arith.mulf %189, %188 : vector<1x16x16xf32>
      %191 = arith.addf %143, %190 : vector<1x16x16xf32>
      %c71 = arith.constant 71 : index
      %192 = memref.load %arg2[%c71] : memref<98xf32, #tpu.memory_space<smem>>
      %c1_155 = arith.constant 1 : index
      %c0_156 = arith.constant 0 : index
      %c3_157 = arith.constant 3 : index
      %c0_158 = arith.constant 0 : index
      %193 = vector.load %arg8[%c1_155, %c0_156, %c3_157, %c0_158] : memref<2x1x22x16xf32, #tpu.memory_space<vmem>>, vector<1x1x16x16xf32>
      %194 = vector.shape_cast %193 : vector<1x1x16x16xf32> to vector<1x16x16xf32>
      %195 = vector.broadcast %192 : f32 to vector<1x16x16xf32>
      %196 = arith.mulf %195, %194 : vector<1x16x16xf32>
      %197 = arith.addf %149, %196 : vector<1x16x16xf32>
      %c78 = arith.constant 78 : index
      %198 = memref.load %arg2[%c78] : memref<98xf32, #tpu.memory_space<smem>>
      %c1_159 = arith.constant 1 : index
      %c0_160 = arith.constant 0 : index
      %c4_161 = arith.constant 4 : index
      %c0_162 = arith.constant 0 : index
      %199 = vector.load %arg8[%c1_159, %c0_160, %c4_161, %c0_162] : memref<2x1x22x16xf32, #tpu.memory_space<vmem>>, vector<1x1x16x16xf32>
      %200 = vector.shape_cast %199 : vector<1x1x16x16xf32> to vector<1x16x16xf32>
      %201 = vector.broadcast %198 : f32 to vector<1x16x16xf32>
      %202 = arith.mulf %201, %200 : vector<1x16x16xf32>
      %203 = arith.addf %155, %202 : vector<1x16x16xf32>
      %c85 = arith.constant 85 : index
      %204 = memref.load %arg2[%c85] : memref<98xf32, #tpu.memory_space<smem>>
      %c1_163 = arith.constant 1 : index
      %c0_164 = arith.constant 0 : index
      %c5_165 = arith.constant 5 : index
      %c0_166 = arith.constant 0 : index
      %205 = vector.load %arg8[%c1_163, %c0_164, %c5_165, %c0_166] : memref<2x1x22x16xf32, #tpu.memory_space<vmem>>, vector<1x1x16x16xf32>
      %206 = vector.shape_cast %205 : vector<1x1x16x16xf32> to vector<1x16x16xf32>
      %207 = vector.broadcast %204 : f32 to vector<1x16x16xf32>
      %208 = arith.mulf %207, %206 : vector<1x16x16xf32>
      %209 = arith.addf %161, %208 : vector<1x16x16xf32>
      %c92 = arith.constant 92 : index
      %210 = memref.load %arg2[%c92] : memref<98xf32, #tpu.memory_space<smem>>
      %c1_167 = arith.constant 1 : index
      %c0_168 = arith.constant 0 : index
      %c6_169 = arith.constant 6 : index
      %c0_170 = arith.constant 0 : index
      %211 = vector.load %arg8[%c1_167, %c0_168, %c6_169, %c0_170] : memref<2x1x22x16xf32, #tpu.memory_space<vmem>>, vector<1x1x16x16xf32>
      %212 = vector.shape_cast %211 : vector<1x1x16x16xf32> to vector<1x16x16xf32>
      %213 = vector.broadcast %210 : f32 to vector<1x16x16xf32>
      %214 = arith.mulf %213, %212 : vector<1x16x16xf32>
      %215 = arith.addf %167, %214 : vector<1x16x16xf32>
      %c0_171 = arith.constant 0 : index
      %c0_172 = arith.constant 0 : index
      %c0_173 = arith.constant 0 : index
      %c2_174 = arith.constant 2 : index
      %216 = vector.load %arg7[%c0_171, %c0_172, %c0_173, %c2_174] : memref<2x1x22x22xf32, #tpu.memory_space<vmem>>, vector<1x1x22x16xf32>
      %217 = vector.shape_cast %216 : vector<1x1x22x16xf32> to vector<1x22x16xf32>
      %c0_175 = arith.constant 0 : index
      %c0_176 = arith.constant 0 : index
      %c0_177 = arith.constant 0 : index
      %c0_178 = arith.constant 0 : index
      %218 = vector.load %arg8[%c0_175, %c0_176, %c0_177, %c0_178] : memref<2x1x22x16xf32, #tpu.memory_space<vmem>>, vector<1x1x22x16xf32>
      %219 = vector.shape_cast %218 : vector<1x1x22x16xf32> to vector<1x22x16xf32>
      %220 = vector.shape_cast %217 : vector<1x22x16xf32> to vector<1x1x22x16xf32>
      tpu.vector_store %arg8[%c0_175, %c0_176, %c0_177, %c0_178], %220 {strides = array<i32>} : memref<2x1x22x16xf32, #tpu.memory_space<vmem>>, vector<1x1x22x16xf32>,
      %c1_179 = arith.constant 1 : index
      %c0_180 = arith.constant 0 : index
      %c0_181 = arith.constant 0 : index
      %c2_182 = arith.constant 2 : index
      %221 = vector.load %arg7[%c1_179, %c0_180, %c0_181, %c2_182] : memref<2x1x22x22xf32, #tpu.memory_space<vmem>>, vector<1x1x22x16xf32>
      %222 = vector.shape_cast %221 : vector<1x1x22x16xf32> to vector<1x22x16xf32>
      %c1_183 = arith.constant 1 : index
      %c0_184 = arith.constant 0 : index
      %c0_185 = arith.constant 0 : index
      %c0_186 = arith.constant 0 : index
      %223 = vector.load %arg8[%c1_183, %c0_184, %c0_185, %c0_186] : memref<2x1x22x16xf32, #tpu.memory_space<vmem>>, vector<1x1x22x16xf32>
      %224 = vector.shape_cast %223 : vector<1x1x22x16xf32> to vector<1x22x16xf32>
      %225 = vector.shape_cast %222 : vector<1x22x16xf32> to vector<1x1x22x16xf32>
      tpu.vector_store %arg8[%c1_183, %c0_184, %c0_185, %c0_186], %225 {strides = array<i32>} : memref<2x1x22x16xf32, #tpu.memory_space<vmem>>, vector<1x1x22x16xf32>,
      %c2_187 = arith.constant 2 : index
      %226 = memref.load %arg2[%c2_187] : memref<98xf32, #tpu.memory_space<smem>>
      %c0_188 = arith.constant 0 : index
      %c0_189 = arith.constant 0 : index
      %c0_190 = arith.constant 0 : index
      %c0_191 = arith.constant 0 : index
      %227 = vector.load %arg8[%c0_188, %c0_189, %c0_190, %c0_191] : memref<2x1x22x16xf32, #tpu.memory_space<vmem>>, vector<1x1x16x16xf32>
      %228 = vector.shape_cast %227 : vector<1x1x16x16xf32> to vector<1x16x16xf32>
      %229 = vector.broadcast %226 : f32 to vector<1x16x16xf32>
      %230 = arith.mulf %229, %228 : vector<1x16x16xf32>
      %231 = arith.addf %173, %230 : vector<1x16x16xf32>
      %c9 = arith.constant 9 : index
      %232 = memref.load %arg2[%c9] : memref<98xf32, #tpu.memory_space<smem>>
      %c0_192 = arith.constant 0 : index
      %c0_193 = arith.constant 0 : index
      %c1_194 = arith.constant 1 : index
      %c0_195 = arith.constant 0 : index
      %233 = vector.load %arg8[%c0_192, %c0_193, %c1_194, %c0_195] : memref<2x1x22x16xf32, #tpu.memory_space<vmem>>, vector<1x1x16x16xf32>
      %234 = vector.shape_cast %233 : vector<1x1x16x16xf32> to vector<1x16x16xf32>
      %235 = vector.broadcast %232 : f32 to vector<1x16x16xf32>
      %236 = arith.mulf %235, %234 : vector<1x16x16xf32>
      %237 = arith.addf %179, %236 : vector<1x16x16xf32>
      %c16 = arith.constant 16 : index
      %238 = memref.load %arg2[%c16] : memref<98xf32, #tpu.memory_space<smem>>
      %c0_196 = arith.constant 0 : index
      %c0_197 = arith.constant 0 : index
      %c2_198 = arith.constant 2 : index
      %c0_199 = arith.constant 0 : index
      %239 = vector.load %arg8[%c0_196, %c0_197, %c2_198, %c0_199] : memref<2x1x22x16xf32, #tpu.memory_space<vmem>>, vector<1x1x16x16xf32>
      %240 = vector.shape_cast %239 : vector<1x1x16x16xf32> to vector<1x16x16xf32>
      %241 = vector.broadcast %238 : f32 to vector<1x16x16xf32>
      %242 = arith.mulf %241, %240 : vector<1x16x16xf32>
      %243 = arith.addf %185, %242 : vector<1x16x16xf32>
      %c23 = arith.constant 23 : index
      %244 = memref.load %arg2[%c23] : memref<98xf32, #tpu.memory_space<smem>>
      %c0_200 = arith.constant 0 : index
      %c0_201 = arith.constant 0 : index
      %c3_202 = arith.constant 3 : index
      %c0_203 = arith.constant 0 : index
      %245 = vector.load %arg8[%c0_200, %c0_201, %c3_202, %c0_203] : memref<2x1x22x16xf32, #tpu.memory_space<vmem>>, vector<1x1x16x16xf32>
      %246 = vector.shape_cast %245 : vector<1x1x16x16xf32> to vector<1x16x16xf32>
      %247 = vector.broadcast %244 : f32 to vector<1x16x16xf32>
      %248 = arith.mulf %247, %246 : vector<1x16x16xf32>
      %249 = arith.addf %191, %248 : vector<1x16x16xf32>
      %c30 = arith.constant 30 : index
      %250 = memref.load %arg2[%c30] : memref<98xf32, #tpu.memory_space<smem>>
      %c0_204 = arith.constant 0 : index
      %c0_205 = arith.constant 0 : index
      %c4_206 = arith.constant 4 : index
      %c0_207 = arith.constant 0 : index
      %251 = vector.load %arg8[%c0_204, %c0_205, %c4_206, %c0_207] : memref<2x1x22x16xf32, #tpu.memory_space<vmem>>, vector<1x1x16x16xf32>
      %252 = vector.shape_cast %251 : vector<1x1x16x16xf32> to vector<1x16x16xf32>
      %253 = vector.broadcast %250 : f32 to vector<1x16x16xf32>
      %254 = arith.mulf %253, %252 : vector<1x16x16xf32>
      %255 = arith.addf %197, %254 : vector<1x16x16xf32>
      %c37 = arith.constant 37 : index
      %256 = memref.load %arg2[%c37] : memref<98xf32, #tpu.memory_space<smem>>
      %c0_208 = arith.constant 0 : index
      %c0_209 = arith.constant 0 : index
      %c5_210 = arith.constant 5 : index
      %c0_211 = arith.constant 0 : index
      %257 = vector.load %arg8[%c0_208, %c0_209, %c5_210, %c0_211] : memref<2x1x22x16xf32, #tpu.memory_space<vmem>>, vector<1x1x16x16xf32>
      %258 = vector.shape_cast %257 : vector<1x1x16x16xf32> to vector<1x16x16xf32>
      %259 = vector.broadcast %256 : f32 to vector<1x16x16xf32>
      %260 = arith.mulf %259, %258 : vector<1x16x16xf32>
      %261 = arith.addf %203, %260 : vector<1x16x16xf32>
      %c44 = arith.constant 44 : index
      %262 = memref.load %arg2[%c44] : memref<98xf32, #tpu.memory_space<smem>>
      %c0_212 = arith.constant 0 : index
      %c0_213 = arith.constant 0 : index
      %c6_214 = arith.constant 6 : index
      %c0_215 = arith.constant 0 : index
      %263 = vector.load %arg8[%c0_212, %c0_213, %c6_214, %c0_215] : memref<2x1x22x16xf32, #tpu.memory_space<vmem>>, vector<1x1x16x16xf32>
      %264 = vector.shape_cast %263 : vector<1x1x16x16xf32> to vector<1x16x16xf32>
      %265 = vector.broadcast %262 : f32 to vector<1x16x16xf32>
      %266 = arith.mulf %265, %264 : vector<1x16x16xf32>
      %267 = arith.addf %209, %266 : vector<1x16x16xf32>
      %c51 = arith.constant 51 : index
      %268 = memref.load %arg2[%c51] : memref<98xf32, #tpu.memory_space<smem>>
      %c1_216 = arith.constant 1 : index
      %c0_217 = arith.constant 0 : index
      %c0_218 = arith.constant 0 : index
      %c0_219 = arith.constant 0 : index
      %269 = vector.load %arg8[%c1_216, %c0_217, %c0_218, %c0_219] : memref<2x1x22x16xf32, #tpu.memory_space<vmem>>, vector<1x1x16x16xf32>
      %270 = vector.shape_cast %269 : vector<1x1x16x16xf32> to vector<1x16x16xf32>
      %271 = vector.broadcast %268 : f32 to vector<1x16x16xf32>
      %272 = arith.mulf %271, %270 : vector<1x16x16xf32>
      %273 = arith.addf %215, %272 : vector<1x16x16xf32>
      %c58 = arith.constant 58 : index
      %274 = memref.load %arg2[%c58] : memref<98xf32, #tpu.memory_space<smem>>
      %c1_220 = arith.constant 1 : index
      %c0_221 = arith.constant 0 : index
      %c1_222 = arith.constant 1 : index
      %c0_223 = arith.constant 0 : index
      %275 = vector.load %arg8[%c1_220, %c0_221, %c1_222, %c0_223] : memref<2x1x22x16xf32, #tpu.memory_space<vmem>>, vector<1x1x16x16xf32>
      %276 = vector.shape_cast %275 : vector<1x1x16x16xf32> to vector<1x16x16xf32>
      %277 = vector.broadcast %274 : f32 to vector<1x16x16xf32>
      %278 = arith.mulf %277, %276 : vector<1x16x16xf32>
      %279 = arith.addf %231, %278 : vector<1x16x16xf32>
      %c65 = arith.constant 65 : index
      %280 = memref.load %arg2[%c65] : memref<98xf32, #tpu.memory_space<smem>>
      %c1_224 = arith.constant 1 : index
      %c0_225 = arith.constant 0 : index
      %c2_226 = arith.constant 2 : index
      %c0_227 = arith.constant 0 : index
      %281 = vector.load %arg8[%c1_224, %c0_225, %c2_226, %c0_227] : memref<2x1x22x16xf32, #tpu.memory_space<vmem>>, vector<1x1x16x16xf32>
      %282 = vector.shape_cast %281 : vector<1x1x16x16xf32> to vector<1x16x16xf32>
      %283 = vector.broadcast %280 : f32 to vector<1x16x16xf32>
      %284 = arith.mulf %283, %282 : vector<1x16x16xf32>
      %285 = arith.addf %237, %284 : vector<1x16x16xf32>
      %c72 = arith.constant 72 : index
      %286 = memref.load %arg2[%c72] : memref<98xf32, #tpu.memory_space<smem>>
      %c1_228 = arith.constant 1 : index
      %c0_229 = arith.constant 0 : index
      %c3_230 = arith.constant 3 : index
      %c0_231 = arith.constant 0 : index
      %287 = vector.load %arg8[%c1_228, %c0_229, %c3_230, %c0_231] : memref<2x1x22x16xf32, #tpu.memory_space<vmem>>, vector<1x1x16x16xf32>
      %288 = vector.shape_cast %287 : vector<1x1x16x16xf32> to vector<1x16x16xf32>
      %289 = vector.broadcast %286 : f32 to vector<1x16x16xf32>
      %290 = arith.mulf %289, %288 : vector<1x16x16xf32>
      %291 = arith.addf %243, %290 : vector<1x16x16xf32>
      %c79 = arith.constant 79 : index
      %292 = memref.load %arg2[%c79] : memref<98xf32, #tpu.memory_space<smem>>
      %c1_232 = arith.constant 1 : index
      %c0_233 = arith.constant 0 : index
      %c4_234 = arith.constant 4 : index
      %c0_235 = arith.constant 0 : index
      %293 = vector.load %arg8[%c1_232, %c0_233, %c4_234, %c0_235] : memref<2x1x22x16xf32, #tpu.memory_space<vmem>>, vector<1x1x16x16xf32>
      %294 = vector.shape_cast %293 : vector<1x1x16x16xf32> to vector<1x16x16xf32>
      %295 = vector.broadcast %292 : f32 to vector<1x16x16xf32>
      %296 = arith.mulf %295, %294 : vector<1x16x16xf32>
      %297 = arith.addf %249, %296 : vector<1x16x16xf32>
      %c86 = arith.constant 86 : index
      %298 = memref.load %arg2[%c86] : memref<98xf32, #tpu.memory_space<smem>>
      %c1_236 = arith.constant 1 : index
      %c0_237 = arith.constant 0 : index
      %c5_238 = arith.constant 5 : index
      %c0_239 = arith.constant 0 : index
      %299 = vector.load %arg8[%c1_236, %c0_237, %c5_238, %c0_239] : memref<2x1x22x16xf32, #tpu.memory_space<vmem>>, vector<1x1x16x16xf32>
      %300 = vector.shape_cast %299 : vector<1x1x16x16xf32> to vector<1x16x16xf32>
      %301 = vector.broadcast %298 : f32 to vector<1x16x16xf32>
      %302 = arith.mulf %301, %300 : vector<1x16x16xf32>
      %303 = arith.addf %255, %302 : vector<1x16x16xf32>
      %c93 = arith.constant 93 : index
      %304 = memref.load %arg2[%c93] : memref<98xf32, #tpu.memory_space<smem>>
      %c1_240 = arith.constant 1 : index
      %c0_241 = arith.constant 0 : index
      %c6_242 = arith.constant 6 : index
      %c0_243 = arith.constant 0 : index
      %305 = vector.load %arg8[%c1_240, %c0_241, %c6_242, %c0_243] : memref<2x1x22x16xf32, #tpu.memory_space<vmem>>, vector<1x1x16x16xf32>
      %306 = vector.shape_cast %305 : vector<1x1x16x16xf32> to vector<1x16x16xf32>
      %307 = vector.broadcast %304 : f32 to vector<1x16x16xf32>
      %308 = arith.mulf %307, %306 : vector<1x16x16xf32>
      %309 = arith.addf %261, %308 : vector<1x16x16xf32>
      %c0_244 = arith.constant 0 : index
      %c0_245 = arith.constant 0 : index
      %c0_246 = arith.constant 0 : index
      %c3_247 = arith.constant 3 : index
      %310 = vector.load %arg7[%c0_244, %c0_245, %c0_246, %c3_247] : memref<2x1x22x22xf32, #tpu.memory_space<vmem>>, vector<1x1x22x16xf32>
      %311 = vector.shape_cast %310 : vector<1x1x22x16xf32> to vector<1x22x16xf32>
      %c0_248 = arith.constant 0 : index
      %c0_249 = arith.constant 0 : index
      %c0_250 = arith.constant 0 : index
      %c0_251 = arith.constant 0 : index
      %312 = vector.load %arg8[%c0_248, %c0_249, %c0_250, %c0_251] : memref<2x1x22x16xf32, #tpu.memory_space<vmem>>, vector<1x1x22x16xf32>
      %313 = vector.shape_cast %312 : vector<1x1x22x16xf32> to vector<1x22x16xf32>
      %314 = vector.shape_cast %311 : vector<1x22x16xf32> to vector<1x1x22x16xf32>
      tpu.vector_store %arg8[%c0_248, %c0_249, %c0_250, %c0_251], %314 {strides = array<i32>} : memref<2x1x22x16xf32, #tpu.memory_space<vmem>>, vector<1x1x22x16xf32>,
      %c1_252 = arith.constant 1 : index
      %c0_253 = arith.constant 0 : index
      %c0_254 = arith.constant 0 : index
      %c3_255 = arith.constant 3 : index
      %315 = vector.load %arg7[%c1_252, %c0_253, %c0_254, %c3_255] : memref<2x1x22x22xf32, #tpu.memory_space<vmem>>, vector<1x1x22x16xf32>
      %316 = vector.shape_cast %315 : vector<1x1x22x16xf32> to vector<1x22x16xf32>
      %c1_256 = arith.constant 1 : index
      %c0_257 = arith.constant 0 : index
      %c0_258 = arith.constant 0 : index
      %c0_259 = arith.constant 0 : index
      %317 = vector.load %arg8[%c1_256, %c0_257, %c0_258, %c0_259] : memref<2x1x22x16xf32, #tpu.memory_space<vmem>>, vector<1x1x22x16xf32>
      %318 = vector.shape_cast %317 : vector<1x1x22x16xf32> to vector<1x22x16xf32>
      %319 = vector.shape_cast %316 : vector<1x22x16xf32> to vector<1x1x22x16xf32>
      tpu.vector_store %arg8[%c1_256, %c0_257, %c0_258, %c0_259], %319 {strides = array<i32>} : memref<2x1x22x16xf32, #tpu.memory_space<vmem>>, vector<1x1x22x16xf32>,
      %c3_260 = arith.constant 3 : index
      %320 = memref.load %arg2[%c3_260] : memref<98xf32, #tpu.memory_space<smem>>
      %c0_261 = arith.constant 0 : index
      %c0_262 = arith.constant 0 : index
      %c0_263 = arith.constant 0 : index
      %c0_264 = arith.constant 0 : index
      %321 = vector.load %arg8[%c0_261, %c0_262, %c0_263, %c0_264] : memref<2x1x22x16xf32, #tpu.memory_space<vmem>>, vector<1x1x16x16xf32>
      %322 = vector.shape_cast %321 : vector<1x1x16x16xf32> to vector<1x16x16xf32>
      %323 = vector.broadcast %320 : f32 to vector<1x16x16xf32>
      %324 = arith.mulf %323, %322 : vector<1x16x16xf32>
      %325 = arith.addf %267, %324 : vector<1x16x16xf32>
      %c10 = arith.constant 10 : index
      %326 = memref.load %arg2[%c10] : memref<98xf32, #tpu.memory_space<smem>>
      %c0_265 = arith.constant 0 : index
      %c0_266 = arith.constant 0 : index
      %c1_267 = arith.constant 1 : index
      %c0_268 = arith.constant 0 : index
      %327 = vector.load %arg8[%c0_265, %c0_266, %c1_267, %c0_268] : memref<2x1x22x16xf32, #tpu.memory_space<vmem>>, vector<1x1x16x16xf32>
      %328 = vector.shape_cast %327 : vector<1x1x16x16xf32> to vector<1x16x16xf32>
      %329 = vector.broadcast %326 : f32 to vector<1x16x16xf32>
      %330 = arith.mulf %329, %328 : vector<1x16x16xf32>
      %331 = arith.addf %273, %330 : vector<1x16x16xf32>
      %c17 = arith.constant 17 : index
      %332 = memref.load %arg2[%c17] : memref<98xf32, #tpu.memory_space<smem>>
      %c0_269 = arith.constant 0 : index
      %c0_270 = arith.constant 0 : index
      %c2_271 = arith.constant 2 : index
      %c0_272 = arith.constant 0 : index
      %333 = vector.load %arg8[%c0_269, %c0_270, %c2_271, %c0_272] : memref<2x1x22x16xf32, #tpu.memory_space<vmem>>, vector<1x1x16x16xf32>
      %334 = vector.shape_cast %333 : vector<1x1x16x16xf32> to vector<1x16x16xf32>
      %335 = vector.broadcast %332 : f32 to vector<1x16x16xf32>
      %336 = arith.mulf %335, %334 : vector<1x16x16xf32>
      %337 = arith.addf %279, %336 : vector<1x16x16xf32>
      %c24 = arith.constant 24 : index
      %338 = memref.load %arg2[%c24] : memref<98xf32, #tpu.memory_space<smem>>
      %c0_273 = arith.constant 0 : index
      %c0_274 = arith.constant 0 : index
      %c3_275 = arith.constant 3 : index
      %c0_276 = arith.constant 0 : index
      %339 = vector.load %arg8[%c0_273, %c0_274, %c3_275, %c0_276] : memref<2x1x22x16xf32, #tpu.memory_space<vmem>>, vector<1x1x16x16xf32>
      %340 = vector.shape_cast %339 : vector<1x1x16x16xf32> to vector<1x16x16xf32>
      %341 = vector.broadcast %338 : f32 to vector<1x16x16xf32>
      %342 = arith.mulf %341, %340 : vector<1x16x16xf32>
      %343 = arith.addf %285, %342 : vector<1x16x16xf32>
      %c31 = arith.constant 31 : index
      %344 = memref.load %arg2[%c31] : memref<98xf32, #tpu.memory_space<smem>>
      %c0_277 = arith.constant 0 : index
      %c0_278 = arith.constant 0 : index
      %c4_279 = arith.constant 4 : index
      %c0_280 = arith.constant 0 : index
      %345 = vector.load %arg8[%c0_277, %c0_278, %c4_279, %c0_280] : memref<2x1x22x16xf32, #tpu.memory_space<vmem>>, vector<1x1x16x16xf32>
      %346 = vector.shape_cast %345 : vector<1x1x16x16xf32> to vector<1x16x16xf32>
      %347 = vector.broadcast %344 : f32 to vector<1x16x16xf32>
      %348 = arith.mulf %347, %346 : vector<1x16x16xf32>
      %349 = arith.addf %291, %348 : vector<1x16x16xf32>
      %c38 = arith.constant 38 : index
      %350 = memref.load %arg2[%c38] : memref<98xf32, #tpu.memory_space<smem>>
      %c0_281 = arith.constant 0 : index
      %c0_282 = arith.constant 0 : index
      %c5_283 = arith.constant 5 : index
      %c0_284 = arith.constant 0 : index
      %351 = vector.load %arg8[%c0_281, %c0_282, %c5_283, %c0_284] : memref<2x1x22x16xf32, #tpu.memory_space<vmem>>, vector<1x1x16x16xf32>
      %352 = vector.shape_cast %351 : vector<1x1x16x16xf32> to vector<1x16x16xf32>
      %353 = vector.broadcast %350 : f32 to vector<1x16x16xf32>
      %354 = arith.mulf %353, %352 : vector<1x16x16xf32>
      %355 = arith.addf %297, %354 : vector<1x16x16xf32>
      %c45 = arith.constant 45 : index
      %356 = memref.load %arg2[%c45] : memref<98xf32, #tpu.memory_space<smem>>
      %c0_285 = arith.constant 0 : index
      %c0_286 = arith.constant 0 : index
      %c6_287 = arith.constant 6 : index
      %c0_288 = arith.constant 0 : index
      %357 = vector.load %arg8[%c0_285, %c0_286, %c6_287, %c0_288] : memref<2x1x22x16xf32, #tpu.memory_space<vmem>>, vector<1x1x16x16xf32>
      %358 = vector.shape_cast %357 : vector<1x1x16x16xf32> to vector<1x16x16xf32>
      %359 = vector.broadcast %356 : f32 to vector<1x16x16xf32>
      %360 = arith.mulf %359, %358 : vector<1x16x16xf32>
      %361 = arith.addf %303, %360 : vector<1x16x16xf32>
      %c52 = arith.constant 52 : index
      %362 = memref.load %arg2[%c52] : memref<98xf32, #tpu.memory_space<smem>>
      %c1_289 = arith.constant 1 : index
      %c0_290 = arith.constant 0 : index
      %c0_291 = arith.constant 0 : index
      %c0_292 = arith.constant 0 : index
      %363 = vector.load %arg8[%c1_289, %c0_290, %c0_291, %c0_292] : memref<2x1x22x16xf32, #tpu.memory_space<vmem>>, vector<1x1x16x16xf32>
      %364 = vector.shape_cast %363 : vector<1x1x16x16xf32> to vector<1x16x16xf32>
      %365 = vector.broadcast %362 : f32 to vector<1x16x16xf32>
      %366 = arith.mulf %365, %364 : vector<1x16x16xf32>
      %367 = arith.addf %309, %366 : vector<1x16x16xf32>
      %c59 = arith.constant 59 : index
      %368 = memref.load %arg2[%c59] : memref<98xf32, #tpu.memory_space<smem>>
      %c1_293 = arith.constant 1 : index
      %c0_294 = arith.constant 0 : index
      %c1_295 = arith.constant 1 : index
      %c0_296 = arith.constant 0 : index
      %369 = vector.load %arg8[%c1_293, %c0_294, %c1_295, %c0_296] : memref<2x1x22x16xf32, #tpu.memory_space<vmem>>, vector<1x1x16x16xf32>
      %370 = vector.shape_cast %369 : vector<1x1x16x16xf32> to vector<1x16x16xf32>
      %371 = vector.broadcast %368 : f32 to vector<1x16x16xf32>
      %372 = arith.mulf %371, %370 : vector<1x16x16xf32>
      %373 = arith.addf %325, %372 : vector<1x16x16xf32>
      %c66 = arith.constant 66 : index
      %374 = memref.load %arg2[%c66] : memref<98xf32, #tpu.memory_space<smem>>
      %c1_297 = arith.constant 1 : index
      %c0_298 = arith.constant 0 : index
      %c2_299 = arith.constant 2 : index
      %c0_300 = arith.constant 0 : index
      %375 = vector.load %arg8[%c1_297, %c0_298, %c2_299, %c0_300] : memref<2x1x22x16xf32, #tpu.memory_space<vmem>>, vector<1x1x16x16xf32>
      %376 = vector.shape_cast %375 : vector<1x1x16x16xf32> to vector<1x16x16xf32>
      %377 = vector.broadcast %374 : f32 to vector<1x16x16xf32>
      %378 = arith.mulf %377, %376 : vector<1x16x16xf32>
      %379 = arith.addf %331, %378 : vector<1x16x16xf32>
      %c73 = arith.constant 73 : index
      %380 = memref.load %arg2[%c73] : memref<98xf32, #tpu.memory_space<smem>>
      %c1_301 = arith.constant 1 : index
      %c0_302 = arith.constant 0 : index
      %c3_303 = arith.constant 3 : index
      %c0_304 = arith.constant 0 : index
      %381 = vector.load %arg8[%c1_301, %c0_302, %c3_303, %c0_304] : memref<2x1x22x16xf32, #tpu.memory_space<vmem>>, vector<1x1x16x16xf32>
      %382 = vector.shape_cast %381 : vector<1x1x16x16xf32> to vector<1x16x16xf32>
      %383 = vector.broadcast %380 : f32 to vector<1x16x16xf32>
      %384 = arith.mulf %383, %382 : vector<1x16x16xf32>
      %385 = arith.addf %337, %384 : vector<1x16x16xf32>
      %c80 = arith.constant 80 : index
      %386 = memref.load %arg2[%c80] : memref<98xf32, #tpu.memory_space<smem>>
      %c1_305 = arith.constant 1 : index
      %c0_306 = arith.constant 0 : index
      %c4_307 = arith.constant 4 : index
      %c0_308 = arith.constant 0 : index
      %387 = vector.load %arg8[%c1_305, %c0_306, %c4_307, %c0_308] : memref<2x1x22x16xf32, #tpu.memory_space<vmem>>, vector<1x1x16x16xf32>
      %388 = vector.shape_cast %387 : vector<1x1x16x16xf32> to vector<1x16x16xf32>
      %389 = vector.broadcast %386 : f32 to vector<1x16x16xf32>
      %390 = arith.mulf %389, %388 : vector<1x16x16xf32>
      %391 = arith.addf %343, %390 : vector<1x16x16xf32>
      %c87 = arith.constant 87 : index
      %392 = memref.load %arg2[%c87] : memref<98xf32, #tpu.memory_space<smem>>
      %c1_309 = arith.constant 1 : index
      %c0_310 = arith.constant 0 : index
      %c5_311 = arith.constant 5 : index
      %c0_312 = arith.constant 0 : index
      %393 = vector.load %arg8[%c1_309, %c0_310, %c5_311, %c0_312] : memref<2x1x22x16xf32, #tpu.memory_space<vmem>>, vector<1x1x16x16xf32>
      %394 = vector.shape_cast %393 : vector<1x1x16x16xf32> to vector<1x16x16xf32>
      %395 = vector.broadcast %392 : f32 to vector<1x16x16xf32>
      %396 = arith.mulf %395, %394 : vector<1x16x16xf32>
      %397 = arith.addf %349, %396 : vector<1x16x16xf32>
      %c94 = arith.constant 94 : index
      %398 = memref.load %arg2[%c94] : memref<98xf32, #tpu.memory_space<smem>>
      %c1_313 = arith.constant 1 : index
      %c0_314 = arith.constant 0 : index
      %c6_315 = arith.constant 6 : index
      %c0_316 = arith.constant 0 : index
      %399 = vector.load %arg8[%c1_313, %c0_314, %c6_315, %c0_316] : memref<2x1x22x16xf32, #tpu.memory_space<vmem>>, vector<1x1x16x16xf32>
      %400 = vector.shape_cast %399 : vector<1x1x16x16xf32> to vector<1x16x16xf32>
      %401 = vector.broadcast %398 : f32 to vector<1x16x16xf32>
      %402 = arith.mulf %401, %400 : vector<1x16x16xf32>
      %403 = arith.addf %355, %402 : vector<1x16x16xf32>
      %c0_317 = arith.constant 0 : index
      %c0_318 = arith.constant 0 : index
      %c0_319 = arith.constant 0 : index
      %c4_320 = arith.constant 4 : index
      %404 = vector.load %arg7[%c0_317, %c0_318, %c0_319, %c4_320] : memref<2x1x22x22xf32, #tpu.memory_space<vmem>>, vector<1x1x22x16xf32>
      %405 = vector.shape_cast %404 : vector<1x1x22x16xf32> to vector<1x22x16xf32>
      %c0_321 = arith.constant 0 : index
      %c0_322 = arith.constant 0 : index
      %c0_323 = arith.constant 0 : index
      %c0_324 = arith.constant 0 : index
      %406 = vector.load %arg8[%c0_321, %c0_322, %c0_323, %c0_324] : memref<2x1x22x16xf32, #tpu.memory_space<vmem>>, vector<1x1x22x16xf32>
      %407 = vector.shape_cast %406 : vector<1x1x22x16xf32> to vector<1x22x16xf32>
      %408 = vector.shape_cast %405 : vector<1x22x16xf32> to vector<1x1x22x16xf32>
      tpu.vector_store %arg8[%c0_321, %c0_322, %c0_323, %c0_324], %408 {strides = array<i32>} : memref<2x1x22x16xf32, #tpu.memory_space<vmem>>, vector<1x1x22x16xf32>,
      %c1_325 = arith.constant 1 : index
      %c0_326 = arith.constant 0 : index
      %c0_327 = arith.constant 0 : index
      %c4_328 = arith.constant 4 : index
      %409 = vector.load %arg7[%c1_325, %c0_326, %c0_327, %c4_328] : memref<2x1x22x22xf32, #tpu.memory_space<vmem>>, vector<1x1x22x16xf32>
      %410 = vector.shape_cast %409 : vector<1x1x22x16xf32> to vector<1x22x16xf32>
      %c1_329 = arith.constant 1 : index
      %c0_330 = arith.constant 0 : index
      %c0_331 = arith.constant 0 : index
      %c0_332 = arith.constant 0 : index
      %411 = vector.load %arg8[%c1_329, %c0_330, %c0_331, %c0_332] : memref<2x1x22x16xf32, #tpu.memory_space<vmem>>, vector<1x1x22x16xf32>
      %412 = vector.shape_cast %411 : vector<1x1x22x16xf32> to vector<1x22x16xf32>
      %413 = vector.shape_cast %410 : vector<1x22x16xf32> to vector<1x1x22x16xf32>
      tpu.vector_store %arg8[%c1_329, %c0_330, %c0_331, %c0_332], %413 {strides = array<i32>} : memref<2x1x22x16xf32, #tpu.memory_space<vmem>>, vector<1x1x22x16xf32>,
      %c4_333 = arith.constant 4 : index
      %414 = memref.load %arg2[%c4_333] : memref<98xf32, #tpu.memory_space<smem>>
      %c0_334 = arith.constant 0 : index
      %c0_335 = arith.constant 0 : index
      %c0_336 = arith.constant 0 : index
      %c0_337 = arith.constant 0 : index
      %415 = vector.load %arg8[%c0_334, %c0_335, %c0_336, %c0_337] : memref<2x1x22x16xf32, #tpu.memory_space<vmem>>, vector<1x1x16x16xf32>
      %416 = vector.shape_cast %415 : vector<1x1x16x16xf32> to vector<1x16x16xf32>
      %417 = vector.broadcast %414 : f32 to vector<1x16x16xf32>
      %418 = arith.mulf %417, %416 : vector<1x16x16xf32>
      %419 = arith.addf %361, %418 : vector<1x16x16xf32>
      %c11 = arith.constant 11 : index
      %420 = memref.load %arg2[%c11] : memref<98xf32, #tpu.memory_space<smem>>
      %c0_338 = arith.constant 0 : index
      %c0_339 = arith.constant 0 : index
      %c1_340 = arith.constant 1 : index
      %c0_341 = arith.constant 0 : index
      %421 = vector.load %arg8[%c0_338, %c0_339, %c1_340, %c0_341] : memref<2x1x22x16xf32, #tpu.memory_space<vmem>>, vector<1x1x16x16xf32>
      %422 = vector.shape_cast %421 : vector<1x1x16x16xf32> to vector<1x16x16xf32>
      %423 = vector.broadcast %420 : f32 to vector<1x16x16xf32>
      %424 = arith.mulf %423, %422 : vector<1x16x16xf32>
      %425 = arith.addf %367, %424 : vector<1x16x16xf32>
      %c18 = arith.constant 18 : index
      %426 = memref.load %arg2[%c18] : memref<98xf32, #tpu.memory_space<smem>>
      %c0_342 = arith.constant 0 : index
      %c0_343 = arith.constant 0 : index
      %c2_344 = arith.constant 2 : index
      %c0_345 = arith.constant 0 : index
      %427 = vector.load %arg8[%c0_342, %c0_343, %c2_344, %c0_345] : memref<2x1x22x16xf32, #tpu.memory_space<vmem>>, vector<1x1x16x16xf32>
      %428 = vector.shape_cast %427 : vector<1x1x16x16xf32> to vector<1x16x16xf32>
      %429 = vector.broadcast %426 : f32 to vector<1x16x16xf32>
      %430 = arith.mulf %429, %428 : vector<1x16x16xf32>
      %431 = arith.addf %373, %430 : vector<1x16x16xf32>
      %c25 = arith.constant 25 : index
      %432 = memref.load %arg2[%c25] : memref<98xf32, #tpu.memory_space<smem>>
      %c0_346 = arith.constant 0 : index
      %c0_347 = arith.constant 0 : index
      %c3_348 = arith.constant 3 : index
      %c0_349 = arith.constant 0 : index
      %433 = vector.load %arg8[%c0_346, %c0_347, %c3_348, %c0_349] : memref<2x1x22x16xf32, #tpu.memory_space<vmem>>, vector<1x1x16x16xf32>
      %434 = vector.shape_cast %433 : vector<1x1x16x16xf32> to vector<1x16x16xf32>
      %435 = vector.broadcast %432 : f32 to vector<1x16x16xf32>
      %436 = arith.mulf %435, %434 : vector<1x16x16xf32>
      %437 = arith.addf %379, %436 : vector<1x16x16xf32>
      %c32 = arith.constant 32 : index
      %438 = memref.load %arg2[%c32] : memref<98xf32, #tpu.memory_space<smem>>
      %c0_350 = arith.constant 0 : index
      %c0_351 = arith.constant 0 : index
      %c4_352 = arith.constant 4 : index
      %c0_353 = arith.constant 0 : index
      %439 = vector.load %arg8[%c0_350, %c0_351, %c4_352, %c0_353] : memref<2x1x22x16xf32, #tpu.memory_space<vmem>>, vector<1x1x16x16xf32>
      %440 = vector.shape_cast %439 : vector<1x1x16x16xf32> to vector<1x16x16xf32>
      %441 = vector.broadcast %438 : f32 to vector<1x16x16xf32>
      %442 = arith.mulf %441, %440 : vector<1x16x16xf32>
      %443 = arith.addf %385, %442 : vector<1x16x16xf32>
      %c39 = arith.constant 39 : index
      %444 = memref.load %arg2[%c39] : memref<98xf32, #tpu.memory_space<smem>>
      %c0_354 = arith.constant 0 : index
      %c0_355 = arith.constant 0 : index
      %c5_356 = arith.constant 5 : index
      %c0_357 = arith.constant 0 : index
      %445 = vector.load %arg8[%c0_354, %c0_355, %c5_356, %c0_357] : memref<2x1x22x16xf32, #tpu.memory_space<vmem>>, vector<1x1x16x16xf32>
      %446 = vector.shape_cast %445 : vector<1x1x16x16xf32> to vector<1x16x16xf32>
      %447 = vector.broadcast %444 : f32 to vector<1x16x16xf32>
      %448 = arith.mulf %447, %446 : vector<1x16x16xf32>
      %449 = arith.addf %391, %448 : vector<1x16x16xf32>
      %c46 = arith.constant 46 : index
      %450 = memref.load %arg2[%c46] : memref<98xf32, #tpu.memory_space<smem>>
      %c0_358 = arith.constant 0 : index
      %c0_359 = arith.constant 0 : index
      %c6_360 = arith.constant 6 : index
      %c0_361 = arith.constant 0 : index
      %451 = vector.load %arg8[%c0_358, %c0_359, %c6_360, %c0_361] : memref<2x1x22x16xf32, #tpu.memory_space<vmem>>, vector<1x1x16x16xf32>
      %452 = vector.shape_cast %451 : vector<1x1x16x16xf32> to vector<1x16x16xf32>
      %453 = vector.broadcast %450 : f32 to vector<1x16x16xf32>
      %454 = arith.mulf %453, %452 : vector<1x16x16xf32>
      %455 = arith.addf %397, %454 : vector<1x16x16xf32>
      %c53 = arith.constant 53 : index
      %456 = memref.load %arg2[%c53] : memref<98xf32, #tpu.memory_space<smem>>
      %c1_362 = arith.constant 1 : index
      %c0_363 = arith.constant 0 : index
      %c0_364 = arith.constant 0 : index
      %c0_365 = arith.constant 0 : index
      %457 = vector.load %arg8[%c1_362, %c0_363, %c0_364, %c0_365] : memref<2x1x22x16xf32, #tpu.memory_space<vmem>>, vector<1x1x16x16xf32>
      %458 = vector.shape_cast %457 : vector<1x1x16x16xf32> to vector<1x16x16xf32>
      %459 = vector.broadcast %456 : f32 to vector<1x16x16xf32>
      %460 = arith.mulf %459, %458 : vector<1x16x16xf32>
      %461 = arith.addf %403, %460 : vector<1x16x16xf32>
      %c60 = arith.constant 60 : index
      %462 = memref.load %arg2[%c60] : memref<98xf32, #tpu.memory_space<smem>>
      %c1_366 = arith.constant 1 : index
      %c0_367 = arith.constant 0 : index
      %c1_368 = arith.constant 1 : index
      %c0_369 = arith.constant 0 : index
      %463 = vector.load %arg8[%c1_366, %c0_367, %c1_368, %c0_369] : memref<2x1x22x16xf32, #tpu.memory_space<vmem>>, vector<1x1x16x16xf32>
      %464 = vector.shape_cast %463 : vector<1x1x16x16xf32> to vector<1x16x16xf32>
      %465 = vector.broadcast %462 : f32 to vector<1x16x16xf32>
      %466 = arith.mulf %465, %464 : vector<1x16x16xf32>
      %467 = arith.addf %419, %466 : vector<1x16x16xf32>
      %c67 = arith.constant 67 : index
      %468 = memref.load %arg2[%c67] : memref<98xf32, #tpu.memory_space<smem>>
      %c1_370 = arith.constant 1 : index
      %c0_371 = arith.constant 0 : index
      %c2_372 = arith.constant 2 : index
      %c0_373 = arith.constant 0 : index
      %469 = vector.load %arg8[%c1_370, %c0_371, %c2_372, %c0_373] : memref<2x1x22x16xf32, #tpu.memory_space<vmem>>, vector<1x1x16x16xf32>
      %470 = vector.shape_cast %469 : vector<1x1x16x16xf32> to vector<1x16x16xf32>
      %471 = vector.broadcast %468 : f32 to vector<1x16x16xf32>
      %472 = arith.mulf %471, %470 : vector<1x16x16xf32>
      %473 = arith.addf %425, %472 : vector<1x16x16xf32>
      %c74 = arith.constant 74 : index
      %474 = memref.load %arg2[%c74] : memref<98xf32, #tpu.memory_space<smem>>
      %c1_374 = arith.constant 1 : index
      %c0_375 = arith.constant 0 : index
      %c3_376 = arith.constant 3 : index
      %c0_377 = arith.constant 0 : index
      %475 = vector.load %arg8[%c1_374, %c0_375, %c3_376, %c0_377] : memref<2x1x22x16xf32, #tpu.memory_space<vmem>>, vector<1x1x16x16xf32>
      %476 = vector.shape_cast %475 : vector<1x1x16x16xf32> to vector<1x16x16xf32>
      %477 = vector.broadcast %474 : f32 to vector<1x16x16xf32>
      %478 = arith.mulf %477, %476 : vector<1x16x16xf32>
      %479 = arith.addf %431, %478 : vector<1x16x16xf32>
      %c81 = arith.constant 81 : index
      %480 = memref.load %arg2[%c81] : memref<98xf32, #tpu.memory_space<smem>>
      %c1_378 = arith.constant 1 : index
      %c0_379 = arith.constant 0 : index
      %c4_380 = arith.constant 4 : index
      %c0_381 = arith.constant 0 : index
      %481 = vector.load %arg8[%c1_378, %c0_379, %c4_380, %c0_381] : memref<2x1x22x16xf32, #tpu.memory_space<vmem>>, vector<1x1x16x16xf32>
      %482 = vector.shape_cast %481 : vector<1x1x16x16xf32> to vector<1x16x16xf32>
      %483 = vector.broadcast %480 : f32 to vector<1x16x16xf32>
      %484 = arith.mulf %483, %482 : vector<1x16x16xf32>
      %485 = arith.addf %437, %484 : vector<1x16x16xf32>
      %c88 = arith.constant 88 : index
      %486 = memref.load %arg2[%c88] : memref<98xf32, #tpu.memory_space<smem>>
      %c1_382 = arith.constant 1 : index
      %c0_383 = arith.constant 0 : index
      %c5_384 = arith.constant 5 : index
      %c0_385 = arith.constant 0 : index
      %487 = vector.load %arg8[%c1_382, %c0_383, %c5_384, %c0_385] : memref<2x1x22x16xf32, #tpu.memory_space<vmem>>, vector<1x1x16x16xf32>
      %488 = vector.shape_cast %487 : vector<1x1x16x16xf32> to vector<1x16x16xf32>
      %489 = vector.broadcast %486 : f32 to vector<1x16x16xf32>
      %490 = arith.mulf %489, %488 : vector<1x16x16xf32>
      %491 = arith.addf %443, %490 : vector<1x16x16xf32>
      %c95 = arith.constant 95 : index
      %492 = memref.load %arg2[%c95] : memref<98xf32, #tpu.memory_space<smem>>
      %c1_386 = arith.constant 1 : index
      %c0_387 = arith.constant 0 : index
      %c6_388 = arith.constant 6 : index
      %c0_389 = arith.constant 0 : index
      %493 = vector.load %arg8[%c1_386, %c0_387, %c6_388, %c0_389] : memref<2x1x22x16xf32, #tpu.memory_space<vmem>>, vector<1x1x16x16xf32>
      %494 = vector.shape_cast %493 : vector<1x1x16x16xf32> to vector<1x16x16xf32>
      %495 = vector.broadcast %492 : f32 to vector<1x16x16xf32>
      %496 = arith.mulf %495, %494 : vector<1x16x16xf32>
      %497 = arith.addf %449, %496 : vector<1x16x16xf32>
      %c0_390 = arith.constant 0 : index
      %c0_391 = arith.constant 0 : index
      %c0_392 = arith.constant 0 : index
      %c5_393 = arith.constant 5 : index
      %498 = vector.load %arg7[%c0_390, %c0_391, %c0_392, %c5_393] : memref<2x1x22x22xf32, #tpu.memory_space<vmem>>, vector<1x1x22x16xf32>
      %499 = vector.shape_cast %498 : vector<1x1x22x16xf32> to vector<1x22x16xf32>
      %c0_394 = arith.constant 0 : index
      %c0_395 = arith.constant 0 : index
      %c0_396 = arith.constant 0 : index
      %c0_397 = arith.constant 0 : index
      %500 = vector.load %arg8[%c0_394, %c0_395, %c0_396, %c0_397] : memref<2x1x22x16xf32, #tpu.memory_space<vmem>>, vector<1x1x22x16xf32>
      %501 = vector.shape_cast %500 : vector<1x1x22x16xf32> to vector<1x22x16xf32>
      %502 = vector.shape_cast %499 : vector<1x22x16xf32> to vector<1x1x22x16xf32>
      tpu.vector_store %arg8[%c0_394, %c0_395, %c0_396, %c0_397], %502 {strides = array<i32>} : memref<2x1x22x16xf32, #tpu.memory_space<vmem>>, vector<1x1x22x16xf32>,
      %c1_398 = arith.constant 1 : index
      %c0_399 = arith.constant 0 : index
      %c0_400 = arith.constant 0 : index
      %c5_401 = arith.constant 5 : index
      %503 = vector.load %arg7[%c1_398, %c0_399, %c0_400, %c5_401] : memref<2x1x22x22xf32, #tpu.memory_space<vmem>>, vector<1x1x22x16xf32>
      %504 = vector.shape_cast %503 : vector<1x1x22x16xf32> to vector<1x22x16xf32>
      %c1_402 = arith.constant 1 : index
      %c0_403 = arith.constant 0 : index
      %c0_404 = arith.constant 0 : index
      %c0_405 = arith.constant 0 : index
      %505 = vector.load %arg8[%c1_402, %c0_403, %c0_404, %c0_405] : memref<2x1x22x16xf32, #tpu.memory_space<vmem>>, vector<1x1x22x16xf32>
      %506 = vector.shape_cast %505 : vector<1x1x22x16xf32> to vector<1x22x16xf32>
      %507 = vector.shape_cast %504 : vector<1x22x16xf32> to vector<1x1x22x16xf32>
      tpu.vector_store %arg8[%c1_402, %c0_403, %c0_404, %c0_405], %507 {strides = array<i32>} : memref<2x1x22x16xf32, #tpu.memory_space<vmem>>, vector<1x1x22x16xf32>,
      %c5_406 = arith.constant 5 : index
      %508 = memref.load %arg2[%c5_406] : memref<98xf32, #tpu.memory_space<smem>>
      %c0_407 = arith.constant 0 : index
      %c0_408 = arith.constant 0 : index
      %c0_409 = arith.constant 0 : index
      %c0_410 = arith.constant 0 : index
      %509 = vector.load %arg8[%c0_407, %c0_408, %c0_409, %c0_410] : memref<2x1x22x16xf32, #tpu.memory_space<vmem>>, vector<1x1x16x16xf32>
      %510 = vector.shape_cast %509 : vector<1x1x16x16xf32> to vector<1x16x16xf32>
      %511 = vector.broadcast %508 : f32 to vector<1x16x16xf32>
      %512 = arith.mulf %511, %510 : vector<1x16x16xf32>
      %513 = arith.addf %455, %512 : vector<1x16x16xf32>
      %c12 = arith.constant 12 : index
      %514 = memref.load %arg2[%c12] : memref<98xf32, #tpu.memory_space<smem>>
      %c0_411 = arith.constant 0 : index
      %c0_412 = arith.constant 0 : index
      %c1_413 = arith.constant 1 : index
      %c0_414 = arith.constant 0 : index
      %515 = vector.load %arg8[%c0_411, %c0_412, %c1_413, %c0_414] : memref<2x1x22x16xf32, #tpu.memory_space<vmem>>, vector<1x1x16x16xf32>
      %516 = vector.shape_cast %515 : vector<1x1x16x16xf32> to vector<1x16x16xf32>
      %517 = vector.broadcast %514 : f32 to vector<1x16x16xf32>
      %518 = arith.mulf %517, %516 : vector<1x16x16xf32>
      %519 = arith.addf %461, %518 : vector<1x16x16xf32>
      %c19 = arith.constant 19 : index
      %520 = memref.load %arg2[%c19] : memref<98xf32, #tpu.memory_space<smem>>
      %c0_415 = arith.constant 0 : index
      %c0_416 = arith.constant 0 : index
      %c2_417 = arith.constant 2 : index
      %c0_418 = arith.constant 0 : index
      %521 = vector.load %arg8[%c0_415, %c0_416, %c2_417, %c0_418] : memref<2x1x22x16xf32, #tpu.memory_space<vmem>>, vector<1x1x16x16xf32>
      %522 = vector.shape_cast %521 : vector<1x1x16x16xf32> to vector<1x16x16xf32>
      %523 = vector.broadcast %520 : f32 to vector<1x16x16xf32>
      %524 = arith.mulf %523, %522 : vector<1x16x16xf32>
      %525 = arith.addf %467, %524 : vector<1x16x16xf32>
      %c26 = arith.constant 26 : index
      %526 = memref.load %arg2[%c26] : memref<98xf32, #tpu.memory_space<smem>>
      %c0_419 = arith.constant 0 : index
      %c0_420 = arith.constant 0 : index
      %c3_421 = arith.constant 3 : index
      %c0_422 = arith.constant 0 : index
      %527 = vector.load %arg8[%c0_419, %c0_420, %c3_421, %c0_422] : memref<2x1x22x16xf32, #tpu.memory_space<vmem>>, vector<1x1x16x16xf32>
      %528 = vector.shape_cast %527 : vector<1x1x16x16xf32> to vector<1x16x16xf32>
      %529 = vector.broadcast %526 : f32 to vector<1x16x16xf32>
      %530 = arith.mulf %529, %528 : vector<1x16x16xf32>
      %531 = arith.addf %473, %530 : vector<1x16x16xf32>
      %c33 = arith.constant 33 : index
      %532 = memref.load %arg2[%c33] : memref<98xf32, #tpu.memory_space<smem>>
      %c0_423 = arith.constant 0 : index
      %c0_424 = arith.constant 0 : index
      %c4_425 = arith.constant 4 : index
      %c0_426 = arith.constant 0 : index
      %533 = vector.load %arg8[%c0_423, %c0_424, %c4_425, %c0_426] : memref<2x1x22x16xf32, #tpu.memory_space<vmem>>, vector<1x1x16x16xf32>
      %534 = vector.shape_cast %533 : vector<1x1x16x16xf32> to vector<1x16x16xf32>
      %535 = vector.broadcast %532 : f32 to vector<1x16x16xf32>
      %536 = arith.mulf %535, %534 : vector<1x16x16xf32>
      %537 = arith.addf %479, %536 : vector<1x16x16xf32>
      %c40 = arith.constant 40 : index
      %538 = memref.load %arg2[%c40] : memref<98xf32, #tpu.memory_space<smem>>
      %c0_427 = arith.constant 0 : index
      %c0_428 = arith.constant 0 : index
      %c5_429 = arith.constant 5 : index
      %c0_430 = arith.constant 0 : index
      %539 = vector.load %arg8[%c0_427, %c0_428, %c5_429, %c0_430] : memref<2x1x22x16xf32, #tpu.memory_space<vmem>>, vector<1x1x16x16xf32>
      %540 = vector.shape_cast %539 : vector<1x1x16x16xf32> to vector<1x16x16xf32>
      %541 = vector.broadcast %538 : f32 to vector<1x16x16xf32>
      %542 = arith.mulf %541, %540 : vector<1x16x16xf32>
      %543 = arith.addf %485, %542 : vector<1x16x16xf32>
      %c47 = arith.constant 47 : index
      %544 = memref.load %arg2[%c47] : memref<98xf32, #tpu.memory_space<smem>>
      %c0_431 = arith.constant 0 : index
      %c0_432 = arith.constant 0 : index
      %c6_433 = arith.constant 6 : index
      %c0_434 = arith.constant 0 : index
      %545 = vector.load %arg8[%c0_431, %c0_432, %c6_433, %c0_434] : memref<2x1x22x16xf32, #tpu.memory_space<vmem>>, vector<1x1x16x16xf32>
      %546 = vector.shape_cast %545 : vector<1x1x16x16xf32> to vector<1x16x16xf32>
      %547 = vector.broadcast %544 : f32 to vector<1x16x16xf32>
      %548 = arith.mulf %547, %546 : vector<1x16x16xf32>
      %549 = arith.addf %491, %548 : vector<1x16x16xf32>
      %c54 = arith.constant 54 : index
      %550 = memref.load %arg2[%c54] : memref<98xf32, #tpu.memory_space<smem>>
      %c1_435 = arith.constant 1 : index
      %c0_436 = arith.constant 0 : index
      %c0_437 = arith.constant 0 : index
      %c0_438 = arith.constant 0 : index
      %551 = vector.load %arg8[%c1_435, %c0_436, %c0_437, %c0_438] : memref<2x1x22x16xf32, #tpu.memory_space<vmem>>, vector<1x1x16x16xf32>
      %552 = vector.shape_cast %551 : vector<1x1x16x16xf32> to vector<1x16x16xf32>
      %553 = vector.broadcast %550 : f32 to vector<1x16x16xf32>
      %554 = arith.mulf %553, %552 : vector<1x16x16xf32>
      %555 = arith.addf %497, %554 : vector<1x16x16xf32>
      %c61 = arith.constant 61 : index
      %556 = memref.load %arg2[%c61] : memref<98xf32, #tpu.memory_space<smem>>
      %c1_439 = arith.constant 1 : index
      %c0_440 = arith.constant 0 : index
      %c1_441 = arith.constant 1 : index
      %c0_442 = arith.constant 0 : index
      %557 = vector.load %arg8[%c1_439, %c0_440, %c1_441, %c0_442] : memref<2x1x22x16xf32, #tpu.memory_space<vmem>>, vector<1x1x16x16xf32>
      %558 = vector.shape_cast %557 : vector<1x1x16x16xf32> to vector<1x16x16xf32>
      %559 = vector.broadcast %556 : f32 to vector<1x16x16xf32>
      %560 = arith.mulf %559, %558 : vector<1x16x16xf32>
      %561 = arith.addf %513, %560 : vector<1x16x16xf32>
      %c68 = arith.constant 68 : index
      %562 = memref.load %arg2[%c68] : memref<98xf32, #tpu.memory_space<smem>>
      %c1_443 = arith.constant 1 : index
      %c0_444 = arith.constant 0 : index
      %c2_445 = arith.constant 2 : index
      %c0_446 = arith.constant 0 : index
      %563 = vector.load %arg8[%c1_443, %c0_444, %c2_445, %c0_446] : memref<2x1x22x16xf32, #tpu.memory_space<vmem>>, vector<1x1x16x16xf32>
      %564 = vector.shape_cast %563 : vector<1x1x16x16xf32> to vector<1x16x16xf32>
      %565 = vector.broadcast %562 : f32 to vector<1x16x16xf32>
      %566 = arith.mulf %565, %564 : vector<1x16x16xf32>
      %567 = arith.addf %519, %566 : vector<1x16x16xf32>
      %c75 = arith.constant 75 : index
      %568 = memref.load %arg2[%c75] : memref<98xf32, #tpu.memory_space<smem>>
      %c1_447 = arith.constant 1 : index
      %c0_448 = arith.constant 0 : index
      %c3_449 = arith.constant 3 : index
      %c0_450 = arith.constant 0 : index
      %569 = vector.load %arg8[%c1_447, %c0_448, %c3_449, %c0_450] : memref<2x1x22x16xf32, #tpu.memory_space<vmem>>, vector<1x1x16x16xf32>
      %570 = vector.shape_cast %569 : vector<1x1x16x16xf32> to vector<1x16x16xf32>
      %571 = vector.broadcast %568 : f32 to vector<1x16x16xf32>
      %572 = arith.mulf %571, %570 : vector<1x16x16xf32>
      %573 = arith.addf %525, %572 : vector<1x16x16xf32>
      %c82 = arith.constant 82 : index
      %574 = memref.load %arg2[%c82] : memref<98xf32, #tpu.memory_space<smem>>
      %c1_451 = arith.constant 1 : index
      %c0_452 = arith.constant 0 : index
      %c4_453 = arith.constant 4 : index
      %c0_454 = arith.constant 0 : index
      %575 = vector.load %arg8[%c1_451, %c0_452, %c4_453, %c0_454] : memref<2x1x22x16xf32, #tpu.memory_space<vmem>>, vector<1x1x16x16xf32>
      %576 = vector.shape_cast %575 : vector<1x1x16x16xf32> to vector<1x16x16xf32>
      %577 = vector.broadcast %574 : f32 to vector<1x16x16xf32>
      %578 = arith.mulf %577, %576 : vector<1x16x16xf32>
      %579 = arith.addf %531, %578 : vector<1x16x16xf32>
      %c89 = arith.constant 89 : index
      %580 = memref.load %arg2[%c89] : memref<98xf32, #tpu.memory_space<smem>>
      %c1_455 = arith.constant 1 : index
      %c0_456 = arith.constant 0 : index
      %c5_457 = arith.constant 5 : index
      %c0_458 = arith.constant 0 : index
      %581 = vector.load %arg8[%c1_455, %c0_456, %c5_457, %c0_458] : memref<2x1x22x16xf32, #tpu.memory_space<vmem>>, vector<1x1x16x16xf32>
      %582 = vector.shape_cast %581 : vector<1x1x16x16xf32> to vector<1x16x16xf32>
      %583 = vector.broadcast %580 : f32 to vector<1x16x16xf32>
      %584 = arith.mulf %583, %582 : vector<1x16x16xf32>
      %585 = arith.addf %537, %584 : vector<1x16x16xf32>
      %c96 = arith.constant 96 : index
      %586 = memref.load %arg2[%c96] : memref<98xf32, #tpu.memory_space<smem>>
      %c1_459 = arith.constant 1 : index
      %c0_460 = arith.constant 0 : index
      %c6_461 = arith.constant 6 : index
      %c0_462 = arith.constant 0 : index
      %587 = vector.load %arg8[%c1_459, %c0_460, %c6_461, %c0_462] : memref<2x1x22x16xf32, #tpu.memory_space<vmem>>, vector<1x1x16x16xf32>
      %588 = vector.shape_cast %587 : vector<1x1x16x16xf32> to vector<1x16x16xf32>
      %589 = vector.broadcast %586 : f32 to vector<1x16x16xf32>
      %590 = arith.mulf %589, %588 : vector<1x16x16xf32>
      %591 = arith.addf %543, %590 : vector<1x16x16xf32>
      %c0_463 = arith.constant 0 : index
      %c0_464 = arith.constant 0 : index
      %c0_465 = arith.constant 0 : index
      %c6_466 = arith.constant 6 : index
      %592 = vector.load %arg7[%c0_463, %c0_464, %c0_465, %c6_466] : memref<2x1x22x22xf32, #tpu.memory_space<vmem>>, vector<1x1x22x16xf32>
      %593 = vector.shape_cast %592 : vector<1x1x22x16xf32> to vector<1x22x16xf32>
      %c0_467 = arith.constant 0 : index
      %c0_468 = arith.constant 0 : index
      %c0_469 = arith.constant 0 : index
      %c0_470 = arith.constant 0 : index
      %594 = vector.load %arg8[%c0_467, %c0_468, %c0_469, %c0_470] : memref<2x1x22x16xf32, #tpu.memory_space<vmem>>, vector<1x1x22x16xf32>
      %595 = vector.shape_cast %594 : vector<1x1x22x16xf32> to vector<1x22x16xf32>
      %596 = vector.shape_cast %593 : vector<1x22x16xf32> to vector<1x1x22x16xf32>
      tpu.vector_store %arg8[%c0_467, %c0_468, %c0_469, %c0_470], %596 {strides = array<i32>} : memref<2x1x22x16xf32, #tpu.memory_space<vmem>>, vector<1x1x22x16xf32>,
      %c1_471 = arith.constant 1 : index
      %c0_472 = arith.constant 0 : index
      %c0_473 = arith.constant 0 : index
      %c6_474 = arith.constant 6 : index
      %597 = vector.load %arg7[%c1_471, %c0_472, %c0_473, %c6_474] : memref<2x1x22x22xf32, #tpu.memory_space<vmem>>, vector<1x1x22x16xf32>
      %598 = vector.shape_cast %597 : vector<1x1x22x16xf32> to vector<1x22x16xf32>
      %c1_475 = arith.constant 1 : index
      %c0_476 = arith.constant 0 : index
      %c0_477 = arith.constant 0 : index
      %c0_478 = arith.constant 0 : index
      %599 = vector.load %arg8[%c1_475, %c0_476, %c0_477, %c0_478] : memref<2x1x22x16xf32, #tpu.memory_space<vmem>>, vector<1x1x22x16xf32>
      %600 = vector.shape_cast %599 : vector<1x1x22x16xf32> to vector<1x22x16xf32>
      %601 = vector.shape_cast %598 : vector<1x22x16xf32> to vector<1x1x22x16xf32>
      tpu.vector_store %arg8[%c1_475, %c0_476, %c0_477, %c0_478], %601 {strides = array<i32>} : memref<2x1x22x16xf32, #tpu.memory_space<vmem>>, vector<1x1x22x16xf32>,
      %c6_479 = arith.constant 6 : index
      %602 = memref.load %arg2[%c6_479] : memref<98xf32, #tpu.memory_space<smem>>
      %c0_480 = arith.constant 0 : index
      %c0_481 = arith.constant 0 : index
      %c0_482 = arith.constant 0 : index
      %c0_483 = arith.constant 0 : index
      %603 = vector.load %arg8[%c0_480, %c0_481, %c0_482, %c0_483] : memref<2x1x22x16xf32, #tpu.memory_space<vmem>>, vector<1x1x16x16xf32>
      %604 = vector.shape_cast %603 : vector<1x1x16x16xf32> to vector<1x16x16xf32>
      %605 = vector.broadcast %602 : f32 to vector<1x16x16xf32>
      %606 = arith.mulf %605, %604 : vector<1x16x16xf32>
      %607 = arith.addf %549, %606 : vector<1x16x16xf32>
      %c13 = arith.constant 13 : index
      %608 = memref.load %arg2[%c13] : memref<98xf32, #tpu.memory_space<smem>>
      %c0_484 = arith.constant 0 : index
      %c0_485 = arith.constant 0 : index
      %c1_486 = arith.constant 1 : index
      %c0_487 = arith.constant 0 : index
      %609 = vector.load %arg8[%c0_484, %c0_485, %c1_486, %c0_487] : memref<2x1x22x16xf32, #tpu.memory_space<vmem>>, vector<1x1x16x16xf32>
      %610 = vector.shape_cast %609 : vector<1x1x16x16xf32> to vector<1x16x16xf32>
      %611 = vector.broadcast %608 : f32 to vector<1x16x16xf32>
      %612 = arith.mulf %611, %610 : vector<1x16x16xf32>
      %613 = arith.addf %555, %612 : vector<1x16x16xf32>
      %c20 = arith.constant 20 : index
      %614 = memref.load %arg2[%c20] : memref<98xf32, #tpu.memory_space<smem>>
      %c0_488 = arith.constant 0 : index
      %c0_489 = arith.constant 0 : index
      %c2_490 = arith.constant 2 : index
      %c0_491 = arith.constant 0 : index
      %615 = vector.load %arg8[%c0_488, %c0_489, %c2_490, %c0_491] : memref<2x1x22x16xf32, #tpu.memory_space<vmem>>, vector<1x1x16x16xf32>
      %616 = vector.shape_cast %615 : vector<1x1x16x16xf32> to vector<1x16x16xf32>
      %617 = vector.broadcast %614 : f32 to vector<1x16x16xf32>
      %618 = arith.mulf %617, %616 : vector<1x16x16xf32>
      %619 = arith.addf %561, %618 : vector<1x16x16xf32>
      %c27 = arith.constant 27 : index
      %620 = memref.load %arg2[%c27] : memref<98xf32, #tpu.memory_space<smem>>
      %c0_492 = arith.constant 0 : index
      %c0_493 = arith.constant 0 : index
      %c3_494 = arith.constant 3 : index
      %c0_495 = arith.constant 0 : index
      %621 = vector.load %arg8[%c0_492, %c0_493, %c3_494, %c0_495] : memref<2x1x22x16xf32, #tpu.memory_space<vmem>>, vector<1x1x16x16xf32>
      %622 = vector.shape_cast %621 : vector<1x1x16x16xf32> to vector<1x16x16xf32>
      %623 = vector.broadcast %620 : f32 to vector<1x16x16xf32>
      %624 = arith.mulf %623, %622 : vector<1x16x16xf32>
      %625 = arith.addf %567, %624 : vector<1x16x16xf32>
      %c34 = arith.constant 34 : index
      %626 = memref.load %arg2[%c34] : memref<98xf32, #tpu.memory_space<smem>>
      %c0_496 = arith.constant 0 : index
      %c0_497 = arith.constant 0 : index
      %c4_498 = arith.constant 4 : index
      %c0_499 = arith.constant 0 : index
      %627 = vector.load %arg8[%c0_496, %c0_497, %c4_498, %c0_499] : memref<2x1x22x16xf32, #tpu.memory_space<vmem>>, vector<1x1x16x16xf32>
      %628 = vector.shape_cast %627 : vector<1x1x16x16xf32> to vector<1x16x16xf32>
      %629 = vector.broadcast %626 : f32 to vector<1x16x16xf32>
      %630 = arith.mulf %629, %628 : vector<1x16x16xf32>
      %631 = arith.addf %573, %630 : vector<1x16x16xf32>
      %c41 = arith.constant 41 : index
      %632 = memref.load %arg2[%c41] : memref<98xf32, #tpu.memory_space<smem>>
      %c0_500 = arith.constant 0 : index
      %c0_501 = arith.constant 0 : index
      %c5_502 = arith.constant 5 : index
      %c0_503 = arith.constant 0 : index
      %633 = vector.load %arg8[%c0_500, %c0_501, %c5_502, %c0_503] : memref<2x1x22x16xf32, #tpu.memory_space<vmem>>, vector<1x1x16x16xf32>
      %634 = vector.shape_cast %633 : vector<1x1x16x16xf32> to vector<1x16x16xf32>
      %635 = vector.broadcast %632 : f32 to vector<1x16x16xf32>
      %636 = arith.mulf %635, %634 : vector<1x16x16xf32>
      %637 = arith.addf %579, %636 : vector<1x16x16xf32>
      %c48 = arith.constant 48 : index
      %638 = memref.load %arg2[%c48] : memref<98xf32, #tpu.memory_space<smem>>
      %c0_504 = arith.constant 0 : index
      %c0_505 = arith.constant 0 : index
      %c6_506 = arith.constant 6 : index
      %c0_507 = arith.constant 0 : index
      %639 = vector.load %arg8[%c0_504, %c0_505, %c6_506, %c0_507] : memref<2x1x22x16xf32, #tpu.memory_space<vmem>>, vector<1x1x16x16xf32>
      %640 = vector.shape_cast %639 : vector<1x1x16x16xf32> to vector<1x16x16xf32>
      %641 = vector.broadcast %638 : f32 to vector<1x16x16xf32>
      %642 = arith.mulf %641, %640 : vector<1x16x16xf32>
      %643 = arith.addf %585, %642 : vector<1x16x16xf32>
      %c55 = arith.constant 55 : index
      %644 = memref.load %arg2[%c55] : memref<98xf32, #tpu.memory_space<smem>>
      %c1_508 = arith.constant 1 : index
      %c0_509 = arith.constant 0 : index
      %c0_510 = arith.constant 0 : index
      %c0_511 = arith.constant 0 : index
      %645 = vector.load %arg8[%c1_508, %c0_509, %c0_510, %c0_511] : memref<2x1x22x16xf32, #tpu.memory_space<vmem>>, vector<1x1x16x16xf32>
      %646 = vector.shape_cast %645 : vector<1x1x16x16xf32> to vector<1x16x16xf32>
      %647 = vector.broadcast %644 : f32 to vector<1x16x16xf32>
      %648 = arith.mulf %647, %646 : vector<1x16x16xf32>
      %649 = arith.addf %591, %648 : vector<1x16x16xf32>
      %c62 = arith.constant 62 : index
      %650 = memref.load %arg2[%c62] : memref<98xf32, #tpu.memory_space<smem>>
      %c1_512 = arith.constant 1 : index
      %c0_513 = arith.constant 0 : index
      %c1_514 = arith.constant 1 : index
      %c0_515 = arith.constant 0 : index
      %651 = vector.load %arg8[%c1_512, %c0_513, %c1_514, %c0_515] : memref<2x1x22x16xf32, #tpu.memory_space<vmem>>, vector<1x1x16x16xf32>
      %652 = vector.shape_cast %651 : vector<1x1x16x16xf32> to vector<1x16x16xf32>
      %653 = vector.broadcast %650 : f32 to vector<1x16x16xf32>
      %654 = arith.mulf %653, %652 : vector<1x16x16xf32>
      %655 = arith.addf %607, %654 : vector<1x16x16xf32>
      %c69 = arith.constant 69 : index
      %656 = memref.load %arg2[%c69] : memref<98xf32, #tpu.memory_space<smem>>
      %c1_516 = arith.constant 1 : index
      %c0_517 = arith.constant 0 : index
      %c2_518 = arith.constant 2 : index
      %c0_519 = arith.constant 0 : index
      %657 = vector.load %arg8[%c1_516, %c0_517, %c2_518, %c0_519] : memref<2x1x22x16xf32, #tpu.memory_space<vmem>>, vector<1x1x16x16xf32>
      %658 = vector.shape_cast %657 : vector<1x1x16x16xf32> to vector<1x16x16xf32>
      %659 = vector.broadcast %656 : f32 to vector<1x16x16xf32>
      %660 = arith.mulf %659, %658 : vector<1x16x16xf32>
      %661 = arith.addf %613, %660 : vector<1x16x16xf32>
      %c76 = arith.constant 76 : index
      %662 = memref.load %arg2[%c76] : memref<98xf32, #tpu.memory_space<smem>>
      %c1_520 = arith.constant 1 : index
      %c0_521 = arith.constant 0 : index
      %c3_522 = arith.constant 3 : index
      %c0_523 = arith.constant 0 : index
      %663 = vector.load %arg8[%c1_520, %c0_521, %c3_522, %c0_523] : memref<2x1x22x16xf32, #tpu.memory_space<vmem>>, vector<1x1x16x16xf32>
      %664 = vector.shape_cast %663 : vector<1x1x16x16xf32> to vector<1x16x16xf32>
      %665 = vector.broadcast %662 : f32 to vector<1x16x16xf32>
      %666 = arith.mulf %665, %664 : vector<1x16x16xf32>
      %667 = arith.addf %619, %666 : vector<1x16x16xf32>
      %c83 = arith.constant 83 : index
      %668 = memref.load %arg2[%c83] : memref<98xf32, #tpu.memory_space<smem>>
      %c1_524 = arith.constant 1 : index
      %c0_525 = arith.constant 0 : index
      %c4_526 = arith.constant 4 : index
      %c0_527 = arith.constant 0 : index
      %669 = vector.load %arg8[%c1_524, %c0_525, %c4_526, %c0_527] : memref<2x1x22x16xf32, #tpu.memory_space<vmem>>, vector<1x1x16x16xf32>
      %670 = vector.shape_cast %669 : vector<1x1x16x16xf32> to vector<1x16x16xf32>
      %671 = vector.broadcast %668 : f32 to vector<1x16x16xf32>
      %672 = arith.mulf %671, %670 : vector<1x16x16xf32>
      %673 = arith.addf %625, %672 : vector<1x16x16xf32>
      %c90 = arith.constant 90 : index
      %674 = memref.load %arg2[%c90] : memref<98xf32, #tpu.memory_space<smem>>
      %c1_528 = arith.constant 1 : index
      %c0_529 = arith.constant 0 : index
      %c5_530 = arith.constant 5 : index
      %c0_531 = arith.constant 0 : index
      %675 = vector.load %arg8[%c1_528, %c0_529, %c5_530, %c0_531] : memref<2x1x22x16xf32, #tpu.memory_space<vmem>>, vector<1x1x16x16xf32>
      %676 = vector.shape_cast %675 : vector<1x1x16x16xf32> to vector<1x16x16xf32>
      %677 = vector.broadcast %674 : f32 to vector<1x16x16xf32>
      %678 = arith.mulf %677, %676 : vector<1x16x16xf32>
      %679 = arith.addf %631, %678 : vector<1x16x16xf32>
      %c97 = arith.constant 97 : index
      %680 = memref.load %arg2[%c97] : memref<98xf32, #tpu.memory_space<smem>>
      %c1_532 = arith.constant 1 : index
      %c0_533 = arith.constant 0 : index
      %c6_534 = arith.constant 6 : index
      %c0_535 = arith.constant 0 : index
      %681 = vector.load %arg8[%c1_532, %c0_533, %c6_534, %c0_535] : memref<2x1x22x16xf32, #tpu.memory_space<vmem>>, vector<1x1x16x16xf32>
      %682 = vector.shape_cast %681 : vector<1x1x16x16xf32> to vector<1x16x16xf32>
      %683 = vector.broadcast %680 : f32 to vector<1x16x16xf32>
      %684 = arith.mulf %683, %682 : vector<1x16x16xf32>
      %685 = arith.addf %637, %684 : vector<1x16x16xf32>
      %686 = arith.addf %679, %685 : vector<1x16x16xf32>
      %687 = arith.addf %643, %649 : vector<1x16x16xf32>
      %688 = arith.addf %686, %687 : vector<1x16x16xf32>
      %689 = arith.addf %655, %661 : vector<1x16x16xf32>
      %690 = arith.addf %667, %673 : vector<1x16x16xf32>
      %691 = arith.addf %689, %690 : vector<1x16x16xf32>
      %692 = arith.addf %688, %691 : vector<1x16x16xf32>
      %693 = arith.negf %692 : vector<1x16x16xf32>
      %694 = math.exp %693 : vector<1x16x16xf32>
      %cst_536 = arith.constant 1.000000e+00 : f32
      %695 = vector.broadcast %cst_536 : f32 to vector<1x16x16xf32>
      %696 = arith.addf %695, %694 : vector<1x16x16xf32>
      %697 = arith.divf %695, %696 : vector<1x16x16xf32>
      %698 = vector.shape_cast %697 : vector<1x16x16xf32> to vector<1x1x16x16xf32>
      %c0_537 = arith.constant 0 : index
      %c0_538 = arith.constant 0 : index
      %c0_539 = arith.constant 0 : index
      %c0_540 = arith.constant 0 : index
      %699 = vector.load %arg4[%c0_537, %c0_538, %c0_539, %c0_540] : memref<1x1x16x16xf32, #tpu.memory_space<vmem>>, vector<1x1x16x16xf32>
      tpu.vector_store %arg4[%c0_537, %c0_538, %c0_539, %c0_540], %698 {strides = array<i32>} : memref<1x1x16x16xf32, #tpu.memory_space<vmem>>, vector<1x1x16x16xf32>,
    } else {
    }
    return
  }
  func.func @transform_0(%arg0: i32, %arg1: i32) -> i32 {
    %c0_i32 = arith.constant 0 : i32
    %c0_i32_0 = arith.constant 0 : i32
    return %c0_i32 : i32
  }
  func.func @transform_1(%arg0: i32, %arg1: i32) -> (i32, i32, i32, i32) {
    %c0_i32 = arith.constant 0 : i32
    %c0_i32_0 = arith.constant 0 : i32
    %c0_i32_1 = arith.constant 0 : i32
    return %arg0, %arg1, %c0_i32, %c0_i32_0 : i32, i32, i32, i32
  }
  func.func @transform_2(%arg0: i32, %arg1: i32) -> (i32, i32, i32, i32) {
    %c0_i32 = arith.constant 0 : i32
    %c0_i32_0 = arith.constant 0 : i32
    %c0_i32_1 = arith.constant 0 : i32
    %c0_i32_2 = arith.constant 0 : i32
    return %arg0, %c0_i32, %c0_i32_0, %c0_i32_1 : i32, i32, i32, i32
  }
}

</mosaic_0001>

<llo_original>
// kernel: tpu_custom_call.1
$region0: #{tpu_custom_call.1}
  #allocation0 [shape = 'u32[]', space=smem, size = 0x4, offset = 0x4, fixed_abs, tag = 'smem constant byte address 0x4 - core index']
  #allocation1 [shape = 'u32[144,128]{1,0:T(1,128)}', space=vmem, size = 0x12000, scoped, tag = 'internal scratch']
  #allocation2 [shape = 'f32[1,16,16]{2,1,0:T(8,128)}', space=vmem, size = 0x2000, scoped, tag = 'scratch operand']
  #allocation3 [shape = 'f32[1,16,16]{2,1,0:T(8,128)}', space=vmem, size = 0x2000, scoped, tag = 'scratch operand']
  #allocation4 [shape = 'f32[2,1,22,22]{3,2,1,0:T(8,128)}', space=vmem, size = 0x6000, scoped, tag = 'scratch operand']
  #allocation5 [shape = 'f32[2,1,22,16]{3,2,1,0:T(8,128)}', space=vmem, size = 0x6000, scoped, tag = 'scratch operand']
  %s0 = inlined_call_operand.hbm [shape: f32[98], index: 0, kind: input, shape index: {}]
  %s1 = inlined_call_operand.hbm [shape: f32[2,4,16,16], index: 1, kind: input, shape index: {}]
  %s2 = inlined_call_operand.hbm [shape: f32[2,1,16,16], index: 2, kind: output, shape index: {}]
  %s3 = sld [smem:[#allocation0]]
  $region61: #{tpu_custom_call.1} parent=0
    _
  %s5 = ssub.s32 1, %s3
  %s6 = scalar_select 0, %s5, %s3
  $region1: #{tpu_custom_call.1} parent=0
    #allocation6 [shape = 'u8[512]{0}', space=smem, size = 0x200, scoped, tag = 'input window, operand 0, single buffered']
    #allocation7 [shape = 's32[2]{0}', space=sflag, size = 0x8, scoped, tag = 'scoped memory for tpu_custom_call.1']
    #allocation8 [shape = 's32[2]{0}', space=sflag, size = 0x8, scoped, tag = 'scoped memory for tpu_custom_call.1']
    #allocation9 [shape = 's32[2]{0}', space=sflag, size = 0x8, scoped, tag = 'scoped memory for tpu_custom_call.1']
    #allocation10 [shape = 'u8[65536]{0}', space=vmem, size = 0x10000, scoped, tag = 'input window, operand 1']
    #allocation11 [shape = 'u8[16384]{0}', space=vmem, size = 0x4000, scoped, tag = 'output window, operand 0']
    %7 = vsyncpa [#allocation9], 0
    %8 = vsyncpa [#allocation7], 0
    %s9 = scalar_lea.sflag [#allocation7], 1
    %10 = vsyncpa %s9, 0
    %11 = vsyncpa [#allocation8], 0
    %s12 = scalar_lea.sflag [#allocation8], 1
    %13 = vsyncpa %s12, 0
    loop: start=0, step=1, limit=4
    $region2: #{tpu_custom_call.1} parent=1 // loop_pre_header
      _
    $region3: #{tpu_custom_call.1} parent=1 // loop_header
      %s15 = sphi 0, %s19
      %p16 = scmp.ge.s32.totalorder %s15, 4
      %s22 = sphi 0, %s34
      %s23 = sphi 0, %s30
      %s24 = sphi 0, %s22
      %s25 = sphi 0, %s23
      %s26 = sphi 0, %s24
      %s27 = sphi 0, %s25
      %s35 = sphi 0, %s35
      %s37 = sphi 0, %s35
      %s38 = sphi 0, %s37
      %s52 = sphi 0, %s38
      %s60 = sphi 0, %s62
      %s63 = sphi 0, %s60
      %s64 = sphi 0, %s63
      %s80 = sphi 0, %s64
      %s86 = sphi 0, %s88
      %s89 = sphi 0, %s86
      %s90 = sphi 0, %s89
      %s106 = sphi 0, %s90
    $region4: #{tpu_custom_call.1} parent=1 // loop_header_branch
      %18 = sbr.rel (%p16) target = $region8
    $region5: #{tpu_custom_call.1} parent=1 // loop_body
      %s20 = ssub.s32 %s15, 1
      %s21 = ssub.s32 %s15, 2
      %s28 = sadd.s32 1, %s23
      %p29 = scmp.ge.s32.totalorder %s28, 1
      %s30 = scalar_select %p29, 0, %s28
      %s31 = sadd.s32 1, %s22
      %s32 = scalar_select %p29, %s31, %s22
      %p33 = scmp.ge.s32.totalorder %s32, 2
      %s34 = scalar_select %p33, 0, %s32
      %s36 = sadd.s32 %s35, 1
      %p39 = scmp.eq.s32.totalorder %s15, 1
      %p40 = scmp.ne.s32.totalorder %s35, %s37
      %p41 = scmp.eq.s32.totalorder %s15, 0
      %p42 = por %p40, %p41
      %p43 = scmp.ne.s32.totalorder %s35, %s37
      %p44 = scmp.eq.s32.totalorder %s20, 1
      %p45 = por %p43, %p44
      %p46 = scmp.ne.s32.totalorder %s37, %s38
      %p47 = scmp.eq.s32.totalorder %s20, 0
      %p48 = por %p46, %p47
      %p49 = scmp.ne.s32.totalorder %s37, %s38
      %p50 = scmp.eq.s32.totalorder %s21, 1
      %p51 = por %p49, %p50
      %p53 = scmp.ne.s32.totalorder %s38, %s52
      %p54 = scmp.eq.s32.totalorder %s21, 0
      %p55 = por %p53, %p54
      %s56 = ssub.s32 %s22, %s34
      %s57 = ssub.s32 %s23, %s30
      %s58 = sor.u32 %s56, %s57
      %p59 = scmp.eq.s32.totalorder %s58, 0
      %s61 = sadd.s32 %s60, 1
      %s62 = scalar_select %p59, %s60, %s61
      %p65 = pneg %p59
      %p66 = scmp.eq.s32.totalorder %s15, 1
      %p67 = por %p65, %p66
      %p68 = scmp.ne.s32.totalorder %s60, %s63
      %p69 = scmp.eq.s32.totalorder %s15, 0
      %p70 = por %p68, %p69
      %p71 = scmp.ne.s32.totalorder %s60, %s63
      %p72 = scmp.eq.s32.totalorder %s20, 1
      %p73 = por %p71, %p72
      %p74 = scmp.ne.s32.totalorder %s63, %s64
      %p75 = scmp.eq.s32.totalorder %s20, 0
      %p76 = por %p74, %p75
      %p77 = scmp.ne.s32.totalorder %s63, %s64
      %p78 = scmp.eq.s32.totalorder %s21, 1
      %p79 = por %p77, %p78
      %p81 = scmp.ne.s32.totalorder %s64, %s80
      %p82 = scmp.eq.s32.totalorder %s21, 0
      %p83 = por %p81, %p82
      %s84 = ssub.s32 %s22, %s34
      %p85 = scmp.eq.s32.totalorder %s84, 0
      %s87 = sadd.s32 %s86, 1
      %s88 = scalar_select %p85, %s86, %s87
      %p91 = pneg %p85
      %p92 = scmp.eq.s32.totalorder %s15, 1
      %p93 = por %p91, %p92
      %p94 = scmp.ne.s32.totalorder %s86, %s89
      %p95 = scmp.eq.s32.totalorder %s15, 0
      %p96 = por %p94, %p95
      %p97 = scmp.ne.s32.totalorder %s86, %s89
      %p98 = scmp.eq.s32.totalorder %s20, 1
      %p99 = por %p97, %p98
      %p100 = scmp.ne.s32.totalorder %s89, %s90
      %p101 = scmp.eq.s32.totalorder %s20, 0
      %p102 = por %p100, %p101
      %p103 = scmp.ne.s32.totalorder %s89, %s90
      %p104 = scmp.eq.s32.totalorder %s21, 1
      %p105 = por %p103, %p104
      %p107 = scmp.ne.s32.totalorder %s90, %s106
      %p108 = scmp.eq.s32.totalorder %s21, 0
      %p109 = por %p107, %p108
      %p110 = scmp.le.s32.totalorder 1, %s15
      %p111 = scmp.lt.s32.totalorder %s15, 3
      %p112 = pnand %p110, %p111
      %p113 = pneg %p112
      // Predicated region
      $region9: #{tpu_custom_call.1} parent=5 // pred_check
        _
      $region10: #{tpu_custom_call.1} parent=5 // pred_check_branch
        %115 = sbr.rel (%p112) target = $region12
      $region11: #{tpu_custom_call.1} parent=5 // pred_region
        %s116 = ssub.s32 %s15, 1
        // Predicated region
        $region13: #{tpu_custom_call.1} parent=11 // pred_check
          %p117 = pneg %p48
        $region14: #{tpu_custom_call.1} parent=11 // pred_check_branch
          %119 = sbr.rel (%p117) target = $region16
        $region15: #{tpu_custom_call.1} parent=11 // pred_region
          %s121 = ssub.s32 16, 16
          %122 = vsyncadd [#allocation9], %s121
          %125 = dma.hbm_to_smem %s0, 16, [#allocation6], [#allocation9]
        $region16: #{tpu_custom_call.1} parent=11 // pred_fallthru
          _
      $region12: #{tpu_custom_call.1} parent=5 // pred_fallthru
        _
      %p126 = scmp.lt.s32.totalorder %s15, 2
      // Predicated region
      $region17: #{tpu_custom_call.1} parent=5 // pred_check
        %p127 = pneg %p126
      $region18: #{tpu_custom_call.1} parent=5 // pred_check_branch
        %129 = sbr.rel (%p127) target = $region20
      $region19: #{tpu_custom_call.1} parent=5 // pred_region
        // Predicated region
        $region21: #{tpu_custom_call.1} parent=19 // pred_check
          %p130 = pneg %p70
        $region22: #{tpu_custom_call.1} parent=19 // pred_check_branch
          %132 = sbr.rel (%p130) target = $region24
        $region23: #{tpu_custom_call.1} parent=19 // pred_region
          %s133 = sand.u32 %s60, 1
          %s134 = scalar_lea.sflag [#allocation7], %s133
          %s135 = sand.u32 %s60, 1
          %s136 = smul.addr %s135, 64
          %s137 = scalar_lea.vmem [#allocation10], %s136
          %s138 = smul.u32 4, %s23
          %s140 = ssub.s32 1024, 1024
          %141 = vsyncadd %s134, %s140
          %s142 = smul.addr %s138, 2
          %s143 = smul.addr %s22, 8
          %s144 = sadd.s32 %s142, %s143
          %s145 = smul.addr %s144, 128
          %s146 = scalar_lea.hbm %s1, %s145
          %s147 = sshll.u32 %s137, 4
          %s148 = int_to_ptr.vmem [resolvable:$true] %s147
          %153 = dma.hbm_to_vmem [thread:$0]  %s146, 1024, %s148, %s134, 128, 128, 8
        $region24: #{tpu_custom_call.1} parent=19 // pred_fallthru
          _
      $region20: #{tpu_custom_call.1} parent=5 // pred_fallthru
        _
      %p154 = scmp.le.s32.totalorder 1, %s15
      %p155 = scmp.lt.s32.totalorder %s15, 3
      %p156 = pnand %p154, %p155
      %p157 = pneg %p156
      // Predicated region
      $region25: #{tpu_custom_call.1} parent=5 // pred_check
        _
      $region26: #{tpu_custom_call.1} parent=5 // pred_check_branch
        %159 = sbr.rel (%p156) target = $region28
      $region27: #{tpu_custom_call.1} parent=5 // pred_region
        %s160 = ssub.s32 %s15, 1
        // Predicated region
        $region29: #{tpu_custom_call.1} parent=27 // pred_check
          %p161 = pneg %p48
        $region30: #{tpu_custom_call.1} parent=27 // pred_check_branch
          %163 = sbr.rel (%p161) target = $region32
        $region31: #{tpu_custom_call.1} parent=27 // pred_region
          %164 = dma.done [#allocation9], 16
        $region32: #{tpu_custom_call.1} parent=27 // pred_fallthru
          _
        %s165 = sand.u32 %s63, 1
        %s166 = scalar_lea.sflag [#allocation7], %s165
        %s167 = sand.u32 %s63, 1
        %s168 = smul.addr %s167, 64
        %s169 = scalar_lea.vmem [#allocation10], %s168
        // Predicated region
        $region33: #{tpu_custom_call.1} parent=27 // pred_check
          %p170 = pneg %p76
        $region34: #{tpu_custom_call.1} parent=27 // pred_check_branch
          %172 = sbr.rel (%p170) target = $region36
        $region35: #{tpu_custom_call.1} parent=27 // pred_region
          %173 = dma.done %s166, 1024
        $region36: #{tpu_custom_call.1} parent=27 // pred_fallthru
          _
        %174 = sfence
        %p175 = pneg %p48
        %p176 = pneg %p45
        %s177 = sand.u32 %s63, 1
        %s178 = scalar_lea.sflag [#allocation7], %s177
        %s179 = sand.u32 %s63, 1
        %s180 = smul.addr %s179, 64
        %s181 = scalar_lea.vmem [#allocation10], %s180
        %p182 = pneg %p76
        %p183 = pneg %p73
        %p184 = pneg %p102
        %p185 = pneg %p99
        %s186 = sand.u32 %s89, 1
        %s187 = scalar_lea.sflag [#allocation8], %s186
        %s188 = sand.u32 %s89, 1
        %s189 = smul.addr %s188, 16
        %s190 = scalar_lea.vmem [#allocation11], %s189
        %s191 = smul.u32 4, %s25
        %v192 = vld [vmem:[%s169] sm:$0xff]
        %v193 = vld [vmem:[%s169 + $0x8] sm:$0xff]
        %v194 = vld [vmem:[%s169 + $0x10] sm:$0xff]
        %v195 = vld [vmem:[%s169 + $0x18] sm:$0xff]
        %v196 = vld [vmem:[%s169 + $0x20] sm:$0xff]
        %v197 = vld [vmem:[%s169 + $0x28] sm:$0xff]
        %v198 = vld [vmem:[%s169 + $0x30] sm:$0xff]
        %v199 = vld [vmem:[%s169 + $0x38] sm:$0xff]
        %vm200 = vcmask 130048
        %v201 = vsel %vm200, %v192, 0.0
        %v202 = vsel %vm200, %v194, 0.0
        %v203 = vadd.f32 %v201, %v202
        %v204 = vsel %vm200, %v196, 0.0
        %v205 = vadd.f32 %v203, %v204
        %v206 = vsel %vm200, %v198, 0.0
        %v207 = vadd.f32 %v205, %v206
        %v208 = vsel %vm200, %v193, 0.0
        %v209 = vsel %vm200, %v195, 0.0
        %v210 = vadd.f32 %v208, %v209
        %v211 = vsel %vm200, %v197, 0.0
        %v212 = vadd.f32 %v210, %v211
        %v213 = vsel %vm200, %v199, 0.0
        %v214 = vadd.f32 %v212, %v213
        %v215 = vsel %vm200, %v192, -inf
        %v216 = vsel %vm200, %v194, -inf
        %v217 = vsel %vm200, %v196, -inf
        %v218 = vmax.f32 %v215, %v217
        %v219 = vsel %vm200, %v198, -inf
        %v220 = vmax.f32 %v216, %v219
        %v221 = vmax.f32 %v218, %v220
        %v222 = vsel %vm200, %v193, -inf
        %v223 = vsel %vm200, %v195, -inf
        %v224 = vsel %vm200, %v197, -inf
        %v225 = vmax.f32 %v222, %v224
        %v226 = vsel %vm200, %v199, -inf
        %v227 = vmax.f32 %v223, %v226
        %v228 = vmax.f32 %v225, %v227
        %p229 = scmp.eq.s32.totalorder %s25, 0
        // Predicated region
        $region37: #{tpu_custom_call.1} parent=27 // pred_check
          %p230 = pneg %p229
        $region38: #{tpu_custom_call.1} parent=27 // pred_check_branch
          %232 = sbr.rel (%p230) target = $region40
        $region39: #{tpu_custom_call.1} parent=27 // pred_region
          %233 = vst.msk [vmem:[#allocation2] sm:$0xff] %vm200, %v207
          %234 = vst.msk [vmem:[#allocation2 + $0x8] sm:$0xff] %vm200, %v214
          %235 = vst.msk [vmem:[#allocation3] sm:$0xff] %vm200, %v221
          %236 = vst.msk [vmem:[#allocation3 + $0x8] sm:$0xff] %vm200, %v228
          %vm237 = vcmask 174080
          %238 = vst.msk [vmem:[#allocation4] sm:$0x7] %vm237, 0.0
          %239 = vst.msk [vmem:[#allocation4 + $0x18] sm:$0x7] %vm237, 0.0
          %240 = vst.msk [vmem:[#allocation4 + $0x13] sm:$0x7] %vm237, 0.0
          %241 = vst.msk [vmem:[#allocation4 + $0x2b] sm:$0x7] %vm237, 0.0
          %vm242 = vcmask 23552
          %243 = vst.msk [vmem:[#allocation4] sm:$0xff] %vm242, 0.0
          %244 = vst.msk [vmem:[#allocation4 + $0x8] sm:$0xff] %vm242, 0.0
          %vm245 = vcmask 21504
          %246 = vst.msk [vmem:[#allocation4 + $0x10] sm:$0x3f] %vm245, 0.0
          %247 = vst.msk [vmem:[#allocation4 + $0x18] sm:$0xff] %vm242, 0.0
          %248 = vst.msk [vmem:[#allocation4 + $0x20] sm:$0xff] %vm242, 0.0
          %249 = vst.msk [vmem:[#allocation4 + $0x28] sm:$0x3f] %vm245, 0.0
          %vm250 = vcmask 179352
          %251 = vst.msk [vmem:[#allocation4] sm:$0xff] %vm250, 0.0
          %252 = vst.msk [vmem:[#allocation4 + $0x8] sm:$0xff] %vm250, 0.0
          %vm253 = vcmask 177304
          %254 = vst.msk [vmem:[#allocation4 + $0x10] sm:$0x3f] %vm253, 0.0
          %255 = vst.msk [vmem:[#allocation4 + $0x18] sm:$0xff] %vm250, 0.0
          %256 = vst.msk [vmem:[#allocation4 + $0x20] sm:$0xff] %vm250, 0.0
          %257 = vst.msk [vmem:[#allocation4 + $0x28] sm:$0x3f] %vm253, 0.0
        $region40: #{tpu_custom_call.1} parent=27 // pred_fallthru
          _
        %p258 = scmp.gt.s32.totalorder %s25, 0
        // Predicated region
        $region41: #{tpu_custom_call.1} parent=27 // pred_check
          %p259 = pneg %p258
        $region42: #{tpu_custom_call.1} parent=27 // pred_check_branch
          %261 = sbr.rel (%p259) target = $region44
        $region43: #{tpu_custom_call.1} parent=27 // pred_region
          %v262 = vld [vmem:[#allocation2] sm:$0xff]
          %v263 = vld [vmem:[#allocation2 + $0x8] sm:$0xff]
          %v264 = vadd.f32 %v262, %v207
          %v265 = vadd.f32 %v263, %v214
          %266 = vst.msk [vmem:[#allocation2] sm:$0xff] %vm200, %v264
          %267 = vst.msk [vmem:[#allocation2 + $0x8] sm:$0xff] %vm200, %v265
          %v268 = vld [vmem:[#allocation3] sm:$0xff]
          %v269 = vld [vmem:[#allocation3 + $0x8] sm:$0xff]
          %v270 = vmax.f32 %v268, %v221
          %v271 = vmax.f32 %v269, %v228
          %272 = vst.msk [vmem:[#allocation3] sm:$0xff] %vm200, %v270
          %273 = vst.msk [vmem:[#allocation3 + $0x8] sm:$0xff] %vm200, %v271
        $region44: #{tpu_custom_call.1} parent=27 // pred_fallthru
          _
        // Predicated region
        $region45: #{tpu_custom_call.1} parent=27 // pred_check
          %p274 = pneg %p229
        $region46: #{tpu_custom_call.1} parent=27 // pred_check_branch
          %276 = sbr.rel (%p274) target = $region48
        $region47: #{tpu_custom_call.1} parent=27 // pred_region
          %v277 = vld [vmem:[#allocation2] sm:$0xff]
          %v278 = vld [vmem:[#allocation2 + $0x8] sm:$0xff]
          %281 = vrot.lane.b32.xlu0 %v277, 3
          %v282 = vpop.permute.xlu0 %281
          %283 = vrot.lane.b32.xlu0 %v278, 3
          %v284 = vpop.permute.xlu0 %283
          %vm287 = vcmask 154648
          %288 = vst.msk [vmem:[#allocation4 + $0x3] sm:$0xff] %vm287, %v282
          %289 = vst.msk [vmem:[#allocation4 + $0xb] sm:$0xff] %vm287, %v284
          %v290 = vld [vmem:[#allocation3] sm:$0xff]
          %v291 = vld [vmem:[#allocation3 + $0x8] sm:$0xff]
          %294 = vrot.lane.b32.xlu0 %v290, 3
          %v295 = vpop.permute.xlu0 %294
          %296 = vrot.lane.b32.xlu0 %v291, 3
          %v297 = vpop.permute.xlu0 %296
          %s300 = scalar_lea.vmem [#allocation4], 24
          %301 = vst.msk [vmem:[%s300 + $0x3] sm:$0xff] %vm287, %v295
          %302 = vst.msk [vmem:[%s300 + $0xb] sm:$0xff] %vm287, %v297
          %v303 = vld [vmem:[#allocation4] sm:$0xff]
          %v304 = vld [vmem:[#allocation4 + $0x8] sm:$0xff]
          %v305 = vld [vmem:[#allocation4 + $0x10] sm:$0x3f]
          %306 = vst.msk [vmem:[#allocation5] sm:$0xff] %vm200, %v303
          %307 = vst.msk [vmem:[#allocation5 + $0x8] sm:$0xff] %vm200, %v304
          %vm308 = vcmask 128000
          %309 = vst.msk [vmem:[#allocation5 + $0x10] sm:$0x3f] %vm308, %v305
          %v310 = vld [vmem:[%s300] sm:$0xff]
          %v311 = vld [vmem:[%s300 + $0x8] sm:$0xff]
          %v312 = vld [vmem:[%s300 + $0x10] sm:$0x3f]
          %s313 = scalar_lea.vmem [#allocation5], 24
          %314 = vst.msk [vmem:[%s313] sm:$0xff] %vm200, %v310
          %315 = vst.msk [vmem:[%s313 + $0x8] sm:$0xff] %vm200, %v311
          %316 = vst.msk [vmem:[%s313 + $0x10] sm:$0x3f] %vm308, %v312
          %s317 = sld [smem:[#allocation6]]
          %v318 = vld [vmem:[#allocation5] sm:$0xff]
          %v319 = vld [vmem:[#allocation5 + $0x8] sm:$0xff]
          %v320 = vstv %s317
          %v321 = vmul.f32 %v320, %v318
          %v322 = vmul.f32 %v320, %v319
          %v323 = vadd.f32 %v321, 0.0
          %v324 = vadd.f32 %v322, 0.0
          %s325 = sld [smem:[#allocation6 + $0x7]]
          %v326 = vld [vmem:[#allocation5 + $0x1] sm:$0xff]
          %v327 = vld [vmem:[#allocation5 + $0x9] sm:$0xff]
          %v328 = vstv %s325
          %v329 = vmul.f32 %v328, %v326
          %v330 = vmul.f32 %v328, %v327
          %v331 = vadd.f32 %v329, 0.0
          %v332 = vadd.f32 %v330, 0.0
          %s333 = sld [smem:[#allocation6 + $0xe]]
          %v334 = vld [vmem:[#allocation5 + $0x2] sm:$0xff]
          %v335 = vld [vmem:[#allocation5 + $0xa] sm:$0xff]
          %v336 = vstv %s333
          %v337 = vmul.f32 %v336, %v334
          %v338 = vmul.f32 %v336, %v335
          %v339 = vadd.f32 %v337, 0.0
          %v340 = vadd.f32 %v338, 0.0
          %s341 = sld [smem:[#allocation6 + $0x15]]
          %v342 = vld [vmem:[#allocation5 + $0x3] sm:$0xff]
          %v343 = vld [vmem:[#allocation5 + $0xb] sm:$0xff]
          %v344 = vstv %s341
          %v345 = vmul.f32 %v344, %v342
          %v346 = vmul.f32 %v344, %v343
          %v347 = vadd.f32 %v345, 0.0
          %v348 = vadd.f32 %v346, 0.0
          %s349 = sld [smem:[#allocation6 + $0x1c]]
          %v350 = vld [vmem:[#allocation5 + $0x4] sm:$0xff]
          %v351 = vld [vmem:[#allocation5 + $0xc] sm:$0xff]
          %v352 = vstv %s349
          %v353 = vmul.f32 %v352, %v350
          %v354 = vmul.f32 %v352, %v351
          %v355 = vadd.f32 %v353, 0.0
          %v356 = vadd.f32 %v354, 0.0
          %s357 = sld [smem:[#allocation6 + $0x23]]
          %v358 = vld [vmem:[#allocation5 + $0x5] sm:$0xff]
          %v359 = vld [vmem:[#allocation5 + $0xd] sm:$0xff]
          %v360 = vstv %s357
          %v361 = vmul.f32 %v360, %v358
          %v362 = vmul.f32 %v360, %v359
          %v363 = vadd.f32 %v361, 0.0
          %v364 = vadd.f32 %v362, 0.0
          %s365 = sld [smem:[#allocation6 + $0x2a]]
          %v366 = vld [vmem:[#allocation5 + $0x6] sm:$0xff]
          %v367 = vld [vmem:[#allocation5 + $0xe] sm:$0xff]
          %v368 = vstv %s365
          %v369 = vmul.f32 %v368, %v366
          %v370 = vmul.f32 %v368, %v367
          %v371 = vadd.f32 %v369, 0.0
          %v372 = vadd.f32 %v370, 0.0
          %s373 = sld [smem:[#allocation6 + $0x31]]
          %v374 = vld [vmem:[%s313] sm:$0xff]
          %v375 = vld [vmem:[%s313 + $0x8] sm:$0xff]
          %v376 = vstv %s373
          %v377 = vmul.f32 %v376, %v374
          %v378 = vmul.f32 %v376, %v375
          %v379 = vadd.f32 %v377, 0.0
          %v380 = vadd.f32 %v378, 0.0
          %s381 = sld [smem:[#allocation6 + $0x38]]
          %v382 = vld [vmem:[%s313 + $0x1] sm:$0xff]
          %v383 = vld [vmem:[%s313 + $0x9] sm:$0xff]
          %v384 = vstv %s381
          %v385 = vmul.f32 %v384, %v382
          %v386 = vmul.f32 %v384, %v383
          %v387 = vadd.f32 %v323, %v385
          %v388 = vadd.f32 %v324, %v386
          %s389 = sld [smem:[#allocation6 + $0x3f]]
          %v390 = vld [vmem:[%s313 + $0x2] sm:$0xff]
          %v391 = vld [vmem:[%s313 + $0xa] sm:$0xff]
          %v392 = vstv %s389
          %v393 = vmul.f32 %v392, %v390
          %v394 = vmul.f32 %v392, %v391
          %v395 = vadd.f32 %v331, %v393
          %v396 = vadd.f32 %v332, %v394
          %s397 = sld [smem:[#allocation6 + $0x46]]
          %v398 = vld [vmem:[%s313 + $0x3] sm:$0xff]
          %v399 = vld [vmem:[%s313 + $0xb] sm:$0xff]
          %v400 = vstv %s397
          %v401 = vmul.f32 %v400, %v398
          %v402 = vmul.f32 %v400, %v399
          %v403 = vadd.f32 %v339, %v401
          %v404 = vadd.f32 %v340, %v402
          %s405 = sld [smem:[#allocation6 + $0x4d]]
          %v406 = vld [vmem:[%s313 + $0x4] sm:$0xff]
          %v407 = vld [vmem:[%s313 + $0xc] sm:$0xff]
          %v408 = vstv %s405
          %v409 = vmul.f32 %v408, %v406
          %v410 = vmul.f32 %v408, %v407
          %v411 = vadd.f32 %v347, %v409
          %v412 = vadd.f32 %v348, %v410
          %s413 = sld [smem:[#allocation6 + $0x54]]
          %v414 = vld [vmem:[%s313 + $0x5] sm:$0xff]
          %v415 = vld [vmem:[%s313 + $0xd] sm:$0xff]
          %v416 = vstv %s413
          %v417 = vmul.f32 %v416, %v414
          %v418 = vmul.f32 %v416, %v415
          %v419 = vadd.f32 %v355, %v417
          %v420 = vadd.f32 %v356, %v418
          %s421 = sld [smem:[#allocation6 + $0x5b]]
          %v422 = vld [vmem:[%s313 + $0x6] sm:$0xff]
          %v423 = vld [vmem:[%s313 + $0xe] sm:$0xff]
          %v424 = vstv %s421
          %v425 = vmul.f32 %v424, %v422
          %v426 = vmul.f32 %v424, %v423
          %v427 = vadd.f32 %v363, %v425
          %v428 = vadd.f32 %v364, %v426
          %v429 = vld [vmem:[#allocation4] sm:$0xff]
          %v430 = vld [vmem:[#allocation4 + $0x8] sm:$0xff]
          %v431 = vld [vmem:[#allocation4 + $0x10] sm:$0x3f]
          %435 = vrot.lane.b32.xlu0 %v429, 127
          %v436 = vpop.permute.xlu0 %435
          %437 = vrot.lane.b32.xlu0 %v430, 127
          %v438 = vpop.permute.xlu0 %437
          %439 = vrot.lane.b32.xlu0 %v431, 127
          %v440 = vpop.permute.xlu0 %439
          %444 = vst.msk [vmem:[#allocation5] sm:$0xff] %vm200, %v436
          %445 = vst.msk [vmem:[#allocation5 + $0x8] sm:$0xff] %vm200, %v438
          %446 = vst.msk [vmem:[#allocation5 + $0x10] sm:$0x3f] %vm308, %v440
          %v447 = vld [vmem:[%s300] sm:$0xff]
          %v448 = vld [vmem:[%s300 + $0x8] sm:$0xff]
          %v449 = vld [vmem:[%s300 + $0x10] sm:$0x3f]
          %453 = vrot.lane.b32.xlu0 %v447, 127
          %v454 = vpop.permute.xlu0 %453
          %455 = vrot.lane.b32.xlu0 %v448, 127
          %v456 = vpop.permute.xlu0 %455
          %457 = vrot.lane.b32.xlu0 %v449, 127
          %v458 = vpop.permute.xlu0 %457
          %462 = vst.msk [vmem:[%s313] sm:$0xff] %vm200, %v454
          %463 = vst.msk [vmem:[%s313 + $0x8] sm:$0xff] %vm200, %v456
          %464 = vst.msk [vmem:[%s313 + $0x10] sm:$0x3f] %vm308, %v458
          %s465 = sld [smem:[#allocation6 + $0x1]]
          %v466 = vld [vmem:[#allocation5] sm:$0xff]
          %v467 = vld [vmem:[#allocation5 + $0x8] sm:$0xff]
          %v468 = vstv %s465
          %v469 = vmul.f32 %v468, %v466
          %v470 = vmul.f32 %v468, %v467
          %v471 = vadd.f32 %v371, %v469
          %v472 = vadd.f32 %v372, %v470
          %s473 = sld [smem:[#allocation6 + $0x8]]
          %v474 = vld [vmem:[#allocation5 + $0x1] sm:$0xff]
          %v475 = vld [vmem:[#allocation5 + $0x9] sm:$0xff]
          %v476 = vstv %s473
          %v477 = vmul.f32 %v476, %v474
          %v478 = vmul.f32 %v476, %v475
          %v479 = vadd.f32 %v379, %v477
          %v480 = vadd.f32 %v380, %v478
          %s481 = sld [smem:[#allocation6 + $0xf]]
          %v482 = vld [vmem:[#allocation5 + $0x2] sm:$0xff]
          %v483 = vld [vmem:[#allocation5 + $0xa] sm:$0xff]
          %v484 = vstv %s481
          %v485 = vmul.f32 %v484, %v482
          %v486 = vmul.f32 %v484, %v483
          %v487 = vadd.f32 %v387, %v485
          %v488 = vadd.f32 %v388, %v486
          %s489 = sld [smem:[#allocation6 + $0x16]]
          %v490 = vld [vmem:[#allocation5 + $0x3] sm:$0xff]
          %v491 = vld [vmem:[#allocation5 + $0xb] sm:$0xff]
          %v492 = vstv %s489
          %v493 = vmul.f32 %v492, %v490
          %v494 = vmul.f32 %v492, %v491
          %v495 = vadd.f32 %v395, %v493
          %v496 = vadd.f32 %v396, %v494
          %s497 = sld [smem:[#allocation6 + $0x1d]]
          %v498 = vld [vmem:[#allocation5 + $0x4] sm:$0xff]
          %v499 = vld [vmem:[#allocation5 + $0xc] sm:$0xff]
          %v500 = vstv %s497
          %v501 = vmul.f32 %v500, %v498
          %v502 = vmul.f32 %v500, %v499
          %v503 = vadd.f32 %v403, %v501
          %v504 = vadd.f32 %v404, %v502
          %s505 = sld [smem:[#allocation6 + $0x24]]
          %v506 = vld [vmem:[#allocation5 + $0x5] sm:$0xff]
          %v507 = vld [vmem:[#allocation5 + $0xd] sm:$0xff]
          %v508 = vstv %s505
          %v509 = vmul.f32 %v508, %v506
          %v510 = vmul.f32 %v508, %v507
          %v511 = vadd.f32 %v411, %v509
          %v512 = vadd.f32 %v412, %v510
          %s513 = sld [smem:[#allocation6 + $0x2b]]
          %v514 = vld [vmem:[#allocation5 + $0x6] sm:$0xff]
          %v515 = vld [vmem:[#allocation5 + $0xe] sm:$0xff]
          %v516 = vstv %s513
          %v517 = vmul.f32 %v516, %v514
          %v518 = vmul.f32 %v516, %v515
          %v519 = vadd.f32 %v419, %v517
          %v520 = vadd.f32 %v420, %v518
          %s521 = sld [smem:[#allocation6 + $0x32]]
          %v522 = vld [vmem:[%s313] sm:$0xff]
          %v523 = vld [vmem:[%s313 + $0x8] sm:$0xff]
          %v524 = vstv %s521
          %v525 = vmul.f32 %v524, %v522
          %v526 = vmul.f32 %v524, %v523
          %v527 = vadd.f32 %v427, %v525
          %v528 = vadd.f32 %v428, %v526
          %s529 = sld [smem:[#allocation6 + $0x39]]
          %v530 = vld [vmem:[%s313 + $0x1] sm:$0xff]
          %v531 = vld [vmem:[%s313 + $0x9] sm:$0xff]
          %v532 = vstv %s529
          %v533 = vmul.f32 %v532, %v530
          %v534 = vmul.f32 %v532, %v531
          %v535 = vadd.f32 %v471, %v533
          %v536 = vadd.f32 %v472, %v534
          %s537 = sld [smem:[#allocation6 + $0x40]]
          %v538 = vld [vmem:[%s313 + $0x2] sm:$0xff]
          %v539 = vld [vmem:[%s313 + $0xa] sm:$0xff]
          %v540 = vstv %s537
          %v541 = vmul.f32 %v540, %v538
          %v542 = vmul.f32 %v540, %v539
          %v543 = vadd.f32 %v479, %v541
          %v544 = vadd.f32 %v480, %v542
          %s545 = sld [smem:[#allocation6 + $0x47]]
          %v546 = vld [vmem:[%s313 + $0x3] sm:$0xff]
          %v547 = vld [vmem:[%s313 + $0xb] sm:$0xff]
          %v548 = vstv %s545
          %v549 = vmul.f32 %v548, %v546
          %v550 = vmul.f32 %v548, %v547
          %v551 = vadd.f32 %v487, %v549
          %v552 = vadd.f32 %v488, %v550
          %s553 = sld [smem:[#allocation6 + $0x4e]]
          %v554 = vld [vmem:[%s313 + $0x4] sm:$0xff]
          %v555 = vld [vmem:[%s313 + $0xc] sm:$0xff]
          %v556 = vstv %s553
          %v557 = vmul.f32 %v556, %v554
          %v558 = vmul.f32 %v556, %v555
          %v559 = vadd.f32 %v495, %v557
          %v560 = vadd.f32 %v496, %v558
          %s561 = sld [smem:[#allocation6 + $0x55]]
          %v562 = vld [vmem:[%s313 + $0x5] sm:$0xff]
          %v563 = vld [vmem:[%s313 + $0xd] sm:$0xff]
          %v564 = vstv %s561
          %v565 = vmul.f32 %v564, %v562
          %v566 = vmul.f32 %v564, %v563
          %v567 = vadd.f32 %v503, %v565
          %v568 = vadd.f32 %v504, %v566
          %s569 = sld [smem:[#allocation6 + $0x5c]]
          %v570 = vld [vmem:[%s313 + $0x6] sm:$0xff]
          %v571 = vld [vmem:[%s313 + $0xe] sm:$0xff]
          %v572 = vstv %s569
          %v573 = vmul.f32 %v572, %v570
          %v574 = vmul.f32 %v572, %v571
          %v575 = vadd.f32 %v511, %v573
          %v576 = vadd.f32 %v512, %v574
          %v577 = vld [vmem:[#allocation4] sm:$0xff]
          %v578 = vld [vmem:[#allocation4 + $0x8] sm:$0xff]
          %v579 = vld [vmem:[#allocation4 + $0x10] sm:$0x3f]
          %583 = vrot.lane.b32.xlu0 %v577, 126
          %v584 = vpop.permute.xlu0 %583
          %585 = vrot.lane.b32.xlu0 %v578, 126
          %v586 = vpop.permute.xlu0 %585
          %587 = vrot.lane.b32.xlu0 %v579, 126
          %v588 = vpop.permute.xlu0 %587
          %592 = vst.msk [vmem:[#allocation5] sm:$0xff] %vm200, %v584
          %593 = vst.msk [vmem:[#allocation5 + $0x8] sm:$0xff] %vm200, %v586
          %594 = vst.msk [vmem:[#allocation5 + $0x10] sm:$0x3f] %vm308, %v588
          %v595 = vld [vmem:[%s300] sm:$0xff]
          %v596 = vld [vmem:[%s300 + $0x8] sm:$0xff]
          %v597 = vld [vmem:[%s300 + $0x10] sm:$0x3f]
          %601 = vrot.lane.b32.xlu0 %v595, 126
          %v602 = vpop.permute.xlu0 %601
          %603 = vrot.lane.b32.xlu0 %v596, 126
          %v604 = vpop.permute.xlu0 %603
          %605 = vrot.lane.b32.xlu0 %v597, 126
          %v606 = vpop.permute.xlu0 %605
          %610 = vst.msk [vmem:[%s313] sm:$0xff] %vm200, %v602
          %611 = vst.msk [vmem:[%s313 + $0x8] sm:$0xff] %vm200, %v604
          %612 = vst.msk [vmem:[%s313 + $0x10] sm:$0x3f] %vm308, %v606
          %s613 = sld [smem:[#allocation6 + $0x2]]
          %v614 = vld [vmem:[#allocation5] sm:$0xff]
          %v615 = vld [vmem:[#allocation5 + $0x8] sm:$0xff]
          %v616 = vstv %s613
          %v617 = vmul.f32 %v616, %v614
          %v618 = vmul.f32 %v616, %v615
          %v619 = vadd.f32 %v519, %v617
          %v620 = vadd.f32 %v520, %v618
          %s621 = sld [smem:[#allocation6 + $0x9]]
          %v622 = vld [vmem:[#allocation5 + $0x1] sm:$0xff]
          %v623 = vld [vmem:[#allocation5 + $0x9] sm:$0xff]
          %v624 = vstv %s621
          %v625 = vmul.f32 %v624, %v622
          %v626 = vmul.f32 %v624, %v623
          %v627 = vadd.f32 %v527, %v625
          %v628 = vadd.f32 %v528, %v626
          %s629 = sld [smem:[#allocation6 + $0x10]]
          %v630 = vld [vmem:[#allocation5 + $0x2] sm:$0xff]
          %v631 = vld [vmem:[#allocation5 + $0xa] sm:$0xff]
          %v632 = vstv %s629
          %v633 = vmul.f32 %v632, %v630
          %v634 = vmul.f32 %v632, %v631
          %v635 = vadd.f32 %v535, %v633
          %v636 = vadd.f32 %v536, %v634
          %s637 = sld [smem:[#allocation6 + $0x17]]
          %v638 = vld [vmem:[#allocation5 + $0x3] sm:$0xff]
          %v639 = vld [vmem:[#allocation5 + $0xb] sm:$0xff]
          %v640 = vstv %s637
          %v641 = vmul.f32 %v640, %v638
          %v642 = vmul.f32 %v640, %v639
          %v643 = vadd.f32 %v543, %v641
          %v644 = vadd.f32 %v544, %v642
          %s645 = sld [smem:[#allocation6 + $0x1e]]
          %v646 = vld [vmem:[#allocation5 + $0x4] sm:$0xff]
          %v647 = vld [vmem:[#allocation5 + $0xc] sm:$0xff]
          %v648 = vstv %s645
          %v649 = vmul.f32 %v648, %v646
          %v650 = vmul.f32 %v648, %v647
          %v651 = vadd.f32 %v551, %v649
          %v652 = vadd.f32 %v552, %v650
          %s653 = sld [smem:[#allocation6 + $0x25]]
          %v654 = vld [vmem:[#allocation5 + $0x5] sm:$0xff]
          %v655 = vld [vmem:[#allocation5 + $0xd] sm:$0xff]
          %v656 = vstv %s653
          %v657 = vmul.f32 %v656, %v654
          %v658 = vmul.f32 %v656, %v655
          %v659 = vadd.f32 %v559, %v657
          %v660 = vadd.f32 %v560, %v658
          %s661 = sld [smem:[#allocation6 + $0x2c]]
          %v662 = vld [vmem:[#allocation5 + $0x6] sm:$0xff]
          %v663 = vld [vmem:[#allocation5 + $0xe] sm:$0xff]
          %v664 = vstv %s661
          %v665 = vmul.f32 %v664, %v662
          %v666 = vmul.f32 %v664, %v663
          %v667 = vadd.f32 %v567, %v665
          %v668 = vadd.f32 %v568, %v666
          %s669 = sld [smem:[#allocation6 + $0x33]]
          %v670 = vld [vmem:[%s313] sm:$0xff]
          %v671 = vld [vmem:[%s313 + $0x8] sm:$0xff]
          %v672 = vstv %s669
          %v673 = vmul.f32 %v672, %v670
          %v674 = vmul.f32 %v672, %v671
          %v675 = vadd.f32 %v575, %v673
          %v676 = vadd.f32 %v576, %v674
          %s677 = sld [smem:[#allocation6 + $0x3a]]
          %v678 = vld [vmem:[%s313 + $0x1] sm:$0xff]
          %v679 = vld [vmem:[%s313 + $0x9] sm:$0xff]
          %v680 = vstv %s677
          %v681 = vmul.f32 %v680, %v678
          %v682 = vmul.f32 %v680, %v679
          %v683 = vadd.f32 %v619, %v681
          %v684 = vadd.f32 %v620, %v682
          %s685 = sld [smem:[#allocation6 + $0x41]]
          %v686 = vld [vmem:[%s313 + $0x2] sm:$0xff]
          %v687 = vld [vmem:[%s313 + $0xa] sm:$0xff]
          %v688 = vstv %s685
          %v689 = vmul.f32 %v688, %v686
          %v690 = vmul.f32 %v688, %v687
          %v691 = vadd.f32 %v627, %v689
          %v692 = vadd.f32 %v628, %v690
          %s693 = sld [smem:[#allocation6 + $0x48]]
          %v694 = vld [vmem:[%s313 + $0x3] sm:$0xff]
          %v695 = vld [vmem:[%s313 + $0xb] sm:$0xff]
          %v696 = vstv %s693
          %v697 = vmul.f32 %v696, %v694
          %v698 = vmul.f32 %v696, %v695
          %v699 = vadd.f32 %v635, %v697
          %v700 = vadd.f32 %v636, %v698
          %s701 = sld [smem:[#allocation6 + $0x4f]]
          %v702 = vld [vmem:[%s313 + $0x4] sm:$0xff]
          %v703 = vld [vmem:[%s313 + $0xc] sm:$0xff]
          %v704 = vstv %s701
          %v705 = vmul.f32 %v704, %v702
          %v706 = vmul.f32 %v704, %v703
          %v707 = vadd.f32 %v643, %v705
          %v708 = vadd.f32 %v644, %v706
          %s709 = sld [smem:[#allocation6 + $0x56]]
          %v710 = vld [vmem:[%s313 + $0x5] sm:$0xff]
          %v711 = vld [vmem:[%s313 + $0xd] sm:$0xff]
          %v712 = vstv %s709
          %v713 = vmul.f32 %v712, %v710
          %v714 = vmul.f32 %v712, %v711
          %v715 = vadd.f32 %v651, %v713
          %v716 = vadd.f32 %v652, %v714
          %s717 = sld [smem:[#allocation6 + $0x5d]]
          %v718 = vld [vmem:[%s313 + $0x6] sm:$0xff]
          %v719 = vld [vmem:[%s313 + $0xe] sm:$0xff]
          %v720 = vstv %s717
          %v721 = vmul.f32 %v720, %v718
          %v722 = vmul.f32 %v720, %v719
          %v723 = vadd.f32 %v659, %v721
          %v724 = vadd.f32 %v660, %v722
          %v725 = vld [vmem:[#allocation4] sm:$0xff]
          %v726 = vld [vmem:[#allocation4 + $0x8] sm:$0xff]
          %v727 = vld [vmem:[#allocation4 + $0x10] sm:$0x3f]
          %731 = vrot.lane.b32.xlu0 %v725, 125
          %v732 = vpop.permute.xlu0 %731
          %733 = vrot.lane.b32.xlu0 %v726, 125
          %v734 = vpop.permute.xlu0 %733
          %735 = vrot.lane.b32.xlu0 %v727, 125
          %v736 = vpop.permute.xlu0 %735
          %740 = vst.msk [vmem:[#allocation5] sm:$0xff] %vm200, %v732
          %741 = vst.msk [vmem:[#allocation5 + $0x8] sm:$0xff] %vm200, %v734
          %742 = vst.msk [vmem:[#allocation5 + $0x10] sm:$0x3f] %vm308, %v736
          %v743 = vld [vmem:[%s300] sm:$0xff]
          %v744 = vld [vmem:[%s300 + $0x8] sm:$0xff]
          %v745 = vld [vmem:[%s300 + $0x10] sm:$0x3f]
          %749 = vrot.lane.b32.xlu0 %v743, 125
          %v750 = vpop.permute.xlu0 %749
          %751 = vrot.lane.b32.xlu0 %v744, 125
          %v752 = vpop.permute.xlu0 %751
          %753 = vrot.lane.b32.xlu0 %v745, 125
          %v754 = vpop.permute.xlu0 %753
          %758 = vst.msk [vmem:[%s313] sm:$0xff] %vm200, %v750
          %759 = vst.msk [vmem:[%s313 + $0x8] sm:$0xff] %vm200, %v752
          %760 = vst.msk [vmem:[%s313 + $0x10] sm:$0x3f] %vm308, %v754
          %s761 = sld [smem:[#allocation6 + $0x3]]
          %v762 = vld [vmem:[#allocation5] sm:$0xff]
          %v763 = vld [vmem:[#allocation5 + $0x8] sm:$0xff]
          %v764 = vstv %s761
          %v765 = vmul.f32 %v764, %v762
          %v766 = vmul.f32 %v764, %v763
          %v767 = vadd.f32 %v667, %v765
          %v768 = vadd.f32 %v668, %v766
          %s769 = sld [smem:[#allocation6 + $0xa]]
          %v770 = vld [vmem:[#allocation5 + $0x1] sm:$0xff]
          %v771 = vld [vmem:[#allocation5 + $0x9] sm:$0xff]
          %v772 = vstv %s769
          %v773 = vmul.f32 %v772, %v770
          %v774 = vmul.f32 %v772, %v771
          %v775 = vadd.f32 %v675, %v773
          %v776 = vadd.f32 %v676, %v774
          %s777 = sld [smem:[#allocation6 + $0x11]]
          %v778 = vld [vmem:[#allocation5 + $0x2] sm:$0xff]
          %v779 = vld [vmem:[#allocation5 + $0xa] sm:$0xff]
          %v780 = vstv %s777
          %v781 = vmul.f32 %v780, %v778
          %v782 = vmul.f32 %v780, %v779
          %v783 = vadd.f32 %v683, %v781
          %v784 = vadd.f32 %v684, %v782
          %s785 = sld [smem:[#allocation6 + $0x18]]
          %v786 = vld [vmem:[#allocation5 + $0x3] sm:$0xff]
          %v787 = vld [vmem:[#allocation5 + $0xb] sm:$0xff]
          %v788 = vstv %s785
          %v789 = vmul.f32 %v788, %v786
          %v790 = vmul.f32 %v788, %v787
          %v791 = vadd.f32 %v691, %v789
          %v792 = vadd.f32 %v692, %v790
          %s793 = sld [smem:[#allocation6 + $0x1f]]
          %v794 = vld [vmem:[#allocation5 + $0x4] sm:$0xff]
          %v795 = vld [vmem:[#allocation5 + $0xc] sm:$0xff]
          %v796 = vstv %s793
          %v797 = vmul.f32 %v796, %v794
          %v798 = vmul.f32 %v796, %v795
          %v799 = vadd.f32 %v699, %v797
          %v800 = vadd.f32 %v700, %v798
          %s801 = sld [smem:[#allocation6 + $0x26]]
          %v802 = vld [vmem:[#allocation5 + $0x5] sm:$0xff]
          %v803 = vld [vmem:[#allocation5 + $0xd] sm:$0xff]
          %v804 = vstv %s801
          %v805 = vmul.f32 %v804, %v802
          %v806 = vmul.f32 %v804, %v803
          %v807 = vadd.f32 %v707, %v805
          %v808 = vadd.f32 %v708, %v806
          %s809 = sld [smem:[#allocation6 + $0x2d]]
          %v810 = vld [vmem:[#allocation5 + $0x6] sm:$0xff]
          %v811 = vld [vmem:[#allocation5 + $0xe] sm:$0xff]
          %v812 = vstv %s809
          %v813 = vmul.f32 %v812, %v810
          %v814 = vmul.f32 %v812, %v811
          %v815 = vadd.f32 %v715, %v813
          %v816 = vadd.f32 %v716, %v814
          %s817 = sld [smem:[#allocation6 + $0x34]]
          %v818 = vld [vmem:[%s313] sm:$0xff]
          %v819 = vld [vmem:[%s313 + $0x8] sm:$0xff]
          %v820 = vstv %s817
          %v821 = vmul.f32 %v820, %v818
          %v822 = vmul.f32 %v820, %v819
          %v823 = vadd.f32 %v723, %v821
          %v824 = vadd.f32 %v724, %v822
          %s825 = sld [smem:[#allocation6 + $0x3b]]
          %v826 = vld [vmem:[%s313 + $0x1] sm:$0xff]
          %v827 = vld [vmem:[%s313 + $0x9] sm:$0xff]
          %v828 = vstv %s825
          %v829 = vmul.f32 %v828, %v826
          %v830 = vmul.f32 %v828, %v827
          %v831 = vadd.f32 %v767, %v829
          %v832 = vadd.f32 %v768, %v830
          %s833 = sld [smem:[#allocation6 + $0x42]]
          %v834 = vld [vmem:[%s313 + $0x2] sm:$0xff]
          %v835 = vld [vmem:[%s313 + $0xa] sm:$0xff]
          %v836 = vstv %s833
          %v837 = vmul.f32 %v836, %v834
          %v838 = vmul.f32 %v836, %v835
          %v839 = vadd.f32 %v775, %v837
          %v840 = vadd.f32 %v776, %v838
          %s841 = sld [smem:[#allocation6 + $0x49]]
          %v842 = vld [vmem:[%s313 + $0x3] sm:$0xff]
          %v843 = vld [vmem:[%s313 + $0xb] sm:$0xff]
          %v844 = vstv %s841
          %v845 = vmul.f32 %v844, %v842
          %v846 = vmul.f32 %v844, %v843
          %v847 = vadd.f32 %v783, %v845
          %v848 = vadd.f32 %v784, %v846
          %s849 = sld [smem:[#allocation6 + $0x50]]
          %v850 = vld [vmem:[%s313 + $0x4] sm:$0xff]
          %v851 = vld [vmem:[%s313 + $0xc] sm:$0xff]
          %v852 = vstv %s849
          %v853 = vmul.f32 %v852, %v850
          %v854 = vmul.f32 %v852, %v851
          %v855 = vadd.f32 %v791, %v853
          %v856 = vadd.f32 %v792, %v854
          %s857 = sld [smem:[#allocation6 + $0x57]]
          %v858 = vld [vmem:[%s313 + $0x5] sm:$0xff]
          %v859 = vld [vmem:[%s313 + $0xd] sm:$0xff]
          %v860 = vstv %s857
          %v861 = vmul.f32 %v860, %v858
          %v862 = vmul.f32 %v860, %v859
          %v863 = vadd.f32 %v799, %v861
          %v864 = vadd.f32 %v800, %v862
          %s865 = sld [smem:[#allocation6 + $0x5e]]
          %v866 = vld [vmem:[%s313 + $0x6] sm:$0xff]
          %v867 = vld [vmem:[%s313 + $0xe] sm:$0xff]
          %v868 = vstv %s865
          %v869 = vmul.f32 %v868, %v866
          %v870 = vmul.f32 %v868, %v867
          %v871 = vadd.f32 %v807, %v869
          %v872 = vadd.f32 %v808, %v870
          %v873 = vld [vmem:[#allocation4] sm:$0xff]
          %v874 = vld [vmem:[#allocation4 + $0x8] sm:$0xff]
          %v875 = vld [vmem:[#allocation4 + $0x10] sm:$0x3f]
          %879 = vrot.lane.b32.xlu0 %v873, 124
          %v880 = vpop.permute.xlu0 %879
          %881 = vrot.lane.b32.xlu0 %v874, 124
          %v882 = vpop.permute.xlu0 %881
          %883 = vrot.lane.b32.xlu0 %v875, 124
          %v884 = vpop.permute.xlu0 %883
          %888 = vst.msk [vmem:[#allocation5] sm:$0xff] %vm200, %v880
          %889 = vst.msk [vmem:[#allocation5 + $0x8] sm:$0xff] %vm200, %v882
          %890 = vst.msk [vmem:[#allocation5 + $0x10] sm:$0x3f] %vm308, %v884
          %v891 = vld [vmem:[%s300] sm:$0xff]
          %v892 = vld [vmem:[%s300 + $0x8] sm:$0xff]
          %v893 = vld [vmem:[%s300 + $0x10] sm:$0x3f]
          %897 = vrot.lane.b32.xlu0 %v891, 124
          %v898 = vpop.permute.xlu0 %897
          %899 = vrot.lane.b32.xlu0 %v892, 124
          %v900 = vpop.permute.xlu0 %899
          %901 = vrot.lane.b32.xlu0 %v893, 124
          %v902 = vpop.permute.xlu0 %901
          %906 = vst.msk [vmem:[%s313] sm:$0xff] %vm200, %v898
          %907 = vst.msk [vmem:[%s313 + $0x8] sm:$0xff] %vm200, %v900
          %908 = vst.msk [vmem:[%s313 + $0x10] sm:$0x3f] %vm308, %v902
          %s909 = sld [smem:[#allocation6 + $0x4]]
          %v910 = vld [vmem:[#allocation5] sm:$0xff]
          %v911 = vld [vmem:[#allocation5 + $0x8] sm:$0xff]
          %v912 = vstv %s909
          %v913 = vmul.f32 %v912, %v910
          %v914 = vmul.f32 %v912, %v911
          %v915 = vadd.f32 %v815, %v913
          %v916 = vadd.f32 %v816, %v914
          %s917 = sld [smem:[#allocation6 + $0xb]]
          %v918 = vld [vmem:[#allocation5 + $0x1] sm:$0xff]
          %v919 = vld [vmem:[#allocation5 + $0x9] sm:$0xff]
          %v920 = vstv %s917
          %v921 = vmul.f32 %v920, %v918
          %v922 = vmul.f32 %v920, %v919
          %v923 = vadd.f32 %v823, %v921
          %v924 = vadd.f32 %v824, %v922
          %s925 = sld [smem:[#allocation6 + $0x12]]
          %v926 = vld [vmem:[#allocation5 + $0x2] sm:$0xff]
          %v927 = vld [vmem:[#allocation5 + $0xa] sm:$0xff]
          %v928 = vstv %s925
          %v929 = vmul.f32 %v928, %v926
          %v930 = vmul.f32 %v928, %v927
          %v931 = vadd.f32 %v831, %v929
          %v932 = vadd.f32 %v832, %v930
          %s933 = sld [smem:[#allocation6 + $0x19]]
          %v934 = vld [vmem:[#allocation5 + $0x3] sm:$0xff]
          %v935 = vld [vmem:[#allocation5 + $0xb] sm:$0xff]
          %v936 = vstv %s933
          %v937 = vmul.f32 %v936, %v934
          %v938 = vmul.f32 %v936, %v935
          %v939 = vadd.f32 %v839, %v937
          %v940 = vadd.f32 %v840, %v938
          %s941 = sld [smem:[#allocation6 + $0x20]]
          %v942 = vld [vmem:[#allocation5 + $0x4] sm:$0xff]
          %v943 = vld [vmem:[#allocation5 + $0xc] sm:$0xff]
          %v944 = vstv %s941
          %v945 = vmul.f32 %v944, %v942
          %v946 = vmul.f32 %v944, %v943
          %v947 = vadd.f32 %v847, %v945
          %v948 = vadd.f32 %v848, %v946
          %s949 = sld [smem:[#allocation6 + $0x27]]
          %v950 = vld [vmem:[#allocation5 + $0x5] sm:$0xff]
          %v951 = vld [vmem:[#allocation5 + $0xd] sm:$0xff]
          %v952 = vstv %s949
          %v953 = vmul.f32 %v952, %v950
          %v954 = vmul.f32 %v952, %v951
          %v955 = vadd.f32 %v855, %v953
          %v956 = vadd.f32 %v856, %v954
          %s957 = sld [smem:[#allocation6 + $0x2e]]
          %v958 = vld [vmem:[#allocation5 + $0x6] sm:$0xff]
          %v959 = vld [vmem:[#allocation5 + $0xe] sm:$0xff]
          %v960 = vstv %s957
          %v961 = vmul.f32 %v960, %v958
          %v962 = vmul.f32 %v960, %v959
          %v963 = vadd.f32 %v863, %v961
          %v964 = vadd.f32 %v864, %v962
          %s965 = sld [smem:[#allocation6 + $0x35]]
          %v966 = vld [vmem:[%s313] sm:$0xff]
          %v967 = vld [vmem:[%s313 + $0x8] sm:$0xff]
          %v968 = vstv %s965
          %v969 = vmul.f32 %v968, %v966
          %v970 = vmul.f32 %v968, %v967
          %v971 = vadd.f32 %v871, %v969
          %v972 = vadd.f32 %v872, %v970
          %s973 = sld [smem:[#allocation6 + $0x3c]]
          %v974 = vld [vmem:[%s313 + $0x1] sm:$0xff]
          %v975 = vld [vmem:[%s313 + $0x9] sm:$0xff]
          %v976 = vstv %s973
          %v977 = vmul.f32 %v976, %v974
          %v978 = vmul.f32 %v976, %v975
          %v979 = vadd.f32 %v915, %v977
          %v980 = vadd.f32 %v916, %v978
          %s981 = sld [smem:[#allocation6 + $0x43]]
          %v982 = vld [vmem:[%s313 + $0x2] sm:$0xff]
          %v983 = vld [vmem:[%s313 + $0xa] sm:$0xff]
          %v984 = vstv %s981
          %v985 = vmul.f32 %v984, %v982
          %v986 = vmul.f32 %v984, %v983
          %v987 = vadd.f32 %v923, %v985
          %v988 = vadd.f32 %v924, %v986
          %s989 = sld [smem:[#allocation6 + $0x4a]]
          %v990 = vld [vmem:[%s313 + $0x3] sm:$0xff]
          %v991 = vld [vmem:[%s313 + $0xb] sm:$0xff]
          %v992 = vstv %s989
          %v993 = vmul.f32 %v992, %v990
          %v994 = vmul.f32 %v992, %v991
          %v995 = vadd.f32 %v931, %v993
          %v996 = vadd.f32 %v932, %v994
          %s997 = sld [smem:[#allocation6 + $0x51]]
          %v998 = vld [vmem:[%s313 + $0x4] sm:$0xff]
          %v999 = vld [vmem:[%s313 + $0xc] sm:$0xff]
          %v1000 = vstv %s997
          %v1001 = vmul.f32 %v1000, %v998
          %v1002 = vmul.f32 %v1000, %v999
          %v1003 = vadd.f32 %v939, %v1001
          %v1004 = vadd.f32 %v940, %v1002
          %s1005 = sld [smem:[#allocation6 + $0x58]]
          %v1006 = vld [vmem:[%s313 + $0x5] sm:$0xff]
          %v1007 = vld [vmem:[%s313 + $0xd] sm:$0xff]
          %v1008 = vstv %s1005
          %v1009 = vmul.f32 %v1008, %v1006
          %v1010 = vmul.f32 %v1008, %v1007
          %v1011 = vadd.f32 %v947, %v1009
          %v1012 = vadd.f32 %v948, %v1010
          %s1013 = sld [smem:[#allocation6 + $0x5f]]
          %v1014 = vld [vmem:[%s313 + $0x6] sm:$0xff]
          %v1015 = vld [vmem:[%s313 + $0xe] sm:$0xff]
          %v1016 = vstv %s1013
          %v1017 = vmul.f32 %v1016, %v1014
          %v1018 = vmul.f32 %v1016, %v1015
          %v1019 = vadd.f32 %v955, %v1017
          %v1020 = vadd.f32 %v956, %v1018
          %v1021 = vld [vmem:[#allocation4] sm:$0xff]
          %v1022 = vld [vmem:[#allocation4 + $0x8] sm:$0xff]
          %v1023 = vld [vmem:[#allocation4 + $0x10] sm:$0x3f]
          %1027 = vrot.lane.b32.xlu0 %v1021, 123
          %v1028 = vpop.permute.xlu0 %1027
          %1029 = vrot.lane.b32.xlu0 %v1022, 123
          %v1030 = vpop.permute.xlu0 %1029
          %1031 = vrot.lane.b32.xlu0 %v1023, 123
          %v1032 = vpop.permute.xlu0 %1031
          %1036 = vst.msk [vmem:[#allocation5] sm:$0xff] %vm200, %v1028
          %1037 = vst.msk [vmem:[#allocation5 + $0x8] sm:$0xff] %vm200, %v1030
          %1038 = vst.msk [vmem:[#allocation5 + $0x10] sm:$0x3f] %vm308, %v1032
          %v1039 = vld [vmem:[%s300] sm:$0xff]
          %v1040 = vld [vmem:[%s300 + $0x8] sm:$0xff]
          %v1041 = vld [vmem:[%s300 + $0x10] sm:$0x3f]
          %1045 = vrot.lane.b32.xlu0 %v1039, 123
          %v1046 = vpop.permute.xlu0 %1045
          %1047 = vrot.lane.b32.xlu0 %v1040, 123
          %v1048 = vpop.permute.xlu0 %1047
          %1049 = vrot.lane.b32.xlu0 %v1041, 123
          %v1050 = vpop.permute.xlu0 %1049
          %1054 = vst.msk [vmem:[%s313] sm:$0xff] %vm200, %v1046
          %1055 = vst.msk [vmem:[%s313 + $0x8] sm:$0xff] %vm200, %v1048
          %1056 = vst.msk [vmem:[%s313 + $0x10] sm:$0x3f] %vm308, %v1050
          %s1057 = sld [smem:[#allocation6 + $0x5]]
          %v1058 = vld [vmem:[#allocation5] sm:$0xff]
          %v1059 = vld [vmem:[#allocation5 + $0x8] sm:$0xff]
          %v1060 = vstv %s1057
          %v1061 = vmul.f32 %v1060, %v1058
          %v1062 = vmul.f32 %v1060, %v1059
          %v1063 = vadd.f32 %v963, %v1061
          %v1064 = vadd.f32 %v964, %v1062
          %s1065 = sld [smem:[#allocation6 + $0xc]]
          %v1066 = vld [vmem:[#allocation5 + $0x1] sm:$0xff]
          %v1067 = vld [vmem:[#allocation5 + $0x9] sm:$0xff]
          %v1068 = vstv %s1065
          %v1069 = vmul.f32 %v1068, %v1066
          %v1070 = vmul.f32 %v1068, %v1067
          %v1071 = vadd.f32 %v971, %v1069
          %v1072 = vadd.f32 %v972, %v1070
          %s1073 = sld [smem:[#allocation6 + $0x13]]
          %v1074 = vld [vmem:[#allocation5 + $0x2] sm:$0xff]
          %v1075 = vld [vmem:[#allocation5 + $0xa] sm:$0xff]
          %v1076 = vstv %s1073
          %v1077 = vmul.f32 %v1076, %v1074
          %v1078 = vmul.f32 %v1076, %v1075
          %v1079 = vadd.f32 %v979, %v1077
          %v1080 = vadd.f32 %v980, %v1078
          %s1081 = sld [smem:[#allocation6 + $0x1a]]
          %v1082 = vld [vmem:[#allocation5 + $0x3] sm:$0xff]
          %v1083 = vld [vmem:[#allocation5 + $0xb] sm:$0xff]
          %v1084 = vstv %s1081
          %v1085 = vmul.f32 %v1084, %v1082
          %v1086 = vmul.f32 %v1084, %v1083
          %v1087 = vadd.f32 %v987, %v1085
          %v1088 = vadd.f32 %v988, %v1086
          %s1089 = sld [smem:[#allocation6 + $0x21]]
          %v1090 = vld [vmem:[#allocation5 + $0x4] sm:$0xff]
          %v1091 = vld [vmem:[#allocation5 + $0xc] sm:$0xff]
          %v1092 = vstv %s1089
          %v1093 = vmul.f32 %v1092, %v1090
          %v1094 = vmul.f32 %v1092, %v1091
          %v1095 = vadd.f32 %v995, %v1093
          %v1096 = vadd.f32 %v996, %v1094
          %s1097 = sld [smem:[#allocation6 + $0x28]]
          %v1098 = vld [vmem:[#allocation5 + $0x5] sm:$0xff]
          %v1099 = vld [vmem:[#allocation5 + $0xd] sm:$0xff]
          %v1100 = vstv %s1097
          %v1101 = vmul.f32 %v1100, %v1098
          %v1102 = vmul.f32 %v1100, %v1099
          %v1103 = vadd.f32 %v1003, %v1101
          %v1104 = vadd.f32 %v1004, %v1102
          %s1105 = sld [smem:[#allocation6 + $0x2f]]
          %v1106 = vld [vmem:[#allocation5 + $0x6] sm:$0xff]
          %v1107 = vld [vmem:[#allocation5 + $0xe] sm:$0xff]
          %v1108 = vstv %s1105
          %v1109 = vmul.f32 %v1108, %v1106
          %v1110 = vmul.f32 %v1108, %v1107
          %v1111 = vadd.f32 %v1011, %v1109
          %v1112 = vadd.f32 %v1012, %v1110
          %s1113 = sld [smem:[#allocation6 + $0x36]]
          %v1114 = vld [vmem:[%s313] sm:$0xff]
          %v1115 = vld [vmem:[%s313 + $0x8] sm:$0xff]
          %v1116 = vstv %s1113
          %v1117 = vmul.f32 %v1116, %v1114
          %v1118 = vmul.f32 %v1116, %v1115
          %v1119 = vadd.f32 %v1019, %v1117
          %v1120 = vadd.f32 %v1020, %v1118
          %s1121 = sld [smem:[#allocation6 + $0x3d]]
          %v1122 = vld [vmem:[%s313 + $0x1] sm:$0xff]
          %v1123 = vld [vmem:[%s313 + $0x9] sm:$0xff]
          %v1124 = vstv %s1121
          %v1125 = vmul.f32 %v1124, %v1122
          %v1126 = vmul.f32 %v1124, %v1123
          %v1127 = vadd.f32 %v1063, %v1125
          %v1128 = vadd.f32 %v1064, %v1126
          %s1129 = sld [smem:[#allocation6 + $0x44]]
          %v1130 = vld [vmem:[%s313 + $0x2] sm:$0xff]
          %v1131 = vld [vmem:[%s313 + $0xa] sm:$0xff]
          %v1132 = vstv %s1129
          %v1133 = vmul.f32 %v1132, %v1130
          %v1134 = vmul.f32 %v1132, %v1131
          %v1135 = vadd.f32 %v1071, %v1133
          %v1136 = vadd.f32 %v1072, %v1134
          %s1137 = sld [smem:[#allocation6 + $0x4b]]
          %v1138 = vld [vmem:[%s313 + $0x3] sm:$0xff]
          %v1139 = vld [vmem:[%s313 + $0xb] sm:$0xff]
          %v1140 = vstv %s1137
          %v1141 = vmul.f32 %v1140, %v1138
          %v1142 = vmul.f32 %v1140, %v1139
          %v1143 = vadd.f32 %v1079, %v1141
          %v1144 = vadd.f32 %v1080, %v1142
          %s1145 = sld [smem:[#allocation6 + $0x52]]
          %v1146 = vld [vmem:[%s313 + $0x4] sm:$0xff]
          %v1147 = vld [vmem:[%s313 + $0xc] sm:$0xff]
          %v1148 = vstv %s1145
          %v1149 = vmul.f32 %v1148, %v1146
          %v1150 = vmul.f32 %v1148, %v1147
          %v1151 = vadd.f32 %v1087, %v1149
          %v1152 = vadd.f32 %v1088, %v1150
          %s1153 = sld [smem:[#allocation6 + $0x59]]
          %v1154 = vld [vmem:[%s313 + $0x5] sm:$0xff]
          %v1155 = vld [vmem:[%s313 + $0xd] sm:$0xff]
          %v1156 = vstv %s1153
          %v1157 = vmul.f32 %v1156, %v1154
          %v1158 = vmul.f32 %v1156, %v1155
          %v1159 = vadd.f32 %v1095, %v1157
          %v1160 = vadd.f32 %v1096, %v1158
          %s1161 = sld [smem:[#allocation6 + $0x60]]
          %v1162 = vld [vmem:[%s313 + $0x6] sm:$0xff]
          %v1163 = vld [vmem:[%s313 + $0xe] sm:$0xff]
          %v1164 = vstv %s1161
          %v1165 = vmul.f32 %v1164, %v1162
          %v1166 = vmul.f32 %v1164, %v1163
          %v1167 = vadd.f32 %v1103, %v1165
          %v1168 = vadd.f32 %v1104, %v1166
          %v1169 = vld [vmem:[#allocation4] sm:$0xff]
          %v1170 = vld [vmem:[#allocation4 + $0x8] sm:$0xff]
          %v1171 = vld [vmem:[#allocation4 + $0x10] sm:$0x3f]
          %1175 = vrot.lane.b32.xlu0 %v1169, 122
          %v1176 = vpop.permute.xlu0 %1175
          %1177 = vrot.lane.b32.xlu0 %v1170, 122
          %v1178 = vpop.permute.xlu0 %1177
          %1179 = vrot.lane.b32.xlu0 %v1171, 122
          %v1180 = vpop.permute.xlu0 %1179
          %1184 = vst.msk [vmem:[#allocation5] sm:$0xff] %vm200, %v1176
          %1185 = vst.msk [vmem:[#allocation5 + $0x8] sm:$0xff] %vm200, %v1178
          %1186 = vst.msk [vmem:[#allocation5 + $0x10] sm:$0x3f] %vm308, %v1180
          %v1187 = vld [vmem:[%s300] sm:$0xff]
          %v1188 = vld [vmem:[%s300 + $0x8] sm:$0xff]
          %v1189 = vld [vmem:[%s300 + $0x10] sm:$0x3f]
          %1193 = vrot.lane.b32.xlu0 %v1187, 122
          %v1194 = vpop.permute.xlu0 %1193
          %1195 = vrot.lane.b32.xlu0 %v1188, 122
          %v1196 = vpop.permute.xlu0 %1195
          %1197 = vrot.lane.b32.xlu0 %v1189, 122
          %v1198 = vpop.permute.xlu0 %1197
          %1202 = vst.msk [vmem:[%s313] sm:$0xff] %vm200, %v1194
          %1203 = vst.msk [vmem:[%s313 + $0x8] sm:$0xff] %vm200, %v1196
          %1204 = vst.msk [vmem:[%s313 + $0x10] sm:$0x3f] %vm308, %v1198
          %s1205 = sld [smem:[#allocation6 + $0x6]]
          %v1206 = vld [vmem:[#allocation5] sm:$0xff]
          %v1207 = vld [vmem:[#allocation5 + $0x8] sm:$0xff]
          %v1208 = vstv %s1205
          %v1209 = vmul.f32 %v1208, %v1206
          %v1210 = vmul.f32 %v1208, %v1207
          %v1211 = vadd.f32 %v1111, %v1209
          %v1212 = vadd.f32 %v1112, %v1210
          %s1213 = sld [smem:[#allocation6 + $0xd]]
          %v1214 = vld [vmem:[#allocation5 + $0x1] sm:$0xff]
          %v1215 = vld [vmem:[#allocation5 + $0x9] sm:$0xff]
          %v1216 = vstv %s1213
          %v1217 = vmul.f32 %v1216, %v1214
          %v1218 = vmul.f32 %v1216, %v1215
          %v1219 = vadd.f32 %v1119, %v1217
          %v1220 = vadd.f32 %v1120, %v1218
          %s1221 = sld [smem:[#allocation6 + $0x14]]
          %v1222 = vld [vmem:[#allocation5 + $0x2] sm:$0xff]
          %v1223 = vld [vmem:[#allocation5 + $0xa] sm:$0xff]
          %v1224 = vstv %s1221
          %v1225 = vmul.f32 %v1224, %v1222
          %v1226 = vmul.f32 %v1224, %v1223
          %v1227 = vadd.f32 %v1127, %v1225
          %v1228 = vadd.f32 %v1128, %v1226
          %s1229 = sld [smem:[#allocation6 + $0x1b]]
          %v1230 = vld [vmem:[#allocation5 + $0x3] sm:$0xff]
          %v1231 = vld [vmem:[#allocation5 + $0xb] sm:$0xff]
          %v1232 = vstv %s1229
          %v1233 = vmul.f32 %v1232, %v1230
          %v1234 = vmul.f32 %v1232, %v1231
          %v1235 = vadd.f32 %v1135, %v1233
          %v1236 = vadd.f32 %v1136, %v1234
          %s1237 = sld [smem:[#allocation6 + $0x22]]
          %v1238 = vld [vmem:[#allocation5 + $0x4] sm:$0xff]
          %v1239 = vld [vmem:[#allocation5 + $0xc] sm:$0xff]
          %v1240 = vstv %s1237
          %v1241 = vmul.f32 %v1240, %v1238
          %v1242 = vmul.f32 %v1240, %v1239
          %v1243 = vadd.f32 %v1143, %v1241
          %v1244 = vadd.f32 %v1144, %v1242
          %s1245 = sld [smem:[#allocation6 + $0x29]]
          %v1246 = vld [vmem:[#allocation5 + $0x5] sm:$0xff]
          %v1247 = vld [vmem:[#allocation5 + $0xd] sm:$0xff]
          %v1248 = vstv %s1245
          %v1249 = vmul.f32 %v1248, %v1246
          %v1250 = vmul.f32 %v1248, %v1247
          %v1251 = vadd.f32 %v1151, %v1249
          %v1252 = vadd.f32 %v1152, %v1250
          %s1253 = sld [smem:[#allocation6 + $0x30]]
          %v1254 = vld [vmem:[#allocation5 + $0x6] sm:$0xff]
          %v1255 = vld [vmem:[#allocation5 + $0xe] sm:$0xff]
          %v1256 = vstv %s1253
          %v1257 = vmul.f32 %v1256, %v1254
          %v1258 = vmul.f32 %v1256, %v1255
          %v1259 = vadd.f32 %v1159, %v1257
          %v1260 = vadd.f32 %v1160, %v1258
          %s1261 = sld [smem:[#allocation6 + $0x37]]
          %v1262 = vld [vmem:[%s313] sm:$0xff]
          %v1263 = vld [vmem:[%s313 + $0x8] sm:$0xff]
          %v1264 = vstv %s1261
          %v1265 = vmul.f32 %v1264, %v1262
          %v1266 = vmul.f32 %v1264, %v1263
          %v1267 = vadd.f32 %v1167, %v1265
          %v1268 = vadd.f32 %v1168, %v1266
          %s1269 = sld [smem:[#allocation6 + $0x3e]]
          %v1270 = vld [vmem:[%s313 + $0x1] sm:$0xff]
          %v1271 = vld [vmem:[%s313 + $0x9] sm:$0xff]
          %v1272 = vstv %s1269
          %v1273 = vmul.f32 %v1272, %v1270
          %v1274 = vmul.f32 %v1272, %v1271
          %v1275 = vadd.f32 %v1211, %v1273
          %v1276 = vadd.f32 %v1212, %v1274
          %s1277 = sld [smem:[#allocation6 + $0x45]]
          %v1278 = vld [vmem:[%s313 + $0x2] sm:$0xff]
          %v1279 = vld [vmem:[%s313 + $0xa] sm:$0xff]
          %v1280 = vstv %s1277
          %v1281 = vmul.f32 %v1280, %v1278
          %v1282 = vmul.f32 %v1280, %v1279
          %v1283 = vadd.f32 %v1219, %v1281
          %v1284 = vadd.f32 %v1220, %v1282
          %s1285 = sld [smem:[#allocation6 + $0x4c]]
          %v1286 = vld [vmem:[%s313 + $0x3] sm:$0xff]
          %v1287 = vld [vmem:[%s313 + $0xb] sm:$0xff]
          %v1288 = vstv %s1285
          %v1289 = vmul.f32 %v1288, %v1286
          %v1290 = vmul.f32 %v1288, %v1287
          %v1291 = vadd.f32 %v1227, %v1289
          %v1292 = vadd.f32 %v1228, %v1290
          %s1293 = sld [smem:[#allocation6 + $0x53]]
          %v1294 = vld [vmem:[%s313 + $0x4] sm:$0xff]
          %v1295 = vld [vmem:[%s313 + $0xc] sm:$0xff]
          %v1296 = vstv %s1293
          %v1297 = vmul.f32 %v1296, %v1294
          %v1298 = vmul.f32 %v1296, %v1295
          %v1299 = vadd.f32 %v1235, %v1297
          %v1300 = vadd.f32 %v1236, %v1298
          %s1301 = sld [smem:[#allocation6 + $0x5a]]
          %v1302 = vld [vmem:[%s313 + $0x5] sm:$0xff]
          %v1303 = vld [vmem:[%s313 + $0xd] sm:$0xff]
          %v1304 = vstv %s1301
          %v1305 = vmul.f32 %v1304, %v1302
          %v1306 = vmul.f32 %v1304, %v1303
          %v1307 = vadd.f32 %v1243, %v1305
          %v1308 = vadd.f32 %v1244, %v1306
          %s1309 = sld [smem:[#allocation6 + $0x61]]
          %v1310 = vld [vmem:[%s313 + $0x6] sm:$0xff]
          %v1311 = vld [vmem:[%s313 + $0xe] sm:$0xff]
          %v1312 = vstv %s1309
          %v1313 = vmul.f32 %v1312, %v1310
          %v1314 = vmul.f32 %v1312, %v1311
          %v1315 = vadd.f32 %v1251, %v1313
          %v1316 = vadd.f32 %v1252, %v1314
          %v1317 = vadd.f32 %v1307, %v1315
          %v1318 = vadd.f32 %v1308, %v1316
          %v1319 = vadd.f32 %v1259, %v1267
          %v1320 = vadd.f32 %v1260, %v1268
          %v1321 = vadd.f32 %v1317, %v1319
          %v1322 = vadd.f32 %v1318, %v1320
          %v1323 = vadd.f32 %v1275, %v1283
          %v1324 = vadd.f32 %v1276, %v1284
          %v1325 = vadd.f32 %v1291, %v1299
          %v1326 = vadd.f32 %v1292, %v1300
          %v1327 = vadd.f32 %v1323, %v1325
          %v1328 = vadd.f32 %v1324, %v1326
          %v1329 = vadd.f32 %v1321, %v1327
          %v1330 = vadd.f32 %v1322, %v1328
          %v1331 = vxor.u32 %v1329, 2147483648
          %v1332 = vxor.u32 %v1330, 2147483648
          %v1333 = vmul.f32 %v1331, 1.442695
          %v1334 = vpow.pop %v1333
          %v1335 = vmul.f32 %v1332, 1.442695
          %v1336 = vpow.pop %v1335
          %v1337 = vadd.f32 %v1334, 1.0
          %v1338 = vadd.f32 %v1336, 1.0
          %v1339 = vrcp.pop %v1337
          %v1340 = vmul.f32 1.0, %v1339
          %v1341 = vrcp.pop %v1338
          %v1342 = vmul.f32 1.0, %v1341
          %1343 = vst.msk [vmem:[%s190] sm:$0xff] %vm200, %v1340
          %1344 = vst.msk [vmem:[%s190 + $0x8] sm:$0xff] %vm200, %v1342
        $region48: #{tpu_custom_call.1} parent=27 // pred_fallthru
          _
        %s1345 = sand.u32 %s89, 1
        %s1346 = scalar_lea.sflag [#allocation8], %s1345
        %s1347 = sand.u32 %s89, 1
        %s1348 = smul.addr %s1347, 16
        %s1349 = scalar_lea.vmem [#allocation11], %s1348
        // Predicated region
        $region49: #{tpu_custom_call.1} parent=27 // pred_check
          %p1350 = pneg %p99
        $region50: #{tpu_custom_call.1} parent=27 // pred_check_branch
          %1352 = sbr.rel (%p1350) target = $region52
        $region51: #{tpu_custom_call.1} parent=27 // pred_region
          %s1354 = ssub.s32 256, 256
          %1355 = vsyncadd %s1346, %s1354
          %s1356 = smul.addr %s24, 2
          %s1357 = smul.addr %s1356, 128
          %s1358 = scalar_lea.hbm %s2, %s1357
          %s1359 = sshll.u32 %s1349, 4
          %s1360 = int_to_ptr.vmem [resolvable:$true] %s1359
          %1365 = dma.vmem_to_hbm [thread:$0]  %s1360, 256, %s1358, %s1346, 128, 128, 8
        $region52: #{tpu_custom_call.1} parent=27 // pred_fallthru
          _
      $region28: #{tpu_custom_call.1} parent=5 // pred_fallthru
        _
      %p1366 = scmp.le.s32.totalorder 2, %s15
      // Predicated region
      $region53: #{tpu_custom_call.1} parent=5 // pred_check
        %p1367 = pneg %p1366
      $region54: #{tpu_custom_call.1} parent=5 // pred_check_branch
        %1369 = sbr.rel (%p1367) target = $region56
      $region55: #{tpu_custom_call.1} parent=5 // pred_region
        %s1370 = ssub.s32 %s15, 2
        // Predicated region
        $region57: #{tpu_custom_call.1} parent=55 // pred_check
          %p1371 = pneg %p105
        $region58: #{tpu_custom_call.1} parent=55 // pred_check_branch
          %1373 = sbr.rel (%p1371) target = $region60
        $region59: #{tpu_custom_call.1} parent=55 // pred_region
          %s1374 = sand.u32 %s90, 1
          %s1375 = scalar_lea.sflag [#allocation8], %s1374
          %s1376 = sand.u32 %s90, 1
          %s1377 = smul.addr %s1376, 16
          %s1378 = scalar_lea.vmem [#allocation11], %s1377
          %1379 = dma.done %s1375, 256
        $region60: #{tpu_custom_call.1} parent=55 // pred_fallthru
          _
      $region56: #{tpu_custom_call.1} parent=5 // pred_fallthru
        _
    $region6: #{tpu_custom_call.1} parent=1 // loop_footer
      %s19 = sadd.s32 1, %s15
    $region7: #{tpu_custom_call.1} parent=1 // loop_footer_branch
      %14 = sbr.rel target = $region3
    $region8: #{tpu_custom_call.1} parent=1 // loop_exit
      _
    %1380 = vsyncpa [#allocation7], 1
    %s1381 = scalar_lea.sflag [#allocation7], 1
    %1382 = vsyncpa %s1381, 1
    %1383 = vsyncpa [#allocation8], 1
    %s1384 = scalar_lea.sflag [#allocation8], 1
    %1385 = vsyncpa %s1384, 1
    %1386 = vsyncpa [#allocation9], 1
    %s1387 = scalar_lea.sflag [#allocation9], 1
    %1388 = vsyncpa %s1387, 1

</llo_original>
